<compile_context>
chip_gen: v7x
topology: tpu7x:2x2x1
jax: 0.10.0
libtpu: 0.0.40
codegen_flags: <defaults>
</compile_context>

<pallas_src>
import math

import jax
import jax.numpy as jnp
from jax.experimental import pallas as pl
from jax.experimental.pallas import tpu as pltpu


COMPUTE_DTYPE = jnp.bfloat16   # MXU operand dtype; accumulation / BN / ReLU / FC stay f32.

# 3x3 taps in (dy, dx) order matching weight.reshape(9, cin, cout) rows (ky=dy+1, kx=dx+1).
_TAPS = tuple((dy, dx) for dy in (-1, 0, 1) for dx in (-1, 0, 1))


# -----------------------------------------------------------------------------
# Fused kernel: conv blocks (+ folded BN + ReLU) + Linear(64 -> 1) + Tanh
# -----------------------------------------------------------------------------
def _make_value_head_kernel(block_couts, compute_dtype):
    """refs = x, (w, scale, shift) * n_blocks, fc_w, fc_b, out.  No scratch buffers."""
    n_blocks = len(block_couts)

    def kernel(*refs):
        x_ref = refs[0]
        blk_refs = refs[1:1 + 3 * n_blocks]
        fc_w_ref = refs[1 + 3 * n_blocks]
        fc_b_ref = refs[2 + 3 * n_blocks]
        o_ref = refs[3 + 3 * n_blocks]

        n_rows = x_ref.shape[0]            # bt * 64 rows = (board, y, x) positions
        bt = n_rows // 64

        # Per-tap row-validity masks, shared by every block (they only depend on the
        # position inside the 8x8 board).  Built once per grid step from a 2-D iota;
        # the /8 and %8 are power-of-two shifts/ands (cheap VPU int ops).
        row = jax.lax.broadcasted_iota(jnp.int32, (n_rows, 1), 0)
        yy = (row >> 3) & 7
        xx = row & 7

        def _tap_mask(dy, dx):
            conds = []
            if dy == -1:
                conds.append(yy >= 1)
            elif dy == 1:
                conds.append(yy <= 6)
            if dx == -1:
                conds.append(xx >= 1)
            elif dx == 1:
                conds.append(xx <= 6)
            m = conds[0]
            for c in conds[1:]:
                m = jnp.logical_and(m, c)
            return m

        masks = {t: _tap_mask(*t) for t in _TAPS if t != (0, 0)}

        h = x_ref[...]                     # (n_rows, cin0) f32, lanes = channels

        for bi, cout in enumerate(block_couts):
            w_ref, s_ref, t_ref = blk_refs[3 * bi:3 * bi + 3]

            acc = None
            for k, (dy, dx) in enumerate(_TAPS):
                delta = dy * 8 + dx
                # Tap shift = sublane rotation (XLU slot, no VMEM scratch).  Rows whose
                # source lies outside the board (including rows where the rotation wraps
                # into a neighbouring board) are zeroed below via the per-tap mask.
                src = h if delta == 0 else pltpu.roll(h, (-delta) % n_rows, axis=0)
                if cout == 1:
                    # Channel-collapse block: keep it off the MXU (an N=1 matmul would
                    # use 1/256 of the lanes).  f32 VPU multiply, wide f32 accumulator.
                    part = src * w_ref[k]                                   # (n_rows, cin)
                else:
                    # f32 roll (robust 32-bit sublane rotate) -> bf16 operand cast per
                    # tap; single wide-M MXU matmul per tap with f32 accumulation.
                    part = jnp.dot(src.astype(compute_dtype), w_ref[k],
                                   preferred_element_type=jnp.float32)      # (n_rows, cout)
                if delta != 0:
                    part = jnp.where(masks[(dy, dx)], part, 0.0)
                acc = part if acc is None else acc + part
            if cout == 1:
                acc = jnp.sum(acc, axis=-1, keepdims=True)                   # XLU lane reduce

            # Folded BatchNorm (running stats + conv bias) + ReLU, in f32 (v5e has no
            # bf16 VPU).  Dropout2d is identity in eval mode.
            h = jnp.maximum(acc * s_ref[...] + t_ref[...], 0.0)

        # h is (bt*64, 1).  Linear(64 -> 1): broadcast multiply + per-board sublane
        # reduce (XLU) + Tanh (EUP).  No MXU matmul, no relayout of h.
        prod = h.reshape(bt, 64, 1) * fc_w_ref[...]                          # fc_w: (64, 1)
        fc = jnp.sum(prod, axis=1) + fc_b_ref[...]                           # (bt, 1)
        o_ref[...] = jnp.tanh(fc).astype(o_ref.dtype).reshape(1, bt, 1)

    return kernel


# -----------------------------------------------------------------------------
# Wrapper: weight folding, generation-aware batch tiling, pallas_call glue
# -----------------------------------------------------------------------------
def _cdiv(a, b):
    return -(-a // b)


def _round_up(v, m):
    return _cdiv(v, m) * m


def _fold_block_params(p, compute_dtype, eps):
    """Conv weight -> per-tap layout; BatchNorm (+ conv bias) folded to scale/shift."""
    w = p["w"]                                           # (3, 3, cin, cout)  HWIO
    cin, cout = w.shape[2], w.shape[3]
    scale = p["gamma"] / jnp.sqrt(p["rvar"] + eps)
    shift = p["beta"] + (p["b"] - p["rmean"]) * scale
    if cout == 1:
        # VPU path: per-tap weight row (9, 1, cin), f32.
        w_k = jnp.transpose(w.reshape(9, cin, 1), (0, 2, 1)).astype(jnp.float32)
    else:
        # MXU path: per-tap (cin, cout) matmul operand, bf16.
        w_k = w.reshape(9, cin, cout).astype(compute_dtype)
    return (w_k,
            scale.reshape(1, cout).astype(jnp.float32),
            shift.reshape(1, cout).astype(jnp.float32))


def _vmem_capacity_bytes():
    try:
        return int(pltpu.get_tpu_info().vmem_capacity_bytes)
    except Exception:
        return 64 << 20          # conservative (v7x-sized) fallback if the query fails


def _per_board_vmem_bytes(n_embd):
    """Layout-aware VMEM bytes per board per grid step (lane dims pad to 128)."""
    cp = _round_up(max(int(n_embd), 1), 128)
    x_block = 64 * cp * 4 * 2               # f32 input block, double-buffered pipeline
    live = 64 * cp * (3 * 4 + 2 * 2)        # ~3 f32 + 2 bf16 live copies of the widest
                                            # activation (h, rolled tap, partial, acc)
    return x_block + live


def _weights_vmem_bytes(params):
    total = 0
    for p in params["blocks"]:
        cin, cout = int(p["w"].shape[2]), int(p["w"].shape[3])
        if cout == 1:
            total += 9 * 8 * _round_up(cin, 128) * 4          # (9, 1, cin) f32
        else:
            total += 9 * _round_up(cin, 16) * _round_up(cout, 128) * 2   # (9,cin,cout) bf16
        total += 2 * 8 * 128 * 4                              # scale + shift
    total += 2 * 8 * 128 * 4                                  # fc_w + fc_b
    return total


def _choose_tiling(batch, n_embd, weight_bytes, vmem_cap):
    """Boards per grid step and number of grid steps.

    * working set <= ~1/3 of the chip's VMEM (v7x 64 MiB -> ~21 MiB; v5e/v6e -> <=48 MiB),
      measured with (8,128) layout padding and pipeline double-buffering included.
    * tiles capped at 512 boards (grid-step overhead fully amortized, bounded tail waste).
    * whenever B >= 2 the grid has >= 2 steps so the "parallel" batch axis can be split
      across v7x's two TensorCores with real work on each (the 3-D output layout allows
      any tile size >= 1 board); on 1-TC chips the extra step costs ~0.35 us.
    """
    budget = max(min(vmem_cap // 3, 48 << 20) - weight_bytes, 4 << 20)
    cap_boards = max(1, min(512, budget // _per_board_vmem_bytes(n_embd)))
    want_tiles = 2 if batch >= 2 else 1
    num_tiles = max(want_tiles, _cdiv(batch, cap_boards))
    b_tile = _cdiv(batch, num_tiles)          # balanced tiles, minimal batch padding
    return b_tile, num_tiles


def _resident(a):
    """Whole array, same block every grid step -> stays VMEM-resident across steps."""
    return pl.BlockSpec(a.shape, lambda i: (0,) * a.ndim)


def value_head_forward(x, params, *, compute_dtype=COMPUTE_DTYPE, eps=1e-5):
    """x: (B, T=64, C=n_embd) -> (B, 1); matches ValueHead.forward (eval mode)."""
    B, T, C = x.shape
    assert T == 64, "ValueHead operates on 8x8 boards (T == 64)"
    couts = tuple(int(p["w"].shape[-1]) for p in params["blocks"])
    assert couts[-1] == 1, "channel reduction must end at 1"

    vmem_cap = _vmem_capacity_bytes()
    b_tile, num_tiles = _choose_tiling(B, C, _weights_vmem_bytes(params), vmem_cap)
    b_pad = b_tile * num_tiles

    # (B*64, C): same contiguous HBM bytes as x, already in the (rows = board positions,
    # lanes = channels) layout every conv tap consumes -- no in-kernel relayout.
    x_rows = x.reshape(B * 64, C)
    if b_pad != B:
        x_rows = jnp.pad(x_rows, ((0, (b_pad - B) * 64), (0, 0)))

    inputs = [x_rows]
    in_specs = [pl.BlockSpec((b_tile * 64, C), lambda i: (i, 0))]
    for p in params["blocks"]:
        w_k, scale, shift = _fold_block_params(p, compute_dtype, eps)
        inputs += [w_k, scale, shift]
        in_specs += [_resident(w_k), _resident(scale), _resident(shift)]

    fc_w = params["fc_w"].reshape(64, 1).astype(jnp.float32)
    fc_b = params["fc_b"].reshape(1, 1).astype(jnp.float32)
    inputs += [fc_w, fc_b]
    in_specs += [_resident(fc_w), _resident(fc_b)]

    out = pl.pallas_call(
        _make_value_head_kernel(couts, compute_dtype),
        # 3-D output (tile, boards-in-tile, 1): last two block dims always equal the
        # array dims, so any tile size (down to 1 board) is a legal BlockSpec.
        out_shape=jax.ShapeDtypeStruct((num_tiles, b_tile, 1), jnp.float32),
        grid=(num_tiles,),
        in_specs=in_specs,
        out_specs=pl.BlockSpec((1, b_tile, 1), lambda i: (i, 0, 0)),
        compiler_params=pltpu.CompilerParams(
            dimension_semantics=("parallel",),            # megacore / v7x 2-TC sharding
            vmem_limit_bytes=int(min(vmem_cap * 3 // 4, 96 << 20))),
    )(*inputs)
    return out.reshape(b_pad, 1)[:B]


# -----------------------------------------------------------------------------
# Deterministic parameter init (shapes follow ValueHead.__init__) + reference
# -----------------------------------------------------------------------------
def init_params(key, n_embd, n_blocks_valuehead):
    log_red = int(math.log2(n_embd))
    common = log_red // n_blocks_valuehead
    n_add = log_red % n_blocks_valuehead
    inch = n_embd
    blocks = []
    for i in range(n_blocks_valuehead):
        red = common if n_add + i < n_blocks_valuehead else common + 1
        outch = inch // 2 ** red
        key, k1, k2, k3, k4, k5, k6 = jax.random.split(key, 7)
        blocks.append(dict(
            w=jax.random.normal(k1, (3, 3, inch, outch), jnp.float32) / math.sqrt(inch * 9),
            b=jax.random.normal(k2, (outch,), jnp.float32) * 0.01,
            gamma=1.0 + 0.1 * jax.random.normal(k3, (outch,), jnp.float32),
            beta=0.1 * jax.random.normal(k4, (outch,), jnp.float32),
            rmean=0.1 * jax.random.normal(k5, (outch,), jnp.float32),
            rvar=0.5 + jax.random.uniform(k6, (outch,), jnp.float32)))
        inch = outch
    key, k1, k2 = jax.random.split(key, 3)
    return dict(blocks=blocks,
                fc_w=jax.random.normal(k1, (64, 1), jnp.float32) / 8.0,
                fc_b=jax.random.normal(k2, (1, 1), jnp.float32) * 0.01)


def ref_forward(x, params, eps=1e-5, compute_dtype=COMPUTE_DTYPE):
    """Pure-JAX reference with the kernel's precision policy: bf16 x bf16 -> f32 for
    MXU blocks, f32 for the cout==1 block and the FC."""
    B, T, C = x.shape
    h = x.reshape(B, 8, 8, C)
    for p in params["blocks"]:
        cout = p["w"].shape[-1]
        cd = compute_dtype if cout > 1 else jnp.float32
        conv = jax.lax.conv_general_dilated(
            h.astype(cd), p["w"].astype(cd),
            window_strides=(1, 1), padding="SAME",
            dimension_numbers=("NHWC", "HWIO", "NHWC"),
            preferred_element_type=jnp.float32) + p["b"]
        scale = p["gamma"] / jnp.sqrt(p["rvar"] + eps)
        h = jnp.maximum((conv - p["rmean"]) * scale + p["beta"], 0.0)
    flat = h.reshape(B, 64)
    return jnp.tanh(flat @ params["fc_w"] + params["fc_b"])


# -----------------------------------------------------------------------------
if __name__ == "__main__":
    n_embd = 32             # model_config.n_embd (power of 2)
    n_blocks_valuehead = 2  # model_config.n_blocks_valuehead -> channels 32 -> 8 -> 1
    B, T = 3, 64            # three 8x8 boards (exercises 2-tile grid + batch padding)

    key = jax.random.PRNGKey(0)
    kx, kp = jax.random.split(key)
    x = jax.random.normal(kx, (B, T, n_embd), jnp.float32)
    params = init_params(kp, n_embd, n_blocks_valuehead)

    out = jax.block_until_ready(value_head_forward(x, params))
    ref = jax.block_until_ready(ref_forward(x, params))

    assert out.shape == (B, 1), out.shape
    assert jnp.allclose(out, ref, atol=2e-3, rtol=2e-3), (out, ref)
    print("KERNEL_OK")
</pallas_src>

<mosaic_0001>
module attributes {stable_mosaic.version = 11 : i64} {
  func.func @kernel(%arg0: i32, %arg1: memref<128x32xf32, #tpu.memory_space<vmem>>, %arg2: memref<9x32x8xbf16, #tpu.memory_space<vmem>>, %arg3: memref<1x8xf32, #tpu.memory_space<vmem>>, %arg4: memref<1x8xf32, #tpu.memory_space<vmem>>, %arg5: memref<9x1x8xf32, #tpu.memory_space<vmem>>, %arg6: memref<1x1xf32, #tpu.memory_space<vmem>>, %arg7: memref<1x1xf32, #tpu.memory_space<vmem>>, %arg8: memref<64x1xf32, #tpu.memory_space<vmem>>, %arg9: memref<1x1xf32, #tpu.memory_space<vmem>>, %arg10: memref<1x2x1xf32, #tpu.memory_space<vmem>>) attributes {dimension_semantics = [#tpu.dimension_semantics<parallel>], iteration_bounds = array<i64: 2>, scalar_prefetch = 0 : i64, scratch_operands = 0 : i64, tpu.core_type = #tpu.core_type<tc>, window_params = [{transform_indices = @transform_0, window_bounds = array<i64: 128, 32>}, {pipeline_mode = #tpu.pipeline_mode<synchronous>, transform_indices = @transform_1, window_bounds = array<i64: 9, 32, 8>}, {pipeline_mode = #tpu.pipeline_mode<synchronous>, transform_indices = @transform_2, window_bounds = array<i64: 1, 8>}, {pipeline_mode = #tpu.pipeline_mode<synchronous>, transform_indices = @transform_3, window_bounds = array<i64: 1, 8>}, {pipeline_mode = #tpu.pipeline_mode<synchronous>, transform_indices = @transform_4, window_bounds = array<i64: 9, 1, 8>}, {pipeline_mode = #tpu.pipeline_mode<synchronous>, transform_indices = @transform_5, window_bounds = array<i64: 1, 1>}, {pipeline_mode = #tpu.pipeline_mode<synchronous>, transform_indices = @transform_6, window_bounds = array<i64: 1, 1>}, {pipeline_mode = #tpu.pipeline_mode<synchronous>, transform_indices = @transform_7, window_bounds = array<i64: 64, 1>}, {pipeline_mode = #tpu.pipeline_mode<synchronous>, transform_indices = @transform_8, window_bounds = array<i64: 1, 1>}, {transform_indices = @transform_9, window_bounds = array<i64: 1, 2, 1>}]} {
    %0 = tpu.iota {dimensions = array<i32: 0>} : vector<128x1xi32>
    %c3_i32 = arith.constant 3 : i32
    %1 = vector.broadcast %c3_i32 : i32 to vector<128x1xi32>
    %2 = arith.shrsi %0, %1 : vector<128x1xi32>
    %c7_i32 = arith.constant 7 : i32
    %3 = vector.broadcast %c7_i32 : i32 to vector<128x1xi32>
    %4 = arith.andi %2, %3 : vector<128x1xi32>
    %c7_i32_0 = arith.constant 7 : i32
    %5 = vector.broadcast %c7_i32_0 : i32 to vector<128x1xi32>
    %6 = arith.andi %0, %5 : vector<128x1xi32>
    %c1_i32 = arith.constant 1 : i32
    %7 = vector.broadcast %c1_i32 : i32 to vector<128x1xi32>
    %8 = arith.cmpi sge, %4, %7 : vector<128x1xi32>
    %c1_i32_1 = arith.constant 1 : i32
    %9 = vector.broadcast %c1_i32_1 : i32 to vector<128x1xi32>
    %10 = arith.cmpi sge, %6, %9 : vector<128x1xi32>
    %11 = arith.andi %8, %10 : vector<128x1xi1>
    %c1_i32_2 = arith.constant 1 : i32
    %12 = vector.broadcast %c1_i32_2 : i32 to vector<128x1xi32>
    %13 = arith.cmpi sge, %4, %12 : vector<128x1xi32>
    %c1_i32_3 = arith.constant 1 : i32
    %14 = vector.broadcast %c1_i32_3 : i32 to vector<128x1xi32>
    %15 = arith.cmpi sge, %4, %14 : vector<128x1xi32>
    %c6_i32 = arith.constant 6 : i32
    %16 = vector.broadcast %c6_i32 : i32 to vector<128x1xi32>
    %17 = arith.cmpi sle, %6, %16 : vector<128x1xi32>
    %18 = arith.andi %15, %17 : vector<128x1xi1>
    %c1_i32_4 = arith.constant 1 : i32
    %19 = vector.broadcast %c1_i32_4 : i32 to vector<128x1xi32>
    %20 = arith.cmpi sge, %6, %19 : vector<128x1xi32>
    %c6_i32_5 = arith.constant 6 : i32
    %21 = vector.broadcast %c6_i32_5 : i32 to vector<128x1xi32>
    %22 = arith.cmpi sle, %6, %21 : vector<128x1xi32>
    %c6_i32_6 = arith.constant 6 : i32
    %23 = vector.broadcast %c6_i32_6 : i32 to vector<128x1xi32>
    %24 = arith.cmpi sle, %4, %23 : vector<128x1xi32>
    %c1_i32_7 = arith.constant 1 : i32
    %25 = vector.broadcast %c1_i32_7 : i32 to vector<128x1xi32>
    %26 = arith.cmpi sge, %6, %25 : vector<128x1xi32>
    %27 = arith.andi %24, %26 : vector<128x1xi1>
    %c6_i32_8 = arith.constant 6 : i32
    %28 = vector.broadcast %c6_i32_8 : i32 to vector<128x1xi32>
    %29 = arith.cmpi sle, %4, %28 : vector<128x1xi32>
    %c6_i32_9 = arith.constant 6 : i32
    %30 = vector.broadcast %c6_i32_9 : i32 to vector<128x1xi32>
    %31 = arith.cmpi sle, %4, %30 : vector<128x1xi32>
    %c6_i32_10 = arith.constant 6 : i32
    %32 = vector.broadcast %c6_i32_10 : i32 to vector<128x1xi32>
    %33 = arith.cmpi sle, %6, %32 : vector<128x1xi32>
    %34 = arith.andi %31, %33 : vector<128x1xi1>
    %c0 = arith.constant 0 : index
    %c0_11 = arith.constant 0 : index
    %35 = vector.load %arg1[%c0, %c0_11] : memref<128x32xf32, #tpu.memory_space<vmem>>, vector<128x32xf32>
    %c9_i32 = arith.constant 9 : i32
    %36 = tpu.dynamic_rotate %35 by %c9_i32 dim 0 : vector<128x32xf32>, i32 -> vector<128x32xf32>
    %37 = arith.truncf %36 : vector<128x32xf32> to vector<128x32xbf16>
    %c0_12 = arith.constant 0 : index
    %c0_13 = arith.constant 0 : index
    %c0_14 = arith.constant 0 : index
    %38 = vector.load %arg2[%c0_12, %c0_13, %c0_14] : memref<9x32x8xbf16, #tpu.memory_space<vmem>>, vector<1x32x8xbf16>
    %39 = vector.shape_cast %38 : vector<1x32x8xbf16> to vector<32x8xbf16>
    %cst = arith.constant dense<0.000000e+00> : vector<128x8xf32>
    %40 = tpu.matmul %37, %39, %cst {dimension_numbers = #tpu.dot_dimension_numbers<[1], [0], [0], [1], [0, 0, 1, 1], [], []>} : vector<128x32xbf16>, vector<32x8xbf16>, vector<128x8xf32> -> vector<128x8xf32>
    %cst_15 = arith.constant 0.000000e+00 : f32
    %41 = vector.shape_cast %11 : vector<128x1xi1> to vector<128x1xi1>
    %42 = vector.broadcast %41 : vector<128x1xi1> to vector<128x8xi1>
    %43 = vector.broadcast %cst_15 : f32 to vector<128x8xf32>
    %44 = arith.select %42, %40, %43 : vector<128x8xi1>, vector<128x8xf32>
    %c8_i32 = arith.constant 8 : i32
    %45 = tpu.dynamic_rotate %35 by %c8_i32 dim 0 : vector<128x32xf32>, i32 -> vector<128x32xf32>
    %46 = arith.truncf %45 : vector<128x32xf32> to vector<128x32xbf16>
    %c1 = arith.constant 1 : index
    %c0_16 = arith.constant 0 : index
    %c0_17 = arith.constant 0 : index
    %47 = vector.load %arg2[%c1, %c0_16, %c0_17] : memref<9x32x8xbf16, #tpu.memory_space<vmem>>, vector<1x32x8xbf16>
    %48 = vector.shape_cast %47 : vector<1x32x8xbf16> to vector<32x8xbf16>
    %cst_18 = arith.constant dense<0.000000e+00> : vector<128x8xf32>
    %49 = tpu.matmul %46, %48, %cst_18 {dimension_numbers = #tpu.dot_dimension_numbers<[1], [0], [0], [1], [0, 0, 1, 1], [], []>} : vector<128x32xbf16>, vector<32x8xbf16>, vector<128x8xf32> -> vector<128x8xf32>
    %cst_19 = arith.constant 0.000000e+00 : f32
    %50 = vector.shape_cast %13 : vector<128x1xi1> to vector<128x1xi1>
    %51 = vector.broadcast %50 : vector<128x1xi1> to vector<128x8xi1>
    %52 = vector.broadcast %cst_19 : f32 to vector<128x8xf32>
    %53 = arith.select %51, %49, %52 : vector<128x8xi1>, vector<128x8xf32>
    %54 = arith.addf %44, %53 : vector<128x8xf32>
    %c7_i32_20 = arith.constant 7 : i32
    %55 = tpu.dynamic_rotate %35 by %c7_i32_20 dim 0 : vector<128x32xf32>, i32 -> vector<128x32xf32>
    %56 = arith.truncf %55 : vector<128x32xf32> to vector<128x32xbf16>
    %c2 = arith.constant 2 : index
    %c0_21 = arith.constant 0 : index
    %c0_22 = arith.constant 0 : index
    %57 = vector.load %arg2[%c2, %c0_21, %c0_22] : memref<9x32x8xbf16, #tpu.memory_space<vmem>>, vector<1x32x8xbf16>
    %58 = vector.shape_cast %57 : vector<1x32x8xbf16> to vector<32x8xbf16>
    %cst_23 = arith.constant dense<0.000000e+00> : vector<128x8xf32>
    %59 = tpu.matmul %56, %58, %cst_23 {dimension_numbers = #tpu.dot_dimension_numbers<[1], [0], [0], [1], [0, 0, 1, 1], [], []>} : vector<128x32xbf16>, vector<32x8xbf16>, vector<128x8xf32> -> vector<128x8xf32>
    %cst_24 = arith.constant 0.000000e+00 : f32
    %60 = vector.shape_cast %18 : vector<128x1xi1> to vector<128x1xi1>
    %61 = vector.broadcast %60 : vector<128x1xi1> to vector<128x8xi1>
    %62 = vector.broadcast %cst_24 : f32 to vector<128x8xf32>
    %63 = arith.select %61, %59, %62 : vector<128x8xi1>, vector<128x8xf32>
    %64 = arith.addf %54, %63 : vector<128x8xf32>
    %c1_i32_25 = arith.constant 1 : i32
    %65 = tpu.dynamic_rotate %35 by %c1_i32_25 dim 0 : vector<128x32xf32>, i32 -> vector<128x32xf32>
    %66 = arith.truncf %65 : vector<128x32xf32> to vector<128x32xbf16>
    %c3 = arith.constant 3 : index
    %c0_26 = arith.constant 0 : index
    %c0_27 = arith.constant 0 : index
    %67 = vector.load %arg2[%c3, %c0_26, %c0_27] : memref<9x32x8xbf16, #tpu.memory_space<vmem>>, vector<1x32x8xbf16>
    %68 = vector.shape_cast %67 : vector<1x32x8xbf16> to vector<32x8xbf16>
    %cst_28 = arith.constant dense<0.000000e+00> : vector<128x8xf32>
    %69 = tpu.matmul %66, %68, %cst_28 {dimension_numbers = #tpu.dot_dimension_numbers<[1], [0], [0], [1], [0, 0, 1, 1], [], []>} : vector<128x32xbf16>, vector<32x8xbf16>, vector<128x8xf32> -> vector<128x8xf32>
    %cst_29 = arith.constant 0.000000e+00 : f32
    %70 = vector.shape_cast %20 : vector<128x1xi1> to vector<128x1xi1>
    %71 = vector.broadcast %70 : vector<128x1xi1> to vector<128x8xi1>
    %72 = vector.broadcast %cst_29 : f32 to vector<128x8xf32>
    %73 = arith.select %71, %69, %72 : vector<128x8xi1>, vector<128x8xf32>
    %74 = arith.addf %64, %73 : vector<128x8xf32>
    %75 = arith.truncf %35 : vector<128x32xf32> to vector<128x32xbf16>
    %c4 = arith.constant 4 : index
    %c0_30 = arith.constant 0 : index
    %c0_31 = arith.constant 0 : index
    %76 = vector.load %arg2[%c4, %c0_30, %c0_31] : memref<9x32x8xbf16, #tpu.memory_space<vmem>>, vector<1x32x8xbf16>
    %77 = vector.shape_cast %76 : vector<1x32x8xbf16> to vector<32x8xbf16>
    %cst_32 = arith.constant dense<0.000000e+00> : vector<128x8xf32>
    %78 = tpu.matmul %75, %77, %cst_32 {dimension_numbers = #tpu.dot_dimension_numbers<[1], [0], [0], [1], [0, 0, 1, 1], [], []>} : vector<128x32xbf16>, vector<32x8xbf16>, vector<128x8xf32> -> vector<128x8xf32>
    %79 = arith.addf %74, %78 : vector<128x8xf32>
    %c127_i32 = arith.constant 127 : i32
    %80 = tpu.dynamic_rotate %35 by %c127_i32 dim 0 : vector<128x32xf32>, i32 -> vector<128x32xf32>
    %81 = arith.truncf %80 : vector<128x32xf32> to vector<128x32xbf16>
    %c5 = arith.constant 5 : index
    %c0_33 = arith.constant 0 : index
    %c0_34 = arith.constant 0 : index
    %82 = vector.load %arg2[%c5, %c0_33, %c0_34] : memref<9x32x8xbf16, #tpu.memory_space<vmem>>, vector<1x32x8xbf16>
    %83 = vector.shape_cast %82 : vector<1x32x8xbf16> to vector<32x8xbf16>
    %cst_35 = arith.constant dense<0.000000e+00> : vector<128x8xf32>
    %84 = tpu.matmul %81, %83, %cst_35 {dimension_numbers = #tpu.dot_dimension_numbers<[1], [0], [0], [1], [0, 0, 1, 1], [], []>} : vector<128x32xbf16>, vector<32x8xbf16>, vector<128x8xf32> -> vector<128x8xf32>
    %cst_36 = arith.constant 0.000000e+00 : f32
    %85 = vector.shape_cast %22 : vector<128x1xi1> to vector<128x1xi1>
    %86 = vector.broadcast %85 : vector<128x1xi1> to vector<128x8xi1>
    %87 = vector.broadcast %cst_36 : f32 to vector<128x8xf32>
    %88 = arith.select %86, %84, %87 : vector<128x8xi1>, vector<128x8xf32>
    %89 = arith.addf %79, %88 : vector<128x8xf32>
    %c121_i32 = arith.constant 121 : i32
    %90 = tpu.dynamic_rotate %35 by %c121_i32 dim 0 : vector<128x32xf32>, i32 -> vector<128x32xf32>
    %91 = arith.truncf %90 : vector<128x32xf32> to vector<128x32xbf16>
    %c6 = arith.constant 6 : index
    %c0_37 = arith.constant 0 : index
    %c0_38 = arith.constant 0 : index
    %92 = vector.load %arg2[%c6, %c0_37, %c0_38] : memref<9x32x8xbf16, #tpu.memory_space<vmem>>, vector<1x32x8xbf16>
    %93 = vector.shape_cast %92 : vector<1x32x8xbf16> to vector<32x8xbf16>
    %cst_39 = arith.constant dense<0.000000e+00> : vector<128x8xf32>
    %94 = tpu.matmul %91, %93, %cst_39 {dimension_numbers = #tpu.dot_dimension_numbers<[1], [0], [0], [1], [0, 0, 1, 1], [], []>} : vector<128x32xbf16>, vector<32x8xbf16>, vector<128x8xf32> -> vector<128x8xf32>
    %cst_40 = arith.constant 0.000000e+00 : f32
    %95 = vector.shape_cast %27 : vector<128x1xi1> to vector<128x1xi1>
    %96 = vector.broadcast %95 : vector<128x1xi1> to vector<128x8xi1>
    %97 = vector.broadcast %cst_40 : f32 to vector<128x8xf32>
    %98 = arith.select %96, %94, %97 : vector<128x8xi1>, vector<128x8xf32>
    %99 = arith.addf %89, %98 : vector<128x8xf32>
    %c120_i32 = arith.constant 120 : i32
    %100 = tpu.dynamic_rotate %35 by %c120_i32 dim 0 : vector<128x32xf32>, i32 -> vector<128x32xf32>
    %101 = arith.truncf %100 : vector<128x32xf32> to vector<128x32xbf16>
    %c7 = arith.constant 7 : index
    %c0_41 = arith.constant 0 : index
    %c0_42 = arith.constant 0 : index
    %102 = vector.load %arg2[%c7, %c0_41, %c0_42] : memref<9x32x8xbf16, #tpu.memory_space<vmem>>, vector<1x32x8xbf16>
    %103 = vector.shape_cast %102 : vector<1x32x8xbf16> to vector<32x8xbf16>
    %cst_43 = arith.constant dense<0.000000e+00> : vector<128x8xf32>
    %104 = tpu.matmul %101, %103, %cst_43 {dimension_numbers = #tpu.dot_dimension_numbers<[1], [0], [0], [1], [0, 0, 1, 1], [], []>} : vector<128x32xbf16>, vector<32x8xbf16>, vector<128x8xf32> -> vector<128x8xf32>
    %cst_44 = arith.constant 0.000000e+00 : f32
    %105 = vector.shape_cast %29 : vector<128x1xi1> to vector<128x1xi1>
    %106 = vector.broadcast %105 : vector<128x1xi1> to vector<128x8xi1>
    %107 = vector.broadcast %cst_44 : f32 to vector<128x8xf32>
    %108 = arith.select %106, %104, %107 : vector<128x8xi1>, vector<128x8xf32>
    %109 = arith.addf %99, %108 : vector<128x8xf32>
    %c119_i32 = arith.constant 119 : i32
    %110 = tpu.dynamic_rotate %35 by %c119_i32 dim 0 : vector<128x32xf32>, i32 -> vector<128x32xf32>
    %111 = arith.truncf %110 : vector<128x32xf32> to vector<128x32xbf16>
    %c8 = arith.constant 8 : index
    %c0_45 = arith.constant 0 : index
    %c0_46 = arith.constant 0 : index
    %112 = vector.load %arg2[%c8, %c0_45, %c0_46] : memref<9x32x8xbf16, #tpu.memory_space<vmem>>, vector<1x32x8xbf16>
    %113 = vector.shape_cast %112 : vector<1x32x8xbf16> to vector<32x8xbf16>
    %cst_47 = arith.constant dense<0.000000e+00> : vector<128x8xf32>
    %114 = tpu.matmul %111, %113, %cst_47 {dimension_numbers = #tpu.dot_dimension_numbers<[1], [0], [0], [1], [0, 0, 1, 1], [], []>} : vector<128x32xbf16>, vector<32x8xbf16>, vector<128x8xf32> -> vector<128x8xf32>
    %cst_48 = arith.constant 0.000000e+00 : f32
    %115 = vector.shape_cast %34 : vector<128x1xi1> to vector<128x1xi1>
    %116 = vector.broadcast %115 : vector<128x1xi1> to vector<128x8xi1>
    %117 = vector.broadcast %cst_48 : f32 to vector<128x8xf32>
    %118 = arith.select %116, %114, %117 : vector<128x8xi1>, vector<128x8xf32>
    %119 = arith.addf %109, %118 : vector<128x8xf32>
    %c0_49 = arith.constant 0 : index
    %c0_50 = arith.constant 0 : index
    %120 = vector.load %arg3[%c0_49, %c0_50] : memref<1x8xf32, #tpu.memory_space<vmem>>, vector<1x8xf32>
    %121 = vector.broadcast %120 : vector<1x8xf32> to vector<128x8xf32>
    %122 = arith.mulf %119, %121 : vector<128x8xf32>
    %c0_51 = arith.constant 0 : index
    %c0_52 = arith.constant 0 : index
    %123 = vector.load %arg4[%c0_51, %c0_52] : memref<1x8xf32, #tpu.memory_space<vmem>>, vector<1x8xf32>
    %124 = vector.broadcast %123 : vector<1x8xf32> to vector<128x8xf32>
    %125 = arith.addf %122, %124 : vector<128x8xf32>
    %cst_53 = arith.constant 0.000000e+00 : f32
    %126 = vector.broadcast %cst_53 : f32 to vector<128x8xf32>
    %127 = arith.maximumf %125, %126 : vector<128x8xf32>
    %c9_i32_54 = arith.constant 9 : i32
    %128 = tpu.dynamic_rotate %127 by %c9_i32_54 dim 0 : vector<128x8xf32>, i32 -> vector<128x8xf32>
    %c0_55 = arith.constant 0 : index
    %c0_56 = arith.constant 0 : index
    %c0_57 = arith.constant 0 : index
    %129 = vector.load %arg5[%c0_55, %c0_56, %c0_57] : memref<9x1x8xf32, #tpu.memory_space<vmem>>, vector<1x1x8xf32>
    %130 = vector.shape_cast %129 : vector<1x1x8xf32> to vector<1x8xf32>
    %131 = vector.broadcast %130 : vector<1x8xf32> to vector<128x8xf32>
    %132 = arith.mulf %128, %131 : vector<128x8xf32>
    %cst_58 = arith.constant 0.000000e+00 : f32
    %133 = vector.shape_cast %11 : vector<128x1xi1> to vector<128x1xi1>
    %134 = vector.broadcast %133 : vector<128x1xi1> to vector<128x8xi1>
    %135 = vector.broadcast %cst_58 : f32 to vector<128x8xf32>
    %136 = arith.select %134, %132, %135 : vector<128x8xi1>, vector<128x8xf32>
    %c8_i32_59 = arith.constant 8 : i32
    %137 = tpu.dynamic_rotate %127 by %c8_i32_59 dim 0 : vector<128x8xf32>, i32 -> vector<128x8xf32>
    %c1_60 = arith.constant 1 : index
    %c0_61 = arith.constant 0 : index
    %c0_62 = arith.constant 0 : index
    %138 = vector.load %arg5[%c1_60, %c0_61, %c0_62] : memref<9x1x8xf32, #tpu.memory_space<vmem>>, vector<1x1x8xf32>
    %139 = vector.shape_cast %138 : vector<1x1x8xf32> to vector<1x8xf32>
    %140 = vector.broadcast %139 : vector<1x8xf32> to vector<128x8xf32>
    %141 = arith.mulf %137, %140 : vector<128x8xf32>
    %cst_63 = arith.constant 0.000000e+00 : f32
    %142 = vector.shape_cast %13 : vector<128x1xi1> to vector<128x1xi1>
    %143 = vector.broadcast %142 : vector<128x1xi1> to vector<128x8xi1>
    %144 = vector.broadcast %cst_63 : f32 to vector<128x8xf32>
    %145 = arith.select %143, %141, %144 : vector<128x8xi1>, vector<128x8xf32>
    %146 = arith.addf %136, %145 : vector<128x8xf32>
    %c7_i32_64 = arith.constant 7 : i32
    %147 = tpu.dynamic_rotate %127 by %c7_i32_64 dim 0 : vector<128x8xf32>, i32 -> vector<128x8xf32>
    %c2_65 = arith.constant 2 : index
    %c0_66 = arith.constant 0 : index
    %c0_67 = arith.constant 0 : index
    %148 = vector.load %arg5[%c2_65, %c0_66, %c0_67] : memref<9x1x8xf32, #tpu.memory_space<vmem>>, vector<1x1x8xf32>
    %149 = vector.shape_cast %148 : vector<1x1x8xf32> to vector<1x8xf32>
    %150 = vector.broadcast %149 : vector<1x8xf32> to vector<128x8xf32>
    %151 = arith.mulf %147, %150 : vector<128x8xf32>
    %cst_68 = arith.constant 0.000000e+00 : f32
    %152 = vector.shape_cast %18 : vector<128x1xi1> to vector<128x1xi1>
    %153 = vector.broadcast %152 : vector<128x1xi1> to vector<128x8xi1>
    %154 = vector.broadcast %cst_68 : f32 to vector<128x8xf32>
    %155 = arith.select %153, %151, %154 : vector<128x8xi1>, vector<128x8xf32>
    %156 = arith.addf %146, %155 : vector<128x8xf32>
    %c1_i32_69 = arith.constant 1 : i32
    %157 = tpu.dynamic_rotate %127 by %c1_i32_69 dim 0 : vector<128x8xf32>, i32 -> vector<128x8xf32>
    %c3_70 = arith.constant 3 : index
    %c0_71 = arith.constant 0 : index
    %c0_72 = arith.constant 0 : index
    %158 = vector.load %arg5[%c3_70, %c0_71, %c0_72] : memref<9x1x8xf32, #tpu.memory_space<vmem>>, vector<1x1x8xf32>
    %159 = vector.shape_cast %158 : vector<1x1x8xf32> to vector<1x8xf32>
    %160 = vector.broadcast %159 : vector<1x8xf32> to vector<128x8xf32>
    %161 = arith.mulf %157, %160 : vector<128x8xf32>
    %cst_73 = arith.constant 0.000000e+00 : f32
    %162 = vector.shape_cast %20 : vector<128x1xi1> to vector<128x1xi1>
    %163 = vector.broadcast %162 : vector<128x1xi1> to vector<128x8xi1>
    %164 = vector.broadcast %cst_73 : f32 to vector<128x8xf32>
    %165 = arith.select %163, %161, %164 : vector<128x8xi1>, vector<128x8xf32>
    %166 = arith.addf %156, %165 : vector<128x8xf32>
    %c4_74 = arith.constant 4 : index
    %c0_75 = arith.constant 0 : index
    %c0_76 = arith.constant 0 : index
    %167 = vector.load %arg5[%c4_74, %c0_75, %c0_76] : memref<9x1x8xf32, #tpu.memory_space<vmem>>, vector<1x1x8xf32>
    %168 = vector.shape_cast %167 : vector<1x1x8xf32> to vector<1x8xf32>
    %169 = vector.broadcast %168 : vector<1x8xf32> to vector<128x8xf32>
    %170 = arith.mulf %127, %169 : vector<128x8xf32>
    %171 = arith.addf %166, %170 : vector<128x8xf32>
    %c127_i32_77 = arith.constant 127 : i32
    %172 = tpu.dynamic_rotate %127 by %c127_i32_77 dim 0 : vector<128x8xf32>, i32 -> vector<128x8xf32>
    %c5_78 = arith.constant 5 : index
    %c0_79 = arith.constant 0 : index
    %c0_80 = arith.constant 0 : index
    %173 = vector.load %arg5[%c5_78, %c0_79, %c0_80] : memref<9x1x8xf32, #tpu.memory_space<vmem>>, vector<1x1x8xf32>
    %174 = vector.shape_cast %173 : vector<1x1x8xf32> to vector<1x8xf32>
    %175 = vector.broadcast %174 : vector<1x8xf32> to vector<128x8xf32>
    %176 = arith.mulf %172, %175 : vector<128x8xf32>
    %cst_81 = arith.constant 0.000000e+00 : f32
    %177 = vector.shape_cast %22 : vector<128x1xi1> to vector<128x1xi1>
    %178 = vector.broadcast %177 : vector<128x1xi1> to vector<128x8xi1>
    %179 = vector.broadcast %cst_81 : f32 to vector<128x8xf32>
    %180 = arith.select %178, %176, %179 : vector<128x8xi1>, vector<128x8xf32>
    %181 = arith.addf %171, %180 : vector<128x8xf32>
    %c121_i32_82 = arith.constant 121 : i32
    %182 = tpu.dynamic_rotate %127 by %c121_i32_82 dim 0 : vector<128x8xf32>, i32 -> vector<128x8xf32>
    %c6_83 = arith.constant 6 : index
    %c0_84 = arith.constant 0 : index
    %c0_85 = arith.constant 0 : index
    %183 = vector.load %arg5[%c6_83, %c0_84, %c0_85] : memref<9x1x8xf32, #tpu.memory_space<vmem>>, vector<1x1x8xf32>
    %184 = vector.shape_cast %183 : vector<1x1x8xf32> to vector<1x8xf32>
    %185 = vector.broadcast %184 : vector<1x8xf32> to vector<128x8xf32>
    %186 = arith.mulf %182, %185 : vector<128x8xf32>
    %cst_86 = arith.constant 0.000000e+00 : f32
    %187 = vector.shape_cast %27 : vector<128x1xi1> to vector<128x1xi1>
    %188 = vector.broadcast %187 : vector<128x1xi1> to vector<128x8xi1>
    %189 = vector.broadcast %cst_86 : f32 to vector<128x8xf32>
    %190 = arith.select %188, %186, %189 : vector<128x8xi1>, vector<128x8xf32>
    %191 = arith.addf %181, %190 : vector<128x8xf32>
    %c120_i32_87 = arith.constant 120 : i32
    %192 = tpu.dynamic_rotate %127 by %c120_i32_87 dim 0 : vector<128x8xf32>, i32 -> vector<128x8xf32>
    %c7_88 = arith.constant 7 : index
    %c0_89 = arith.constant 0 : index
    %c0_90 = arith.constant 0 : index
    %193 = vector.load %arg5[%c7_88, %c0_89, %c0_90] : memref<9x1x8xf32, #tpu.memory_space<vmem>>, vector<1x1x8xf32>
    %194 = vector.shape_cast %193 : vector<1x1x8xf32> to vector<1x8xf32>
    %195 = vector.broadcast %194 : vector<1x8xf32> to vector<128x8xf32>
    %196 = arith.mulf %192, %195 : vector<128x8xf32>
    %cst_91 = arith.constant 0.000000e+00 : f32
    %197 = vector.shape_cast %29 : vector<128x1xi1> to vector<128x1xi1>
    %198 = vector.broadcast %197 : vector<128x1xi1> to vector<128x8xi1>
    %199 = vector.broadcast %cst_91 : f32 to vector<128x8xf32>
    %200 = arith.select %198, %196, %199 : vector<128x8xi1>, vector<128x8xf32>
    %201 = arith.addf %191, %200 : vector<128x8xf32>
    %c119_i32_92 = arith.constant 119 : i32
    %202 = tpu.dynamic_rotate %127 by %c119_i32_92 dim 0 : vector<128x8xf32>, i32 -> vector<128x8xf32>
    %c8_93 = arith.constant 8 : index
    %c0_94 = arith.constant 0 : index
    %c0_95 = arith.constant 0 : index
    %203 = vector.load %arg5[%c8_93, %c0_94, %c0_95] : memref<9x1x8xf32, #tpu.memory_space<vmem>>, vector<1x1x8xf32>
    %204 = vector.shape_cast %203 : vector<1x1x8xf32> to vector<1x8xf32>
    %205 = vector.broadcast %204 : vector<1x8xf32> to vector<128x8xf32>
    %206 = arith.mulf %202, %205 : vector<128x8xf32>
    %cst_96 = arith.constant 0.000000e+00 : f32
    %207 = vector.shape_cast %34 : vector<128x1xi1> to vector<128x1xi1>
    %208 = vector.broadcast %207 : vector<128x1xi1> to vector<128x8xi1>
    %209 = vector.broadcast %cst_96 : f32 to vector<128x8xf32>
    %210 = arith.select %208, %206, %209 : vector<128x8xi1>, vector<128x8xf32>
    %211 = arith.addf %201, %210 : vector<128x8xf32>
    %cst_97 = arith.constant dense<0.000000e+00> : vector<128xf32>
    %212 = vector.multi_reduction <add>, %211, %cst_97 [1] : vector<128x8xf32> to vector<128xf32>
    %213 = vector.shape_cast %212 : vector<128xf32> to vector<128x1xf32>
    %c0_98 = arith.constant 0 : index
    %c0_99 = arith.constant 0 : index
    %214 = vector.load %arg6[%c0_98, %c0_99] : memref<1x1xf32, #tpu.memory_space<vmem>>, vector<1x1xf32>
    %215 = vector.broadcast %214 : vector<1x1xf32> to vector<128x1xf32>
    %216 = arith.mulf %213, %215 : vector<128x1xf32>
    %c0_100 = arith.constant 0 : index
    %c0_101 = arith.constant 0 : index
    %217 = vector.load %arg7[%c0_100, %c0_101] : memref<1x1xf32, #tpu.memory_space<vmem>>, vector<1x1xf32>
    %218 = vector.broadcast %217 : vector<1x1xf32> to vector<128x1xf32>
    %219 = arith.addf %216, %218 : vector<128x1xf32>
    %cst_102 = arith.constant 0.000000e+00 : f32
    %220 = vector.broadcast %cst_102 : f32 to vector<128x1xf32>
    %221 = arith.maximumf %219, %220 : vector<128x1xf32>
    %222 = vector.shape_cast %221 : vector<128x1xf32> to vector<2x64x1xf32>
    %c0_103 = arith.constant 0 : index
    %c0_104 = arith.constant 0 : index
    %223 = vector.load %arg8[%c0_103, %c0_104] : memref<64x1xf32, #tpu.memory_space<vmem>>, vector<64x1xf32>
    %224 = vector.shape_cast %223 : vector<64x1xf32> to vector<1x64x1xf32>
    %225 = vector.broadcast %224 : vector<1x64x1xf32> to vector<2x64x1xf32>
    %226 = arith.mulf %222, %225 : vector<2x64x1xf32>
    %cst_105 = arith.constant dense<0.000000e+00> : vector<2x1xf32>
    %227 = vector.multi_reduction <add>, %226, %cst_105 [1] : vector<2x64x1xf32> to vector<2x1xf32>
    %c0_106 = arith.constant 0 : index
    %c0_107 = arith.constant 0 : index
    %228 = vector.load %arg9[%c0_106, %c0_107] : memref<1x1xf32, #tpu.memory_space<vmem>>, vector<1x1xf32>
    %229 = vector.broadcast %228 : vector<1x1xf32> to vector<2x1xf32>
    %230 = arith.addf %227, %229 : vector<2x1xf32>
    %231 = math.tanh %230 : vector<2x1xf32>
    %232 = vector.shape_cast %231 : vector<2x1xf32> to vector<1x2x1xf32>
    %c0_108 = arith.constant 0 : index
    %c0_109 = arith.constant 0 : index
    %c0_110 = arith.constant 0 : index
    %233 = vector.load %arg10[%c0_108, %c0_109, %c0_110] : memref<1x2x1xf32, #tpu.memory_space<vmem>>, vector<1x2x1xf32>
    tpu.vector_store %arg10[%c0_108, %c0_109, %c0_110], %232 {strides = array<i32>} : memref<1x2x1xf32, #tpu.memory_space<vmem>>, vector<1x2x1xf32>,
    return
  }
  func.func @transform_0(%arg0: i32) -> (i32, i32) {
    %c0_i32 = arith.constant 0 : i32
    %c0_i32_0 = arith.constant 0 : i32
    return %arg0, %c0_i32 : i32, i32
  }
  func.func @transform_1(%arg0: i32) -> (i32, i32, i32) {
    %c0_i32 = arith.constant 0 : i32
    %c0_i32_0 = arith.constant 0 : i32
    %c0_i32_1 = arith.constant 0 : i32
    %c0_i32_2 = arith.constant 0 : i32
    return %c0_i32, %c0_i32_0, %c0_i32_1 : i32, i32, i32
  }
  func.func @transform_2(%arg0: i32) -> (i32, i32) {
    %c0_i32 = arith.constant 0 : i32
    %c0_i32_0 = arith.constant 0 : i32
    %c0_i32_1 = arith.constant 0 : i32
    return %c0_i32, %c0_i32_0 : i32, i32
  }
  func.func @transform_3(%arg0: i32) -> (i32, i32) {
    %c0_i32 = arith.constant 0 : i32
    %c0_i32_0 = arith.constant 0 : i32
    %c0_i32_1 = arith.constant 0 : i32
    return %c0_i32, %c0_i32_0 : i32, i32
  }
  func.func @transform_4(%arg0: i32) -> (i32, i32, i32) {
    %c0_i32 = arith.constant 0 : i32
    %c0_i32_0 = arith.constant 0 : i32
    %c0_i32_1 = arith.constant 0 : i32
    %c0_i32_2 = arith.constant 0 : i32
    return %c0_i32, %c0_i32_0, %c0_i32_1 : i32, i32, i32
  }
  func.func @transform_5(%arg0: i32) -> (i32, i32) {
    %c0_i32 = arith.constant 0 : i32
    %c0_i32_0 = arith.constant 0 : i32
    %c0_i32_1 = arith.constant 0 : i32
    return %c0_i32, %c0_i32_0 : i32, i32
  }
  func.func @transform_6(%arg0: i32) -> (i32, i32) {
    %c0_i32 = arith.constant 0 : i32
    %c0_i32_0 = arith.constant 0 : i32
    %c0_i32_1 = arith.constant 0 : i32
    return %c0_i32, %c0_i32_0 : i32, i32
  }
  func.func @transform_7(%arg0: i32) -> (i32, i32) {
    %c0_i32 = arith.constant 0 : i32
    %c0_i32_0 = arith.constant 0 : i32
    %c0_i32_1 = arith.constant 0 : i32
    return %c0_i32, %c0_i32_0 : i32, i32
  }
  func.func @transform_8(%arg0: i32) -> (i32, i32) {
    %c0_i32 = arith.constant 0 : i32
    %c0_i32_0 = arith.constant 0 : i32
    %c0_i32_1 = arith.constant 0 : i32
    return %c0_i32, %c0_i32_0 : i32, i32
  }
  func.func @transform_9(%arg0: i32) -> (i32, i32, i32) {
    %c0_i32 = arith.constant 0 : i32
    %c0_i32_0 = arith.constant 0 : i32
    %c0_i32_1 = arith.constant 0 : i32
    return %arg0, %c0_i32, %c0_i32_0 : i32, i32, i32
  }
}

</mosaic_0001>

<llo_original>
// kernel: tpu_custom_call.1
$region0: #{tpu_custom_call.1}
  #allocation0 [shape = 'u32[]', space=smem, size = 0x4, offset = 0x4, fixed_abs, tag = 'smem constant byte address 0x4 - core index']
  #allocation1 [shape = 'u32[144,128]{1,0:T(1,128)}', space=vmem, size = 0x12000, scoped, tag = 'internal scratch']
  #allocation2 [shape = 'f32[1,1]{1,0:T(1,128)S(1)}', space=vmem, size = 0x200, scoped, tag = 'scoped memory for tpu_custom_call.1']
  #allocation3 [shape = 'f32[1,1]{1,0:T(1,128)S(1)}', space=vmem, size = 0x200, scoped, tag = 'scoped memory for tpu_custom_call.1']
  #allocation4 [shape = 'f32[1,1]{1,0:T(1,128)S(1)}', space=vmem, size = 0x200, scoped, tag = 'scoped memory for tpu_custom_call.1']
  %s0 = inlined_call_operand.vmem [shape: f32[256,32], index: 0, kind: input, shape index: {}]
  %s1 = inlined_call_operand.vmem [shape: bf16[9,32,8], index: 1, kind: input, shape index: {}]
  %s2 = inlined_call_operand.vmem [shape: f32[1,8], index: 2, kind: input, shape index: {}]
  %s3 = inlined_call_operand.vmem [shape: f32[1,8], index: 3, kind: input, shape index: {}]
  %s4 = inlined_call_operand.vmem [shape: f32[9,1,8], index: 4, kind: input, shape index: {}]
  %s5 = inlined_call_operand.<no memory space> [shape: f32[1,1], index: 5, kind: input, shape index: {}]
  %s6 = inlined_call_operand.<no memory space> [shape: f32[1,1], index: 6, kind: input, shape index: {}]
  %s7 = inlined_call_operand.vmem [shape: f32[64,1], index: 7, kind: input, shape index: {}]
  %s8 = inlined_call_operand.<no memory space> [shape: f32[1,1], index: 8, kind: input, shape index: {}]
  %s9 = inlined_call_operand.vmem [shape: f32[2,2,1], index: 9, kind: output, shape index: {}]
  %s10 = sld [smem:[#allocation0]]
  $region69: #{tpu_custom_call.1} parent=0
    _
  %s12 = ssub.s32 1, %s10
  %s13 = scalar_select 0, %s12, %s10
  %v14 = vstv %s5
  %15 = vst [vmem:[#allocation2] sm:$0x1] %v14
  %v16 = vstv %s6
  %17 = vst [vmem:[#allocation3] sm:$0x1] %v16
  %v18 = vstv %s8
  %19 = vst [vmem:[#allocation4] sm:$0x1] %v18
  loop: start=0, step=1, limit=4
  $region2: #{tpu_custom_call.1} parent=0 // loop_pre_header
    _
  $region3: #{tpu_custom_call.1} parent=0 // loop_header
    %s21 = sphi 0, %s25
    %p22 = scmp.ge.s32.totalorder %s21, 4
    %s31 = sphi 0, %s33
    %s34 = sphi 0, %s31
    %s35 = sphi 0, %s34
    %s51 = sphi 0, %s35
    %s55 = sphi 0, %s55
    %s57 = sphi 0, %s55
    %s58 = sphi 0, %s57
    %s72 = sphi 0, %s58
    %s76 = sphi 0, %s76
    %s78 = sphi 0, %s76
    %s79 = sphi 0, %s78
    %s93 = sphi 0, %s79
    %s97 = sphi 0, %s97
    %s99 = sphi 0, %s97
    %s100 = sphi 0, %s99
    %s114 = sphi 0, %s100
    %s118 = sphi 0, %s118
    %s120 = sphi 0, %s118
    %s121 = sphi 0, %s120
    %s135 = sphi 0, %s121
    %s139 = sphi 0, %s139
    %s141 = sphi 0, %s139
    %s142 = sphi 0, %s141
    %s156 = sphi 0, %s142
    %s160 = sphi 0, %s160
    %s162 = sphi 0, %s160
    %s163 = sphi 0, %s162
    %s177 = sphi 0, %s163
    %s181 = sphi 0, %s181
    %s183 = sphi 0, %s181
    %s184 = sphi 0, %s183
    %s198 = sphi 0, %s184
    %s202 = sphi 0, %s202
    %s204 = sphi 0, %s202
    %s205 = sphi 0, %s204
    %s219 = sphi 0, %s205
    %s225 = sphi 0, %s227
    %s228 = sphi 0, %s225
    %s229 = sphi 0, %s228
    %s245 = sphi 0, %s229
  $region4: #{tpu_custom_call.1} parent=0 // loop_header_branch
    %24 = sbr.rel (%p22) target = $region8
  $region5: #{tpu_custom_call.1} parent=0 // loop_body
    %s26 = ssub.s32 %s21, 1
    %s27 = ssub.s32 %s21, 2
    %s28 = sadd.s32 %s21, 1
    %s29 = ssub.s32 %s21, %s28
    %p30 = scmp.eq.s32.totalorder %s29, 0
    %s32 = sadd.s32 %s31, 1
    %s33 = scalar_select %p30, %s31, %s32
    %p36 = pneg %p30
    %p37 = scmp.eq.s32.totalorder %s21, 1
    %p38 = por %p36, %p37
    %p39 = scmp.ne.s32.totalorder %s31, %s34
    %p40 = scmp.eq.s32.totalorder %s21, 0
    %p41 = por %p39, %p40
    %p42 = scmp.ne.s32.totalorder %s31, %s34
    %p43 = scmp.eq.s32.totalorder %s26, 1
    %p44 = por %p42, %p43
    %p45 = scmp.ne.s32.totalorder %s34, %s35
    %p46 = scmp.eq.s32.totalorder %s26, 0
    %p47 = por %p45, %p46
    %p48 = scmp.ne.s32.totalorder %s34, %s35
    %p49 = scmp.eq.s32.totalorder %s27, 1
    %p50 = por %p48, %p49
    %p52 = scmp.ne.s32.totalorder %s35, %s51
    %p53 = scmp.eq.s32.totalorder %s27, 0
    %p54 = por %p52, %p53
    %s56 = sadd.s32 %s55, 1
    %p59 = scmp.eq.s32.totalorder %s21, 1
    %p60 = scmp.ne.s32.totalorder %s55, %s57
    %p61 = scmp.eq.s32.totalorder %s21, 0
    %p62 = por %p60, %p61
    %p63 = scmp.ne.s32.totalorder %s55, %s57
    %p64 = scmp.eq.s32.totalorder %s26, 1
    %p65 = por %p63, %p64
    %p66 = scmp.ne.s32.totalorder %s57, %s58
    %p67 = scmp.eq.s32.totalorder %s26, 0
    %p68 = por %p66, %p67
    %p69 = scmp.ne.s32.totalorder %s57, %s58
    %p70 = scmp.eq.s32.totalorder %s27, 1
    %p71 = por %p69, %p70
    %p73 = scmp.ne.s32.totalorder %s58, %s72
    %p74 = scmp.eq.s32.totalorder %s27, 0
    %p75 = por %p73, %p74
    %s77 = sadd.s32 %s76, 1
    %p80 = scmp.eq.s32.totalorder %s21, 1
    %p81 = scmp.ne.s32.totalorder %s76, %s78
    %p82 = scmp.eq.s32.totalorder %s21, 0
    %p83 = por %p81, %p82
    %p84 = scmp.ne.s32.totalorder %s76, %s78
    %p85 = scmp.eq.s32.totalorder %s26, 1
    %p86 = por %p84, %p85
    %p87 = scmp.ne.s32.totalorder %s78, %s79
    %p88 = scmp.eq.s32.totalorder %s26, 0
    %p89 = por %p87, %p88
    %p90 = scmp.ne.s32.totalorder %s78, %s79
    %p91 = scmp.eq.s32.totalorder %s27, 1
    %p92 = por %p90, %p91
    %p94 = scmp.ne.s32.totalorder %s79, %s93
    %p95 = scmp.eq.s32.totalorder %s27, 0
    %p96 = por %p94, %p95
    %s98 = sadd.s32 %s97, 1
    %p101 = scmp.eq.s32.totalorder %s21, 1
    %p102 = scmp.ne.s32.totalorder %s97, %s99
    %p103 = scmp.eq.s32.totalorder %s21, 0
    %p104 = por %p102, %p103
    %p105 = scmp.ne.s32.totalorder %s97, %s99
    %p106 = scmp.eq.s32.totalorder %s26, 1
    %p107 = por %p105, %p106
    %p108 = scmp.ne.s32.totalorder %s99, %s100
    %p109 = scmp.eq.s32.totalorder %s26, 0
    %p110 = por %p108, %p109
    %p111 = scmp.ne.s32.totalorder %s99, %s100
    %p112 = scmp.eq.s32.totalorder %s27, 1
    %p113 = por %p111, %p112
    %p115 = scmp.ne.s32.totalorder %s100, %s114
    %p116 = scmp.eq.s32.totalorder %s27, 0
    %p117 = por %p115, %p116
    %s119 = sadd.s32 %s118, 1
    %p122 = scmp.eq.s32.totalorder %s21, 1
    %p123 = scmp.ne.s32.totalorder %s118, %s120
    %p124 = scmp.eq.s32.totalorder %s21, 0
    %p125 = por %p123, %p124
    %p126 = scmp.ne.s32.totalorder %s118, %s120
    %p127 = scmp.eq.s32.totalorder %s26, 1
    %p128 = por %p126, %p127
    %p129 = scmp.ne.s32.totalorder %s120, %s121
    %p130 = scmp.eq.s32.totalorder %s26, 0
    %p131 = por %p129, %p130
    %p132 = scmp.ne.s32.totalorder %s120, %s121
    %p133 = scmp.eq.s32.totalorder %s27, 1
    %p134 = por %p132, %p133
    %p136 = scmp.ne.s32.totalorder %s121, %s135
    %p137 = scmp.eq.s32.totalorder %s27, 0
    %p138 = por %p136, %p137
    %s140 = sadd.s32 %s139, 1
    %p143 = scmp.eq.s32.totalorder %s21, 1
    %p144 = scmp.ne.s32.totalorder %s139, %s141
    %p145 = scmp.eq.s32.totalorder %s21, 0
    %p146 = por %p144, %p145
    %p147 = scmp.ne.s32.totalorder %s139, %s141
    %p148 = scmp.eq.s32.totalorder %s26, 1
    %p149 = por %p147, %p148
    %p150 = scmp.ne.s32.totalorder %s141, %s142
    %p151 = scmp.eq.s32.totalorder %s26, 0
    %p152 = por %p150, %p151
    %p153 = scmp.ne.s32.totalorder %s141, %s142
    %p154 = scmp.eq.s32.totalorder %s27, 1
    %p155 = por %p153, %p154
    %p157 = scmp.ne.s32.totalorder %s142, %s156
    %p158 = scmp.eq.s32.totalorder %s27, 0
    %p159 = por %p157, %p158
    %s161 = sadd.s32 %s160, 1
    %p164 = scmp.eq.s32.totalorder %s21, 1
    %p165 = scmp.ne.s32.totalorder %s160, %s162
    %p166 = scmp.eq.s32.totalorder %s21, 0
    %p167 = por %p165, %p166
    %p168 = scmp.ne.s32.totalorder %s160, %s162
    %p169 = scmp.eq.s32.totalorder %s26, 1
    %p170 = por %p168, %p169
    %p171 = scmp.ne.s32.totalorder %s162, %s163
    %p172 = scmp.eq.s32.totalorder %s26, 0
    %p173 = por %p171, %p172
    %p174 = scmp.ne.s32.totalorder %s162, %s163
    %p175 = scmp.eq.s32.totalorder %s27, 1
    %p176 = por %p174, %p175
    %p178 = scmp.ne.s32.totalorder %s163, %s177
    %p179 = scmp.eq.s32.totalorder %s27, 0
    %p180 = por %p178, %p179
    %s182 = sadd.s32 %s181, 1
    %p185 = scmp.eq.s32.totalorder %s21, 1
    %p186 = scmp.ne.s32.totalorder %s181, %s183
    %p187 = scmp.eq.s32.totalorder %s21, 0
    %p188 = por %p186, %p187
    %p189 = scmp.ne.s32.totalorder %s181, %s183
    %p190 = scmp.eq.s32.totalorder %s26, 1
    %p191 = por %p189, %p190
    %p192 = scmp.ne.s32.totalorder %s183, %s184
    %p193 = scmp.eq.s32.totalorder %s26, 0
    %p194 = por %p192, %p193
    %p195 = scmp.ne.s32.totalorder %s183, %s184
    %p196 = scmp.eq.s32.totalorder %s27, 1
    %p197 = por %p195, %p196
    %p199 = scmp.ne.s32.totalorder %s184, %s198
    %p200 = scmp.eq.s32.totalorder %s27, 0
    %p201 = por %p199, %p200
    %s203 = sadd.s32 %s202, 1
    %p206 = scmp.eq.s32.totalorder %s21, 1
    %p207 = scmp.ne.s32.totalorder %s202, %s204
    %p208 = scmp.eq.s32.totalorder %s21, 0
    %p209 = por %p207, %p208
    %p210 = scmp.ne.s32.totalorder %s202, %s204
    %p211 = scmp.eq.s32.totalorder %s26, 1
    %p212 = por %p210, %p211
    %p213 = scmp.ne.s32.totalorder %s204, %s205
    %p214 = scmp.eq.s32.totalorder %s26, 0
    %p215 = por %p213, %p214
    %p216 = scmp.ne.s32.totalorder %s204, %s205
    %p217 = scmp.eq.s32.totalorder %s27, 1
    %p218 = por %p216, %p217
    %p220 = scmp.ne.s32.totalorder %s205, %s219
    %p221 = scmp.eq.s32.totalorder %s27, 0
    %p222 = por %p220, %p221
    %s223 = ssub.s32 %s21, %s28
    %p224 = scmp.eq.s32.totalorder %s223, 0
    %s226 = sadd.s32 %s225, 1
    %s227 = scalar_select %p224, %s225, %s226
    %p230 = pneg %p224
    %p231 = scmp.eq.s32.totalorder %s21, 1
    %p232 = por %p230, %p231
    %p233 = scmp.ne.s32.totalorder %s225, %s228
    %p234 = scmp.eq.s32.totalorder %s21, 0
    %p235 = por %p233, %p234
    %p236 = scmp.ne.s32.totalorder %s225, %s228
    %p237 = scmp.eq.s32.totalorder %s26, 1
    %p238 = por %p236, %p237
    %p239 = scmp.ne.s32.totalorder %s228, %s229
    %p240 = scmp.eq.s32.totalorder %s26, 0
    %p241 = por %p239, %p240
    %p242 = scmp.ne.s32.totalorder %s228, %s229
    %p243 = scmp.eq.s32.totalorder %s27, 1
    %p244 = por %p242, %p243
    %p246 = scmp.ne.s32.totalorder %s229, %s245
    %p247 = scmp.eq.s32.totalorder %s27, 0
    %p248 = por %p246, %p247
    %p249 = scmp.le.s32.totalorder 1, %s21
    %p250 = scmp.lt.s32.totalorder %s21, 3
    %p251 = pnand %p249, %p250
    %p252 = pneg %p251
    // Predicated region
    $region9: #{tpu_custom_call.1} parent=5 // pred_check
      _
    $region10: #{tpu_custom_call.1} parent=5 // pred_check_branch
      %254 = sbr.rel (%p251) target = $region12
    $region11: #{tpu_custom_call.1} parent=5 // pred_region
      %s255 = ssub.s32 %s21, 1
      // Predicated region
      $region13: #{tpu_custom_call.1} parent=11 // pred_check
        %p256 = pneg %p68
      $region14: #{tpu_custom_call.1} parent=11 // pred_check_branch
        %258 = sbr.rel (%p256) target = $region16
      $region15: #{tpu_custom_call.1} parent=11 // pred_region
        _
      $region16: #{tpu_custom_call.1} parent=11 // pred_fallthru
        _
      // Predicated region
      $region17: #{tpu_custom_call.1} parent=11 // pred_check
        %p259 = pneg %p89
      $region18: #{tpu_custom_call.1} parent=11 // pred_check_branch
        %261 = sbr.rel (%p259) target = $region20
      $region19: #{tpu_custom_call.1} parent=11 // pred_region
        _
      $region20: #{tpu_custom_call.1} parent=11 // pred_fallthru
        _
      // Predicated region
      $region21: #{tpu_custom_call.1} parent=11 // pred_check
        %p262 = pneg %p110
      $region22: #{tpu_custom_call.1} parent=11 // pred_check_branch
        %264 = sbr.rel (%p262) target = $region24
      $region23: #{tpu_custom_call.1} parent=11 // pred_region
        _
      $region24: #{tpu_custom_call.1} parent=11 // pred_fallthru
        _
      // Predicated region
      $region25: #{tpu_custom_call.1} parent=11 // pred_check
        %p265 = pneg %p131
      $region26: #{tpu_custom_call.1} parent=11 // pred_check_branch
        %267 = sbr.rel (%p265) target = $region28
      $region27: #{tpu_custom_call.1} parent=11 // pred_region
        _
      $region28: #{tpu_custom_call.1} parent=11 // pred_fallthru
        _
      // Predicated region
      $region29: #{tpu_custom_call.1} parent=11 // pred_check
        %p268 = pneg %p152
      $region30: #{tpu_custom_call.1} parent=11 // pred_check_branch
        %270 = sbr.rel (%p268) target = $region32
      $region31: #{tpu_custom_call.1} parent=11 // pred_region
        _
      $region32: #{tpu_custom_call.1} parent=11 // pred_fallthru
        _
      // Predicated region
      $region33: #{tpu_custom_call.1} parent=11 // pred_check
        %p271 = pneg %p173
      $region34: #{tpu_custom_call.1} parent=11 // pred_check_branch
        %273 = sbr.rel (%p271) target = $region36
      $region35: #{tpu_custom_call.1} parent=11 // pred_region
        _
      $region36: #{tpu_custom_call.1} parent=11 // pred_fallthru
        _
      // Predicated region
      $region37: #{tpu_custom_call.1} parent=11 // pred_check
        %p274 = pneg %p194
      $region38: #{tpu_custom_call.1} parent=11 // pred_check_branch
        %276 = sbr.rel (%p274) target = $region40
      $region39: #{tpu_custom_call.1} parent=11 // pred_region
        _
      $region40: #{tpu_custom_call.1} parent=11 // pred_fallthru
        _
      // Predicated region
      $region41: #{tpu_custom_call.1} parent=11 // pred_check
        %p277 = pneg %p215
      $region42: #{tpu_custom_call.1} parent=11 // pred_check_branch
        %279 = sbr.rel (%p277) target = $region44
      $region43: #{tpu_custom_call.1} parent=11 // pred_region
        _
      $region44: #{tpu_custom_call.1} parent=11 // pred_fallthru
        _
    $region12: #{tpu_custom_call.1} parent=5 // pred_fallthru
      _
    %p280 = scmp.lt.s32.totalorder %s21, 2
    // Predicated region
    $region45: #{tpu_custom_call.1} parent=5 // pred_check
      %p281 = pneg %p280
    $region46: #{tpu_custom_call.1} parent=5 // pred_check_branch
      %283 = sbr.rel (%p281) target = $region48
    $region47: #{tpu_custom_call.1} parent=5 // pred_region
      // Predicated region
      $region49: #{tpu_custom_call.1} parent=47 // pred_check
        %p284 = pneg %p41
      $region50: #{tpu_custom_call.1} parent=47 // pred_check_branch
        %286 = sbr.rel (%p284) target = $region52
      $region51: #{tpu_custom_call.1} parent=47 // pred_region
        %s287 = smul.u32 16, %s21
        %p288 = scmp.lt.s32.totalorder %s287, 31
        %s289 = scalar_select %p288, %s287, 31
        %s290 = smul.addr %s289, 8
        %s291 = scalar_lea.vmem %s0, %s290
        %s292 = smul.u32 16, %s21
      $region52: #{tpu_custom_call.1} parent=47 // pred_fallthru
        _
    $region48: #{tpu_custom_call.1} parent=5 // pred_fallthru
      _
    %p293 = scmp.le.s32.totalorder 1, %s21
    %p294 = scmp.lt.s32.totalorder %s21, 3
    %p295 = pnand %p293, %p294
    %p296 = pneg %p295
    // Predicated region
    $region53: #{tpu_custom_call.1} parent=5 // pred_check
      _
    $region54: #{tpu_custom_call.1} parent=5 // pred_check_branch
      %298 = sbr.rel (%p295) target = $region56
    $region55: #{tpu_custom_call.1} parent=5 // pred_region
      %s299 = ssub.s32 %s21, 1
      %s300 = smul.u32 16, %s26
      %p301 = scmp.lt.s32.totalorder %s300, 31
      %s302 = scalar_select %p301, %s300, 31
      %s303 = smul.addr %s302, 8
      %s304 = scalar_lea.vmem %s0, %s303
      %p305 = pneg %p47
      %p306 = pneg %p44
      %p307 = pneg %p68
      %p308 = pneg %p65
      %p309 = pneg %p89
      %p310 = pneg %p86
      %p311 = pneg %p110
      %p312 = pneg %p107
      %p313 = pneg %p131
      %p314 = pneg %p128
      %p315 = pneg %p152
      %p316 = pneg %p149
      %p317 = pneg %p173
      %p318 = pneg %p170
      %p319 = pneg %p194
      %p320 = pneg %p191
      %p321 = pneg %p215
      %p322 = pneg %p212
      %p323 = pneg %p241
      %p324 = pneg %p238
      %p325 = scmp.lt.s32.totalorder %s26, 1
      %s326 = scalar_select %p325, %s26, 1
      %s327 = smul.addr %s326, 2
      %s328 = scalar_lea.vmem %s9, %s327
      %s329 = smul.u32 16, %s26
      %p330 = scmp.lt.s32.totalorder %s329, 31
      %s331 = scalar_select %p330, %s329, 31
      %s332 = smul.addr %s331, 8
      %s333 = scalar_lea.vmem %s0, %s332
      %s334 = smul.u32 16, %s26
      %p335 = scmp.lt.s32.totalorder %s26, 1
      %s336 = scalar_select %p335, %s26, 1
      %s337 = smul.addr %s336, 2
      %s338 = scalar_lea.vmem %s9, %s337
      %v340 = vlaneseq
      %v341 = vshrl.u32 %v340, 7
      %v342 = vadd.s32 %v341, 8
      %v343 = vadd.s32 %v341, 16
      %v344 = vadd.s32 %v341, 24
      %v345 = vadd.s32 %v341, 32
      %v346 = vadd.s32 %v341, 40
      %v347 = vadd.s32 %v341, 48
      %v348 = vadd.s32 %v341, 56
      %v349 = vadd.s32 %v341, 64
      %v350 = vadd.s32 %v341, 72
      %v351 = vadd.s32 %v341, 80
      %v352 = vadd.s32 %v341, 88
      %v353 = vadd.s32 %v341, 96
      %v354 = vadd.s32 %v341, 104
      %v355 = vadd.s32 %v341, 112
      %v356 = vadd.s32 %v341, 120
      %v357 = vshra.s32 %v341, 3
      %v358 = vshra.s32 %v342, 3
      %v359 = vshra.s32 %v343, 3
      %v360 = vshra.s32 %v344, 3
      %v361 = vshra.s32 %v345, 3
      %v362 = vshra.s32 %v346, 3
      %v363 = vshra.s32 %v347, 3
      %v364 = vshra.s32 %v348, 3
      %v365 = vshra.s32 %v349, 3
      %v366 = vshra.s32 %v350, 3
      %v367 = vshra.s32 %v351, 3
      %v368 = vshra.s32 %v352, 3
      %v369 = vshra.s32 %v353, 3
      %v370 = vshra.s32 %v354, 3
      %v371 = vshra.s32 %v355, 3
      %v372 = vshra.s32 %v356, 3
      %v373 = vand.u32 %v357, 7
      %v374 = vand.u32 %v358, 7
      %v375 = vand.u32 %v359, 7
      %v376 = vand.u32 %v360, 7
      %v377 = vand.u32 %v361, 7
      %v378 = vand.u32 %v362, 7
      %v379 = vand.u32 %v363, 7
      %v380 = vand.u32 %v364, 7
      %v381 = vand.u32 %v365, 7
      %v382 = vand.u32 %v366, 7
      %v383 = vand.u32 %v367, 7
      %v384 = vand.u32 %v368, 7
      %v385 = vand.u32 %v369, 7
      %v386 = vand.u32 %v370, 7
      %v387 = vand.u32 %v371, 7
      %v388 = vand.u32 %v372, 7
      %v389 = vand.u32 %v341, 7
      %v390 = vand.u32 %v342, 7
      %v391 = vand.u32 %v343, 7
      %v392 = vand.u32 %v344, 7
      %v393 = vand.u32 %v345, 7
      %v394 = vand.u32 %v346, 7
      %v395 = vand.u32 %v347, 7
      %v396 = vand.u32 %v348, 7
      %v397 = vand.u32 %v349, 7
      %v398 = vand.u32 %v350, 7
      %v399 = vand.u32 %v351, 7
      %v400 = vand.u32 %v352, 7
      %v401 = vand.u32 %v353, 7
      %v402 = vand.u32 %v354, 7
      %v403 = vand.u32 %v355, 7
      %v404 = vand.u32 %v356, 7
      %vm405 = vcmp.ge.s32.totalorder %v373, 1
      %vm406 = vcmp.ge.s32.totalorder %v374, 1
      %vm407 = vcmp.ge.s32.totalorder %v375, 1
      %vm408 = vcmp.ge.s32.totalorder %v376, 1
      %vm409 = vcmp.ge.s32.totalorder %v377, 1
      %vm410 = vcmp.ge.s32.totalorder %v378, 1
      %vm411 = vcmp.ge.s32.totalorder %v379, 1
      %vm412 = vcmp.ge.s32.totalorder %v380, 1
      %vm413 = vcmp.ge.s32.totalorder %v381, 1
      %vm414 = vcmp.ge.s32.totalorder %v382, 1
      %vm415 = vcmp.ge.s32.totalorder %v383, 1
      %vm416 = vcmp.ge.s32.totalorder %v384, 1
      %vm417 = vcmp.ge.s32.totalorder %v385, 1
      %vm418 = vcmp.ge.s32.totalorder %v386, 1
      %vm419 = vcmp.ge.s32.totalorder %v387, 1
      %vm420 = vcmp.ge.s32.totalorder %v388, 1
      %vm421 = vcmp.ge.s32.totalorder %v389, 1
      %vm422 = vcmp.ge.s32.totalorder %v390, 1
      %vm423 = vcmp.ge.s32.totalorder %v391, 1
      %vm424 = vcmp.ge.s32.totalorder %v392, 1
      %vm425 = vcmp.ge.s32.totalorder %v393, 1
      %vm426 = vcmp.ge.s32.totalorder %v394, 1
      %vm427 = vcmp.ge.s32.totalorder %v395, 1
      %vm428 = vcmp.ge.s32.totalorder %v396, 1
      %vm429 = vcmp.ge.s32.totalorder %v397, 1
      %vm430 = vcmp.ge.s32.totalorder %v398, 1
      %vm431 = vcmp.ge.s32.totalorder %v399, 1
      %vm432 = vcmp.ge.s32.totalorder %v400, 1
      %vm433 = vcmp.ge.s32.totalorder %v401, 1
      %vm434 = vcmp.ge.s32.totalorder %v402, 1
      %vm435 = vcmp.ge.s32.totalorder %v403, 1
      %vm436 = vcmp.ge.s32.totalorder %v404, 1
      %vm437 = vmand %vm405, %vm421
      %vm438 = vmand %vm406, %vm422
      %vm439 = vmand %vm407, %vm423
      %vm440 = vmand %vm408, %vm424
      %vm441 = vmand %vm409, %vm425
      %vm442 = vmand %vm410, %vm426
      %vm443 = vmand %vm411, %vm427
      %vm444 = vmand %vm412, %vm428
      %vm445 = vmand %vm413, %vm429
      %vm446 = vmand %vm414, %vm430
      %vm447 = vmand %vm415, %vm431
      %vm448 = vmand %vm416, %vm432
      %vm449 = vmand %vm417, %vm433
      %vm450 = vmand %vm418, %vm434
      %vm451 = vmand %vm419, %vm435
      %vm452 = vmand %vm420, %vm436
      %vm453 = vcmp.le.s32.totalorder %v389, 6
      %vm454 = vcmp.le.s32.totalorder %v390, 6
      %vm455 = vcmp.le.s32.totalorder %v391, 6
      %vm456 = vcmp.le.s32.totalorder %v392, 6
      %vm457 = vcmp.le.s32.totalorder %v393, 6
      %vm458 = vcmp.le.s32.totalorder %v394, 6
      %vm459 = vcmp.le.s32.totalorder %v395, 6
      %vm460 = vcmp.le.s32.totalorder %v396, 6
      %vm461 = vcmp.le.s32.totalorder %v397, 6
      %vm462 = vcmp.le.s32.totalorder %v398, 6
      %vm463 = vcmp.le.s32.totalorder %v399, 6
      %vm464 = vcmp.le.s32.totalorder %v400, 6
      %vm465 = vcmp.le.s32.totalorder %v401, 6
      %vm466 = vcmp.le.s32.totalorder %v402, 6
      %vm467 = vcmp.le.s32.totalorder %v403, 6
      %vm468 = vcmp.le.s32.totalorder %v404, 6
      %vm469 = vmand %vm405, %vm453
      %vm470 = vmand %vm406, %vm454
      %vm471 = vmand %vm407, %vm455
      %vm472 = vmand %vm408, %vm456
      %vm473 = vmand %vm409, %vm457
      %vm474 = vmand %vm410, %vm458
      %vm475 = vmand %vm411, %vm459
      %vm476 = vmand %vm412, %vm460
      %vm477 = vmand %vm413, %vm461
      %vm478 = vmand %vm414, %vm462
      %vm479 = vmand %vm415, %vm463
      %vm480 = vmand %vm416, %vm464
      %vm481 = vmand %vm417, %vm465
      %vm482 = vmand %vm418, %vm466
      %vm483 = vmand %vm419, %vm467
      %vm484 = vmand %vm420, %vm468
      %vm485 = vcmp.le.s32.totalorder %v373, 6
      %vm486 = vcmp.le.s32.totalorder %v374, 6
      %vm487 = vcmp.le.s32.totalorder %v375, 6
      %vm488 = vcmp.le.s32.totalorder %v376, 6
      %vm489 = vcmp.le.s32.totalorder %v377, 6
      %vm490 = vcmp.le.s32.totalorder %v378, 6
      %vm491 = vcmp.le.s32.totalorder %v379, 6
      %vm492 = vcmp.le.s32.totalorder %v380, 6
      %vm493 = vcmp.le.s32.totalorder %v381, 6
      %vm494 = vcmp.le.s32.totalorder %v382, 6
      %vm495 = vcmp.le.s32.totalorder %v383, 6
      %vm496 = vcmp.le.s32.totalorder %v384, 6
      %vm497 = vcmp.le.s32.totalorder %v385, 6
      %vm498 = vcmp.le.s32.totalorder %v386, 6
      %vm499 = vcmp.le.s32.totalorder %v387, 6
      %vm500 = vcmp.le.s32.totalorder %v388, 6
      %vm501 = vmand %vm485, %vm421
      %vm502 = vmand %vm486, %vm422
      %vm503 = vmand %vm487, %vm423
      %vm504 = vmand %vm488, %vm424
      %vm505 = vmand %vm489, %vm425
      %vm506 = vmand %vm490, %vm426
      %vm507 = vmand %vm491, %vm427
      %vm508 = vmand %vm492, %vm428
      %vm509 = vmand %vm493, %vm429
      %vm510 = vmand %vm494, %vm430
      %vm511 = vmand %vm495, %vm431
      %vm512 = vmand %vm496, %vm432
      %vm513 = vmand %vm497, %vm433
      %vm514 = vmand %vm498, %vm434
      %vm515 = vmand %vm499, %vm435
      %vm516 = vmand %vm500, %vm436
      %vm517 = vmand %vm485, %vm453
      %vm518 = vmand %vm486, %vm454
      %vm519 = vmand %vm487, %vm455
      %vm520 = vmand %vm488, %vm456
      %vm521 = vmand %vm489, %vm457
      %vm522 = vmand %vm490, %vm458
      %vm523 = vmand %vm491, %vm459
      %vm524 = vmand %vm492, %vm460
      %vm525 = vmand %vm493, %vm461
      %vm526 = vmand %vm494, %vm462
      %vm527 = vmand %vm495, %vm463
      %vm528 = vmand %vm496, %vm464
      %vm529 = vmand %vm497, %vm465
      %vm530 = vmand %vm498, %vm466
      %vm531 = vmand %vm499, %vm467
      %vm532 = vmand %vm500, %vm468
      %v533 = vld [vmem:[%s333] sm:$0xff]
      %v534 = vld [vmem:[%s333 + $0x8] sm:$0xff]
      %v535 = vld [vmem:[%s333 + $0x10] sm:$0xff]
      %v536 = vld [vmem:[%s333 + $0x18] sm:$0xff]
      %v537 = vld [vmem:[%s333 + $0x20] sm:$0xff]
      %v538 = vld [vmem:[%s333 + $0x28] sm:$0xff]
      %v539 = vld [vmem:[%s333 + $0x30] sm:$0xff]
      %v540 = vld [vmem:[%s333 + $0x38] sm:$0xff]
      %v541 = vld [vmem:[%s333 + $0x40] sm:$0xff]
      %v542 = vld [vmem:[%s333 + $0x48] sm:$0xff]
      %v543 = vld [vmem:[%s333 + $0x50] sm:$0xff]
      %v544 = vld [vmem:[%s333 + $0x58] sm:$0xff]
      %v545 = vld [vmem:[%s333 + $0x60] sm:$0xff]
      %v546 = vld [vmem:[%s333 + $0x68] sm:$0xff]
      %v547 = vld [vmem:[%s333 + $0x70] sm:$0xff]
      %v548 = vld [vmem:[%s333 + $0x78] sm:$0xff]
      %v549 = vrot.slane %v533, 7
      %v550 = vrot.slane %v534, 7
      %v551 = vrot.slane %v535, 7
      %v552 = vrot.slane %v536, 7
      %v553 = vrot.slane %v537, 7
      %v554 = vrot.slane %v538, 7
      %v555 = vrot.slane %v539, 7
      %v556 = vrot.slane %v540, 7
      %v557 = vrot.slane %v541, 7
      %v558 = vrot.slane %v542, 7
      %v559 = vrot.slane %v543, 7
      %v560 = vrot.slane %v544, 7
      %v561 = vrot.slane %v545, 7
      %v562 = vrot.slane %v546, 7
      %v563 = vrot.slane %v547, 7
      %v564 = vrot.slane %v548, 7
      %vm565 = vcmp.lt.s32.totalorder %v341, 1
      %v566 = vsel %vm565, %v563, %v564
      %v567 = vsel %vm565, %v562, %v563
      %v568 = vsel %vm565, %v561, %v562
      %v569 = vsel %vm565, %v560, %v561
      %v570 = vsel %vm565, %v559, %v560
      %v571 = vsel %vm565, %v558, %v559
      %v572 = vsel %vm565, %v557, %v558
      %v573 = vsel %vm565, %v556, %v557
      %v574 = vsel %vm565, %v555, %v556
      %v575 = vsel %vm565, %v554, %v555
      %v576 = vsel %vm565, %v553, %v554
      %v577 = vsel %vm565, %v552, %v553
      %v578 = vsel %vm565, %v551, %v552
      %v579 = vsel %vm565, %v550, %v551
      %v580 = vsel %vm565, %v549, %v550
      %v581 = vsel %vm565, %v564, %v549
      %v582 = vpack.c.bf16 %v581, %v566
      %v583 = vpack.c.bf16 %v579, %v580
      %v584 = vpack.c.bf16 %v577, %v578
      %v585 = vpack.c.bf16 %v575, %v576
      %v586 = vpack.c.bf16 %v573, %v574
      %v587 = vpack.c.bf16 %v571, %v572
      %v588 = vpack.c.bf16 %v569, %v570
      %v589 = vpack.c.bf16 %v567, %v568
      %v590 = vld [vmem:[%s1] sm:$0xf]
      %v591 = vld [vmem:[%s1 + $0x4] sm:$0xf]
      %v592 = vld [vmem:[%s1 + $0x8] sm:$0xf]
      %v593 = vld [vmem:[%s1 + $0xc] sm:$0xf]
      %v598 = vunpack.c.l.b16 %v590
      %v599 = vunpack.c.l.b16 %v591
      %v600 = vunpack.c.l.b16 %v592
      %v601 = vunpack.c.l.b16 %v593
      %v602 = vpack.c.b16 %v599, %v598
      %v603 = vpack.c.b16 %v601, %v600
      %vm606 = vcmask 261120
      %v608 = vsel %vm606, %v582, 0
      %v611 = vsel %vm606, %v583, 0
      %v614 = vsel %vm606, %v584, 0
      %v617 = vsel %vm606, %v585, 0
      %v620 = vsel %vm606, %v586, 0
      %v623 = vsel %vm606, %v587, 0
      %v626 = vsel %vm606, %v588, 0
      %v629 = vsel %vm606, %v589, 0
      %631 = vmatprep.subr.bf16.mxu0 0
      %632 = vmatpush1.bf16.msra.mxu0 %v602
      %633 = vmatprep.subr.bf16.mxu0 0
      %634 = vmatpush1.bf16.msra.mxu0 %v603
      %635 = vmatprep.subr.bf16.mxu0 0
      %636 = vmatpush1.bf16.msra.mxu0 0
      %637 = vmatprep.subr.bf16.mxu0 0
      %638 = vmatpush1.bf16.msra.mxu0 0
      %639 = vmatprep.subr.bf16.mxu0 0
      %640 = vmatpush1.bf16.msra.mxu0 0
      %641 = vmatprep.subr.bf16.mxu0 0
      %642 = vmatpush1.bf16.msra.mxu0 0
      %643 = vmatprep.subr.bf16.mxu0 0
      %644 = vmatpush1.bf16.msra.mxu0 0
      %645 = vmatprep.subr.bf16.mxu0 0
      %646 = vmatpush1.bf16.msra.mxu0 0
      %647 = vmatprep.subr.bf16.mxu0 0
      %648 = vmatpush1.bf16.msra.mxu0 0
      %649 = vmatprep.subr.bf16.mxu0 0
      %650 = vmatpush1.bf16.msra.mxu0 0
      %651 = vmatprep.subr.bf16.mxu0 0
      %652 = vmatpush1.bf16.msra.mxu0 0
      %653 = vmatprep.subr.bf16.mxu0 0
      %654 = vmatpush1.bf16.msra.mxu0 0
      %655 = vmatprep.subr.bf16.mxu0 0
      %656 = vmatpush1.bf16.msra.mxu0 0
      %657 = vmatprep.subr.bf16.mxu0 0
      %658 = vmatpush1.bf16.msra.mxu0 0
      %659 = vmatprep.subr.bf16.mxu0 0
      %660 = vmatpush1.bf16.msra.mxu0 0
      %661 = vmatprep.subr.bf16.mxu0 0
      %662 = vmatpush1.bf16.msra.mxu0 0
      %663 = vmatprep.mubr.bf16.mxu0 0
      %664 = vmatmul.mubr.bf16.gmra.mrb[0].mxu0 %v608
      %v665 = vpop.f32.mrb[0].mxu0
      %v666 = vadd.f32 0.0, %v665
      %v667 = vpop.f32.mrb[0].mxu0
      %v668 = vpop.f32.mrb[0].mxu0
      %v669 = vadd.f32 0.0, %v668
      %v670 = vpop.f32.mrb[0].mxu0
      %671 = vmatprep.mubr.bf16.mxu0 0
      %672 = vmatmul.mubr.bf16.gmra.mrb[0].mxu0 %v611
      %v673 = vpop.f32.mrb[0].mxu0
      %v674 = vadd.f32 0.0, %v673
      %v675 = vpop.f32.mrb[0].mxu0
      %v676 = vpop.f32.mrb[0].mxu0
      %v677 = vadd.f32 0.0, %v676
      %v678 = vpop.f32.mrb[0].mxu0
      %679 = vmatprep.mubr.bf16.mxu0 0
      %680 = vmatmul.mubr.bf16.gmra.mrb[0].mxu0 %v614
      %v681 = vpop.f32.mrb[0].mxu0
      %v682 = vadd.f32 0.0, %v681
      %v683 = vpop.f32.mrb[0].mxu0
      %v684 = vpop.f32.mrb[0].mxu0
      %v685 = vadd.f32 0.0, %v684
      %v686 = vpop.f32.mrb[0].mxu0
      %687 = vmatprep.mubr.bf16.mxu0 0
      %688 = vmatmul.mubr.bf16.gmra.mrb[0].mxu0 %v617
      %v689 = vpop.f32.mrb[0].mxu0
      %v690 = vadd.f32 0.0, %v689
      %v691 = vpop.f32.mrb[0].mxu0
      %v692 = vpop.f32.mrb[0].mxu0
      %v693 = vadd.f32 0.0, %v692
      %v694 = vpop.f32.mrb[0].mxu0
      %695 = vmatprep.mubr.bf16.mxu0 0
      %696 = vmatmul.mubr.bf16.gmra.mrb[0].mxu0 %v620
      %v697 = vpop.f32.mrb[0].mxu0
      %v698 = vadd.f32 0.0, %v697
      %v699 = vpop.f32.mrb[0].mxu0
      %v700 = vpop.f32.mrb[0].mxu0
      %v701 = vadd.f32 0.0, %v700
      %v702 = vpop.f32.mrb[0].mxu0
      %703 = vmatprep.mubr.bf16.mxu0 0
      %704 = vmatmul.mubr.bf16.gmra.mrb[0].mxu0 %v623
      %v705 = vpop.f32.mrb[0].mxu0
      %v706 = vadd.f32 0.0, %v705
      %v707 = vpop.f32.mrb[0].mxu0
      %v708 = vpop.f32.mrb[0].mxu0
      %v709 = vadd.f32 0.0, %v708
      %v710 = vpop.f32.mrb[0].mxu0
      %711 = vmatprep.mubr.bf16.mxu0 0
      %712 = vmatmul.mubr.bf16.gmra.mrb[0].mxu0 %v626
      %v713 = vpop.f32.mrb[0].mxu0
      %v714 = vadd.f32 0.0, %v713
      %v715 = vpop.f32.mrb[0].mxu0
      %v716 = vpop.f32.mrb[0].mxu0
      %v717 = vadd.f32 0.0, %v716
      %v718 = vpop.f32.mrb[0].mxu0
      %719 = vmatprep.mubr.bf16.mxu0 0
      %720 = vmatmul.mubr.bf16.gmra.mrb[0].mxu0 %v629
      %v721 = vpop.f32.mrb[0].mxu0
      %v722 = vadd.f32 0.0, %v721
      %v723 = vpop.f32.mrb[0].mxu0
      %v724 = vpop.f32.mrb[0].mxu0
      %v725 = vadd.f32 0.0, %v724
      %v726 = vpop.f32.mrb[0].mxu0
      %727 = vdwg.mxu0
      %v728 = vsel %vm437, 1, 0
      %v729 = vsel %vm438, 1, 0
      %v730 = vsel %vm439, 1, 0
      %v731 = vsel %vm440, 1, 0
      %v732 = vsel %vm441, 1, 0
      %v733 = vsel %vm442, 1, 0
      %v734 = vsel %vm443, 1, 0
      %v735 = vsel %vm444, 1, 0
      %v736 = vsel %vm445, 1, 0
      %v737 = vsel %vm446, 1, 0
      %v738 = vsel %vm447, 1, 0
      %v739 = vsel %vm448, 1, 0
      %v740 = vsel %vm449, 1, 0
      %v741 = vsel %vm450, 1, 0
      %v742 = vsel %vm451, 1, 0
      %v743 = vsel %vm452, 1, 0
      %vm744 = vcmp.eq.s32.totalorder %v728, 1
      %vm745 = vcmp.eq.s32.totalorder %v729, 1
      %vm746 = vcmp.eq.s32.totalorder %v730, 1
      %vm747 = vcmp.eq.s32.totalorder %v731, 1
      %vm748 = vcmp.eq.s32.totalorder %v732, 1
      %vm749 = vcmp.eq.s32.totalorder %v733, 1
      %vm750 = vcmp.eq.s32.totalorder %v734, 1
      %vm751 = vcmp.eq.s32.totalorder %v735, 1
      %vm752 = vcmp.eq.s32.totalorder %v736, 1
      %vm753 = vcmp.eq.s32.totalorder %v737, 1
      %vm754 = vcmp.eq.s32.totalorder %v738, 1
      %vm755 = vcmp.eq.s32.totalorder %v739, 1
      %vm756 = vcmp.eq.s32.totalorder %v740, 1
      %vm757 = vcmp.eq.s32.totalorder %v741, 1
      %vm758 = vcmp.eq.s32.totalorder %v742, 1
      %vm759 = vcmp.eq.s32.totalorder %v743, 1
      %v760 = vsel %vm744, %v666, 0.0
      %v761 = vsel %vm745, %v669, 0.0
      %v762 = vsel %vm746, %v674, 0.0
      %v763 = vsel %vm747, %v677, 0.0
      %v764 = vsel %vm748, %v682, 0.0
      %v765 = vsel %vm749, %v685, 0.0
      %v766 = vsel %vm750, %v690, 0.0
      %v767 = vsel %vm751, %v693, 0.0
      %v768 = vsel %vm752, %v698, 0.0
      %v769 = vsel %vm753, %v701, 0.0
      %v770 = vsel %vm754, %v706, 0.0
      %v771 = vsel %vm755, %v709, 0.0
      %v772 = vsel %vm756, %v714, 0.0
      %v773 = vsel %vm757, %v717, 0.0
      %v774 = vsel %vm758, %v722, 0.0
      %v775 = vsel %vm759, %v725, 0.0
      %v776 = vpack.c.bf16 %v533, %v548
      %v777 = vpack.c.bf16 %v535, %v534
      %v778 = vpack.c.bf16 %v537, %v536
      %v779 = vpack.c.bf16 %v539, %v538
      %v780 = vpack.c.bf16 %v541, %v540
      %v781 = vpack.c.bf16 %v543, %v542
      %v782 = vpack.c.bf16 %v545, %v544
      %v783 = vpack.c.bf16 %v547, %v546
      %s784 = scalar_lea.vmem %s1, 16
      %v785 = vld [vmem:[%s784] sm:$0xf]
      %v786 = vld [vmem:[%s784 + $0x4] sm:$0xf]
      %v787 = vld [vmem:[%s784 + $0x8] sm:$0xf]
      %v788 = vld [vmem:[%s784 + $0xc] sm:$0xf]
      %v793 = vunpack.c.l.b16 %v785
      %v794 = vunpack.c.l.b16 %v786
      %v795 = vunpack.c.l.b16 %v787
      %v796 = vunpack.c.l.b16 %v788
      %v797 = vpack.c.b16 %v794, %v793
      %v798 = vpack.c.b16 %v796, %v795
      %v802 = vsel %vm606, %v776, 0
      %v805 = vsel %vm606, %v777, 0
      %v808 = vsel %vm606, %v778, 0
      %v811 = vsel %vm606, %v779, 0
      %v814 = vsel %vm606, %v780, 0
      %v817 = vsel %vm606, %v781, 0
      %v820 = vsel %vm606, %v782, 0
      %v823 = vsel %vm606, %v783, 0
      %825 = vmatprep.subr.bf16.mxu0 0
      %826 = vmatpush1.bf16.msra.mxu0 %v797
      %827 = vmatprep.subr.bf16.mxu0 0
      %828 = vmatpush1.bf16.msra.mxu0 %v798
      %829 = vmatprep.subr.bf16.mxu0 0
      %830 = vmatpush1.bf16.msra.mxu0 0
      %831 = vmatprep.subr.bf16.mxu0 0
      %832 = vmatpush1.bf16.msra.mxu0 0
      %833 = vmatprep.subr.bf16.mxu0 0
      %834 = vmatpush1.bf16.msra.mxu0 0
      %835 = vmatprep.subr.bf16.mxu0 0
      %836 = vmatpush1.bf16.msra.mxu0 0
      %837 = vmatprep.subr.bf16.mxu0 0
      %838 = vmatpush1.bf16.msra.mxu0 0
      %839 = vmatprep.subr.bf16.mxu0 0
      %840 = vmatpush1.bf16.msra.mxu0 0
      %841 = vmatprep.subr.bf16.mxu0 0
      %842 = vmatpush1.bf16.msra.mxu0 0
      %843 = vmatprep.subr.bf16.mxu0 0
      %844 = vmatpush1.bf16.msra.mxu0 0
      %845 = vmatprep.subr.bf16.mxu0 0
      %846 = vmatpush1.bf16.msra.mxu0 0
      %847 = vmatprep.subr.bf16.mxu0 0
      %848 = vmatpush1.bf16.msra.mxu0 0
      %849 = vmatprep.subr.bf16.mxu0 0
      %850 = vmatpush1.bf16.msra.mxu0 0
      %851 = vmatprep.subr.bf16.mxu0 0
      %852 = vmatpush1.bf16.msra.mxu0 0
      %853 = vmatprep.subr.bf16.mxu0 0
      %854 = vmatpush1.bf16.msra.mxu0 0
      %855 = vmatprep.subr.bf16.mxu0 0
      %856 = vmatpush1.bf16.msra.mxu0 0
      %857 = vmatprep.mubr.bf16.mxu0 0
      %858 = vmatmul.mubr.bf16.gmra.mrb[0].mxu0 %v802
      %v859 = vpop.f32.mrb[0].mxu0
      %v860 = vadd.f32 0.0, %v859
      %v861 = vpop.f32.mrb[0].mxu0
      %v862 = vpop.f32.mrb[0].mxu0
      %v863 = vadd.f32 0.0, %v862
      %v864 = vpop.f32.mrb[0].mxu0
      %865 = vmatprep.mubr.bf16.mxu0 0
      %866 = vmatmul.mubr.bf16.gmra.mrb[0].mxu0 %v805
      %v867 = vpop.f32.mrb[0].mxu0
      %v868 = vadd.f32 0.0, %v867
      %v869 = vpop.f32.mrb[0].mxu0
      %v870 = vpop.f32.mrb[0].mxu0
      %v871 = vadd.f32 0.0, %v870
      %v872 = vpop.f32.mrb[0].mxu0
      %873 = vmatprep.mubr.bf16.mxu0 0
      %874 = vmatmul.mubr.bf16.gmra.mrb[0].mxu0 %v808
      %v875 = vpop.f32.mrb[0].mxu0
      %v876 = vadd.f32 0.0, %v875
      %v877 = vpop.f32.mrb[0].mxu0
      %v878 = vpop.f32.mrb[0].mxu0
      %v879 = vadd.f32 0.0, %v878
      %v880 = vpop.f32.mrb[0].mxu0
      %881 = vmatprep.mubr.bf16.mxu0 0
      %882 = vmatmul.mubr.bf16.gmra.mrb[0].mxu0 %v811
      %v883 = vpop.f32.mrb[0].mxu0
      %v884 = vadd.f32 0.0, %v883
      %v885 = vpop.f32.mrb[0].mxu0
      %v886 = vpop.f32.mrb[0].mxu0
      %v887 = vadd.f32 0.0, %v886
      %v888 = vpop.f32.mrb[0].mxu0
      %889 = vmatprep.mubr.bf16.mxu0 0
      %890 = vmatmul.mubr.bf16.gmra.mrb[0].mxu0 %v814
      %v891 = vpop.f32.mrb[0].mxu0
      %v892 = vadd.f32 0.0, %v891
      %v893 = vpop.f32.mrb[0].mxu0
      %v894 = vpop.f32.mrb[0].mxu0
      %v895 = vadd.f32 0.0, %v894
      %v896 = vpop.f32.mrb[0].mxu0
      %897 = vmatprep.mubr.bf16.mxu0 0
      %898 = vmatmul.mubr.bf16.gmra.mrb[0].mxu0 %v817
      %v899 = vpop.f32.mrb[0].mxu0
      %v900 = vadd.f32 0.0, %v899
      %v901 = vpop.f32.mrb[0].mxu0
      %v902 = vpop.f32.mrb[0].mxu0
      %v903 = vadd.f32 0.0, %v902
      %v904 = vpop.f32.mrb[0].mxu0
      %905 = vmatprep.mubr.bf16.mxu0 0
      %906 = vmatmul.mubr.bf16.gmra.mrb[0].mxu0 %v820
      %v907 = vpop.f32.mrb[0].mxu0
      %v908 = vadd.f32 0.0, %v907
      %v909 = vpop.f32.mrb[0].mxu0
      %v910 = vpop.f32.mrb[0].mxu0
      %v911 = vadd.f32 0.0, %v910
      %v912 = vpop.f32.mrb[0].mxu0
      %913 = vmatprep.mubr.bf16.mxu0 0
      %914 = vmatmul.mubr.bf16.gmra.mrb[0].mxu0 %v823
      %v915 = vpop.f32.mrb[0].mxu0
      %v916 = vadd.f32 0.0, %v915
      %v917 = vpop.f32.mrb[0].mxu0
      %v918 = vpop.f32.mrb[0].mxu0
      %v919 = vadd.f32 0.0, %v918
      %v920 = vpop.f32.mrb[0].mxu0
      %921 = vdwg.mxu0
      %v922 = vsel %vm405, 1, 0
      %v923 = vsel %vm406, 1, 0
      %v924 = vsel %vm407, 1, 0
      %v925 = vsel %vm408, 1, 0
      %v926 = vsel %vm409, 1, 0
      %v927 = vsel %vm410, 1, 0
      %v928 = vsel %vm411, 1, 0
      %v929 = vsel %vm412, 1, 0
      %v930 = vsel %vm413, 1, 0
      %v931 = vsel %vm414, 1, 0
      %v932 = vsel %vm415, 1, 0
      %v933 = vsel %vm416, 1, 0
      %v934 = vsel %vm417, 1, 0
      %v935 = vsel %vm418, 1, 0
      %v936 = vsel %vm419, 1, 0
      %v937 = vsel %vm420, 1, 0
      %vm938 = vcmp.eq.s32.totalorder %v922, 1
      %vm939 = vcmp.eq.s32.totalorder %v923, 1
      %vm940 = vcmp.eq.s32.totalorder %v924, 1
      %vm941 = vcmp.eq.s32.totalorder %v925, 1
      %vm942 = vcmp.eq.s32.totalorder %v926, 1
      %vm943 = vcmp.eq.s32.totalorder %v927, 1
      %vm944 = vcmp.eq.s32.totalorder %v928, 1
      %vm945 = vcmp.eq.s32.totalorder %v929, 1
      %vm946 = vcmp.eq.s32.totalorder %v930, 1
      %vm947 = vcmp.eq.s32.totalorder %v931, 1
      %vm948 = vcmp.eq.s32.totalorder %v932, 1
      %vm949 = vcmp.eq.s32.totalorder %v933, 1
      %vm950 = vcmp.eq.s32.totalorder %v934, 1
      %vm951 = vcmp.eq.s32.totalorder %v935, 1
      %vm952 = vcmp.eq.s32.totalorder %v936, 1
      %vm953 = vcmp.eq.s32.totalorder %v937, 1
      %v954 = vsel %vm938, %v860, 0.0
      %v955 = vsel %vm939, %v863, 0.0
      %v956 = vsel %vm940, %v868, 0.0
      %v957 = vsel %vm941, %v871, 0.0
      %v958 = vsel %vm942, %v876, 0.0
      %v959 = vsel %vm943, %v879, 0.0
      %v960 = vsel %vm944, %v884, 0.0
      %v961 = vsel %vm945, %v887, 0.0
      %v962 = vsel %vm946, %v892, 0.0
      %v963 = vsel %vm947, %v895, 0.0
      %v964 = vsel %vm948, %v900, 0.0
      %v965 = vsel %vm949, %v903, 0.0
      %v966 = vsel %vm950, %v908, 0.0
      %v967 = vsel %vm951, %v911, 0.0
      %v968 = vsel %vm952, %v916, 0.0
      %v969 = vsel %vm953, %v919, 0.0
      %v970 = vadd.f32 %v760, %v954
      %v971 = vadd.f32 %v761, %v955
      %v972 = vadd.f32 %v762, %v956
      %v973 = vadd.f32 %v763, %v957
      %v974 = vadd.f32 %v764, %v958
      %v975 = vadd.f32 %v765, %v959
      %v976 = vadd.f32 %v766, %v960
      %v977 = vadd.f32 %v767, %v961
      %v978 = vadd.f32 %v768, %v962
      %v979 = vadd.f32 %v769, %v963
      %v980 = vadd.f32 %v770, %v964
      %v981 = vadd.f32 %v771, %v965
      %v982 = vadd.f32 %v772, %v966
      %v983 = vadd.f32 %v773, %v967
      %v984 = vadd.f32 %v774, %v968
      %v985 = vadd.f32 %v775, %v969
      %v986 = vrot.slane %v533, 1
      %v987 = vrot.slane %v534, 1
      %v988 = vrot.slane %v535, 1
      %v989 = vrot.slane %v536, 1
      %v990 = vrot.slane %v537, 1
      %v991 = vrot.slane %v538, 1
      %v992 = vrot.slane %v539, 1
      %v993 = vrot.slane %v540, 1
      %v994 = vrot.slane %v541, 1
      %v995 = vrot.slane %v542, 1
      %v996 = vrot.slane %v543, 1
      %v997 = vrot.slane %v544, 1
      %v998 = vrot.slane %v545, 1
      %v999 = vrot.slane %v546, 1
      %v1000 = vrot.slane %v547, 1
      %v1001 = vrot.slane %v548, 1
      %vm1002 = vcmp.lt.s32.totalorder %v341, 7
      %v1003 = vsel %vm1002, %v1000, %v1001
      %v1004 = vsel %vm1002, %v999, %v1000
      %v1005 = vsel %vm1002, %v998, %v999
      %v1006 = vsel %vm1002, %v997, %v998
      %v1007 = vsel %vm1002, %v996, %v997
      %v1008 = vsel %vm1002, %v995, %v996
      %v1009 = vsel %vm1002, %v994, %v995
      %v1010 = vsel %vm1002, %v993, %v994
      %v1011 = vsel %vm1002, %v992, %v993
      %v1012 = vsel %vm1002, %v991, %v992
      %v1013 = vsel %vm1002, %v990, %v991
      %v1014 = vsel %vm1002, %v989, %v990
      %v1015 = vsel %vm1002, %v988, %v989
      %v1016 = vsel %vm1002, %v987, %v988
      %v1017 = vsel %vm1002, %v986, %v987
      %v1018 = vsel %vm1002, %v1001, %v986
      %v1019 = vpack.c.bf16 %v1017, %v1018
      %v1020 = vpack.c.bf16 %v1015, %v1016
      %v1021 = vpack.c.bf16 %v1013, %v1014
      %v1022 = vpack.c.bf16 %v1011, %v1012
      %v1023 = vpack.c.bf16 %v1009, %v1010
      %v1024 = vpack.c.bf16 %v1007, %v1008
      %v1025 = vpack.c.bf16 %v1005, %v1006
      %v1026 = vpack.c.bf16 %v1003, %v1004
      %s1027 = scalar_lea.vmem %s1, 32
      %v1028 = vld [vmem:[%s1027] sm:$0xf]
      %v1029 = vld [vmem:[%s1027 + $0x4] sm:$0xf]
      %v1030 = vld [vmem:[%s1027 + $0x8] sm:$0xf]
      %v1031 = vld [vmem:[%s1027 + $0xc] sm:$0xf]
      %v1036 = vunpack.c.l.b16 %v1028
      %v1037 = vunpack.c.l.b16 %v1029
      %v1038 = vunpack.c.l.b16 %v1030
      %v1039 = vunpack.c.l.b16 %v1031
      %v1040 = vpack.c.b16 %v1037, %v1036
      %v1041 = vpack.c.b16 %v1039, %v1038
      %v1045 = vsel %vm606, %v1019, 0
      %v1048 = vsel %vm606, %v1020, 0
      %v1051 = vsel %vm606, %v1021, 0
      %v1054 = vsel %vm606, %v1022, 0
      %v1057 = vsel %vm606, %v1023, 0
      %v1060 = vsel %vm606, %v1024, 0
      %v1063 = vsel %vm606, %v1025, 0
      %v1066 = vsel %vm606, %v1026, 0
      %1068 = vmatprep.subr.bf16.mxu0 0
      %1069 = vmatpush1.bf16.msra.mxu0 %v1040
      %1070 = vmatprep.subr.bf16.mxu0 0
      %1071 = vmatpush1.bf16.msra.mxu0 %v1041
      %1072 = vmatprep.subr.bf16.mxu0 0
      %1073 = vmatpush1.bf16.msra.mxu0 0
      %1074 = vmatprep.subr.bf16.mxu0 0
      %1075 = vmatpush1.bf16.msra.mxu0 0
      %1076 = vmatprep.subr.bf16.mxu0 0
      %1077 = vmatpush1.bf16.msra.mxu0 0
      %1078 = vmatprep.subr.bf16.mxu0 0
      %1079 = vmatpush1.bf16.msra.mxu0 0
      %1080 = vmatprep.subr.bf16.mxu0 0
      %1081 = vmatpush1.bf16.msra.mxu0 0
      %1082 = vmatprep.subr.bf16.mxu0 0
      %1083 = vmatpush1.bf16.msra.mxu0 0
      %1084 = vmatprep.subr.bf16.mxu0 0
      %1085 = vmatpush1.bf16.msra.mxu0 0
      %1086 = vmatprep.subr.bf16.mxu0 0
      %1087 = vmatpush1.bf16.msra.mxu0 0
      %1088 = vmatprep.subr.bf16.mxu0 0
      %1089 = vmatpush1.bf16.msra.mxu0 0
      %1090 = vmatprep.subr.bf16.mxu0 0
      %1091 = vmatpush1.bf16.msra.mxu0 0
      %1092 = vmatprep.subr.bf16.mxu0 0
      %1093 = vmatpush1.bf16.msra.mxu0 0
      %1094 = vmatprep.subr.bf16.mxu0 0
      %1095 = vmatpush1.bf16.msra.mxu0 0
      %1096 = vmatprep.subr.bf16.mxu0 0
      %1097 = vmatpush1.bf16.msra.mxu0 0
      %1098 = vmatprep.subr.bf16.mxu0 0
      %1099 = vmatpush1.bf16.msra.mxu0 0
      %1100 = vmatprep.mubr.bf16.mxu0 0
      %1101 = vmatmul.mubr.bf16.gmra.mrb[0].mxu0 %v1045
      %v1102 = vpop.f32.mrb[0].mxu0
      %v1103 = vadd.f32 0.0, %v1102
      %v1104 = vpop.f32.mrb[0].mxu0
      %v1105 = vpop.f32.mrb[0].mxu0
      %v1106 = vadd.f32 0.0, %v1105
      %v1107 = vpop.f32.mrb[0].mxu0
      %1108 = vmatprep.mubr.bf16.mxu0 0
      %1109 = vmatmul.mubr.bf16.gmra.mrb[0].mxu0 %v1048
      %v1110 = vpop.f32.mrb[0].mxu0
      %v1111 = vadd.f32 0.0, %v1110
      %v1112 = vpop.f32.mrb[0].mxu0
      %v1113 = vpop.f32.mrb[0].mxu0
      %v1114 = vadd.f32 0.0, %v1113
      %v1115 = vpop.f32.mrb[0].mxu0
      %1116 = vmatprep.mubr.bf16.mxu0 0
      %1117 = vmatmul.mubr.bf16.gmra.mrb[0].mxu0 %v1051
      %v1118 = vpop.f32.mrb[0].mxu0
      %v1119 = vadd.f32 0.0, %v1118
      %v1120 = vpop.f32.mrb[0].mxu0
      %v1121 = vpop.f32.mrb[0].mxu0
      %v1122 = vadd.f32 0.0, %v1121
      %v1123 = vpop.f32.mrb[0].mxu0
      %1124 = vmatprep.mubr.bf16.mxu0 0
      %1125 = vmatmul.mubr.bf16.gmra.mrb[0].mxu0 %v1054
      %v1126 = vpop.f32.mrb[0].mxu0
      %v1127 = vadd.f32 0.0, %v1126
      %v1128 = vpop.f32.mrb[0].mxu0
      %v1129 = vpop.f32.mrb[0].mxu0
      %v1130 = vadd.f32 0.0, %v1129
      %v1131 = vpop.f32.mrb[0].mxu0
      %1132 = vmatprep.mubr.bf16.mxu0 0
      %1133 = vmatmul.mubr.bf16.gmra.mrb[0].mxu0 %v1057
      %v1134 = vpop.f32.mrb[0].mxu0
      %v1135 = vadd.f32 0.0, %v1134
      %v1136 = vpop.f32.mrb[0].mxu0
      %v1137 = vpop.f32.mrb[0].mxu0
      %v1138 = vadd.f32 0.0, %v1137
      %v1139 = vpop.f32.mrb[0].mxu0
      %1140 = vmatprep.mubr.bf16.mxu0 0
      %1141 = vmatmul.mubr.bf16.gmra.mrb[0].mxu0 %v1060
      %v1142 = vpop.f32.mrb[0].mxu0
      %v1143 = vadd.f32 0.0, %v1142
      %v1144 = vpop.f32.mrb[0].mxu0
      %v1145 = vpop.f32.mrb[0].mxu0
      %v1146 = vadd.f32 0.0, %v1145
      %v1147 = vpop.f32.mrb[0].mxu0
      %1148 = vmatprep.mubr.bf16.mxu0 0
      %1149 = vmatmul.mubr.bf16.gmra.mrb[0].mxu0 %v1063
      %v1150 = vpop.f32.mrb[0].mxu0
      %v1151 = vadd.f32 0.0, %v1150
      %v1152 = vpop.f32.mrb[0].mxu0
      %v1153 = vpop.f32.mrb[0].mxu0
      %v1154 = vadd.f32 0.0, %v1153
      %v1155 = vpop.f32.mrb[0].mxu0
      %1156 = vmatprep.mubr.bf16.mxu0 0
      %1157 = vmatmul.mubr.bf16.gmra.mrb[0].mxu0 %v1066
      %v1158 = vpop.f32.mrb[0].mxu0
      %v1159 = vadd.f32 0.0, %v1158
      %v1160 = vpop.f32.mrb[0].mxu0
      %v1161 = vpop.f32.mrb[0].mxu0
      %v1162 = vadd.f32 0.0, %v1161
      %v1163 = vpop.f32.mrb[0].mxu0
      %1164 = vdwg.mxu0
      %v1165 = vsel %vm469, 1, 0
      %v1166 = vsel %vm470, 1, 0
      %v1167 = vsel %vm471, 1, 0
      %v1168 = vsel %vm472, 1, 0
      %v1169 = vsel %vm473, 1, 0
      %v1170 = vsel %vm474, 1, 0
      %v1171 = vsel %vm475, 1, 0
      %v1172 = vsel %vm476, 1, 0
      %v1173 = vsel %vm477, 1, 0
      %v1174 = vsel %vm478, 1, 0
      %v1175 = vsel %vm479, 1, 0
      %v1176 = vsel %vm480, 1, 0
      %v1177 = vsel %vm481, 1, 0
      %v1178 = vsel %vm482, 1, 0
      %v1179 = vsel %vm483, 1, 0
      %v1180 = vsel %vm484, 1, 0
      %vm1181 = vcmp.eq.s32.totalorder %v1165, 1
      %vm1182 = vcmp.eq.s32.totalorder %v1166, 1
      %vm1183 = vcmp.eq.s32.totalorder %v1167, 1
      %vm1184 = vcmp.eq.s32.totalorder %v1168, 1
      %vm1185 = vcmp.eq.s32.totalorder %v1169, 1
      %vm1186 = vcmp.eq.s32.totalorder %v1170, 1
      %vm1187 = vcmp.eq.s32.totalorder %v1171, 1
      %vm1188 = vcmp.eq.s32.totalorder %v1172, 1
      %vm1189 = vcmp.eq.s32.totalorder %v1173, 1
      %vm1190 = vcmp.eq.s32.totalorder %v1174, 1
      %vm1191 = vcmp.eq.s32.totalorder %v1175, 1
      %vm1192 = vcmp.eq.s32.totalorder %v1176, 1
      %vm1193 = vcmp.eq.s32.totalorder %v1177, 1
      %vm1194 = vcmp.eq.s32.totalorder %v1178, 1
      %vm1195 = vcmp.eq.s32.totalorder %v1179, 1
      %vm1196 = vcmp.eq.s32.totalorder %v1180, 1
      %v1197 = vsel %vm1181, %v1103, 0.0
      %v1198 = vsel %vm1182, %v1106, 0.0
      %v1199 = vsel %vm1183, %v1111, 0.0
      %v1200 = vsel %vm1184, %v1114, 0.0
      %v1201 = vsel %vm1185, %v1119, 0.0
      %v1202 = vsel %vm1186, %v1122, 0.0
      %v1203 = vsel %vm1187, %v1127, 0.0
      %v1204 = vsel %vm1188, %v1130, 0.0
      %v1205 = vsel %vm1189, %v1135, 0.0
      %v1206 = vsel %vm1190, %v1138, 0.0
      %v1207 = vsel %vm1191, %v1143, 0.0
      %v1208 = vsel %vm1192, %v1146, 0.0
      %v1209 = vsel %vm1193, %v1151, 0.0
      %v1210 = vsel %vm1194, %v1154, 0.0
      %v1211 = vsel %vm1195, %v1159, 0.0
      %v1212 = vsel %vm1196, %v1162, 0.0
      %v1213 = vadd.f32 %v970, %v1197
      %v1214 = vadd.f32 %v971, %v1198
      %v1215 = vadd.f32 %v972, %v1199
      %v1216 = vadd.f32 %v973, %v1200
      %v1217 = vadd.f32 %v974, %v1201
      %v1218 = vadd.f32 %v975, %v1202
      %v1219 = vadd.f32 %v976, %v1203
      %v1220 = vadd.f32 %v977, %v1204
      %v1221 = vadd.f32 %v978, %v1205
      %v1222 = vadd.f32 %v979, %v1206
      %v1223 = vadd.f32 %v980, %v1207
      %v1224 = vadd.f32 %v981, %v1208
      %v1225 = vadd.f32 %v982, %v1209
      %v1226 = vadd.f32 %v983, %v1210
      %v1227 = vadd.f32 %v984, %v1211
      %v1228 = vadd.f32 %v985, %v1212
      %v1229 = vpack.c.bf16 %v580, %v581
      %v1230 = vpack.c.bf16 %v578, %v579
      %v1231 = vpack.c.bf16 %v576, %v577
      %v1232 = vpack.c.bf16 %v574, %v575
      %v1233 = vpack.c.bf16 %v572, %v573
      %v1234 = vpack.c.bf16 %v570, %v571
      %v1235 = vpack.c.bf16 %v568, %v569
      %v1236 = vpack.c.bf16 %v566, %v567
      %s1237 = scalar_lea.vmem %s1, 48
      %v1238 = vld [vmem:[%s1237] sm:$0xf]
      %v1239 = vld [vmem:[%s1237 + $0x4] sm:$0xf]
      %v1240 = vld [vmem:[%s1237 + $0x8] sm:$0xf]
      %v1241 = vld [vmem:[%s1237 + $0xc] sm:$0xf]
      %v1246 = vunpack.c.l.b16 %v1238
      %v1247 = vunpack.c.l.b16 %v1239
      %v1248 = vunpack.c.l.b16 %v1240
      %v1249 = vunpack.c.l.b16 %v1241
      %v1250 = vpack.c.b16 %v1247, %v1246
      %v1251 = vpack.c.b16 %v1249, %v1248
      %v1255 = vsel %vm606, %v1229, 0
      %v1258 = vsel %vm606, %v1230, 0
      %v1261 = vsel %vm606, %v1231, 0
      %v1264 = vsel %vm606, %v1232, 0
      %v1267 = vsel %vm606, %v1233, 0
      %v1270 = vsel %vm606, %v1234, 0
      %v1273 = vsel %vm606, %v1235, 0
      %v1276 = vsel %vm606, %v1236, 0
      %1278 = vmatprep.subr.bf16.mxu0 0
      %1279 = vmatpush1.bf16.msra.mxu0 %v1250
      %1280 = vmatprep.subr.bf16.mxu0 0
      %1281 = vmatpush1.bf16.msra.mxu0 %v1251
      %1282 = vmatprep.subr.bf16.mxu0 0
      %1283 = vmatpush1.bf16.msra.mxu0 0
      %1284 = vmatprep.subr.bf16.mxu0 0
      %1285 = vmatpush1.bf16.msra.mxu0 0
      %1286 = vmatprep.subr.bf16.mxu0 0
      %1287 = vmatpush1.bf16.msra.mxu0 0
      %1288 = vmatprep.subr.bf16.mxu0 0
      %1289 = vmatpush1.bf16.msra.mxu0 0
      %1290 = vmatprep.subr.bf16.mxu0 0
      %1291 = vmatpush1.bf16.msra.mxu0 0
      %1292 = vmatprep.subr.bf16.mxu0 0
      %1293 = vmatpush1.bf16.msra.mxu0 0
      %1294 = vmatprep.subr.bf16.mxu0 0
      %1295 = vmatpush1.bf16.msra.mxu0 0
      %1296 = vmatprep.subr.bf16.mxu0 0
      %1297 = vmatpush1.bf16.msra.mxu0 0
      %1298 = vmatprep.subr.bf16.mxu0 0
      %1299 = vmatpush1.bf16.msra.mxu0 0
      %1300 = vmatprep.subr.bf16.mxu0 0
      %1301 = vmatpush1.bf16.msra.mxu0 0
      %1302 = vmatprep.subr.bf16.mxu0 0
      %1303 = vmatpush1.bf16.msra.mxu0 0
      %1304 = vmatprep.subr.bf16.mxu0 0
      %1305 = vmatpush1.bf16.msra.mxu0 0
      %1306 = vmatprep.subr.bf16.mxu0 0
      %1307 = vmatpush1.bf16.msra.mxu0 0
      %1308 = vmatprep.subr.bf16.mxu0 0
      %1309 = vmatpush1.bf16.msra.mxu0 0
      %1310 = vmatprep.mubr.bf16.mxu0 0
      %1311 = vmatmul.mubr.bf16.gmra.mrb[0].mxu0 %v1255
      %v1312 = vpop.f32.mrb[0].mxu0
      %v1313 = vadd.f32 0.0, %v1312
      %v1314 = vpop.f32.mrb[0].mxu0
      %v1315 = vpop.f32.mrb[0].mxu0
      %v1316 = vadd.f32 0.0, %v1315
      %v1317 = vpop.f32.mrb[0].mxu0
      %1318 = vmatprep.mubr.bf16.mxu0 0
      %1319 = vmatmul.mubr.bf16.gmra.mrb[0].mxu0 %v1258
      %v1320 = vpop.f32.mrb[0].mxu0
      %v1321 = vadd.f32 0.0, %v1320
      %v1322 = vpop.f32.mrb[0].mxu0
      %v1323 = vpop.f32.mrb[0].mxu0
      %v1324 = vadd.f32 0.0, %v1323
      %v1325 = vpop.f32.mrb[0].mxu0
      %1326 = vmatprep.mubr.bf16.mxu0 0
      %1327 = vmatmul.mubr.bf16.gmra.mrb[0].mxu0 %v1261
      %v1328 = vpop.f32.mrb[0].mxu0
      %v1329 = vadd.f32 0.0, %v1328
      %v1330 = vpop.f32.mrb[0].mxu0
      %v1331 = vpop.f32.mrb[0].mxu0
      %v1332 = vadd.f32 0.0, %v1331
      %v1333 = vpop.f32.mrb[0].mxu0
      %1334 = vmatprep.mubr.bf16.mxu0 0
      %1335 = vmatmul.mubr.bf16.gmra.mrb[0].mxu0 %v1264
      %v1336 = vpop.f32.mrb[0].mxu0
      %v1337 = vadd.f32 0.0, %v1336
      %v1338 = vpop.f32.mrb[0].mxu0
      %v1339 = vpop.f32.mrb[0].mxu0
      %v1340 = vadd.f32 0.0, %v1339
      %v1341 = vpop.f32.mrb[0].mxu0
      %1342 = vmatprep.mubr.bf16.mxu0 0
      %1343 = vmatmul.mubr.bf16.gmra.mrb[0].mxu0 %v1267
      %v1344 = vpop.f32.mrb[0].mxu0
      %v1345 = vadd.f32 0.0, %v1344
      %v1346 = vpop.f32.mrb[0].mxu0
      %v1347 = vpop.f32.mrb[0].mxu0
      %v1348 = vadd.f32 0.0, %v1347
      %v1349 = vpop.f32.mrb[0].mxu0
      %1350 = vmatprep.mubr.bf16.mxu0 0
      %1351 = vmatmul.mubr.bf16.gmra.mrb[0].mxu0 %v1270
      %v1352 = vpop.f32.mrb[0].mxu0
      %v1353 = vadd.f32 0.0, %v1352
      %v1354 = vpop.f32.mrb[0].mxu0
      %v1355 = vpop.f32.mrb[0].mxu0
      %v1356 = vadd.f32 0.0, %v1355
      %v1357 = vpop.f32.mrb[0].mxu0
      %1358 = vmatprep.mubr.bf16.mxu0 0
      %1359 = vmatmul.mubr.bf16.gmra.mrb[0].mxu0 %v1273
      %v1360 = vpop.f32.mrb[0].mxu0
      %v1361 = vadd.f32 0.0, %v1360
      %v1362 = vpop.f32.mrb[0].mxu0
      %v1363 = vpop.f32.mrb[0].mxu0
      %v1364 = vadd.f32 0.0, %v1363
      %v1365 = vpop.f32.mrb[0].mxu0
      %1366 = vmatprep.mubr.bf16.mxu0 0
      %1367 = vmatmul.mubr.bf16.gmra.mrb[0].mxu0 %v1276
      %v1368 = vpop.f32.mrb[0].mxu0
      %v1369 = vadd.f32 0.0, %v1368
      %v1370 = vpop.f32.mrb[0].mxu0
      %v1371 = vpop.f32.mrb[0].mxu0
      %v1372 = vadd.f32 0.0, %v1371
      %v1373 = vpop.f32.mrb[0].mxu0
      %1374 = vdwg.mxu0
      %v1375 = vsel %vm421, 1, 0
      %v1376 = vsel %vm422, 1, 0
      %v1377 = vsel %vm423, 1, 0
      %v1378 = vsel %vm424, 1, 0
      %v1379 = vsel %vm425, 1, 0
      %v1380 = vsel %vm426, 1, 0
      %v1381 = vsel %vm427, 1, 0
      %v1382 = vsel %vm428, 1, 0
      %v1383 = vsel %vm429, 1, 0
      %v1384 = vsel %vm430, 1, 0
      %v1385 = vsel %vm431, 1, 0
      %v1386 = vsel %vm432, 1, 0
      %v1387 = vsel %vm433, 1, 0
      %v1388 = vsel %vm434, 1, 0
      %v1389 = vsel %vm435, 1, 0
      %v1390 = vsel %vm436, 1, 0
      %vm1391 = vcmp.eq.s32.totalorder %v1375, 1
      %vm1392 = vcmp.eq.s32.totalorder %v1376, 1
      %vm1393 = vcmp.eq.s32.totalorder %v1377, 1
      %vm1394 = vcmp.eq.s32.totalorder %v1378, 1
      %vm1395 = vcmp.eq.s32.totalorder %v1379, 1
      %vm1396 = vcmp.eq.s32.totalorder %v1380, 1
      %vm1397 = vcmp.eq.s32.totalorder %v1381, 1
      %vm1398 = vcmp.eq.s32.totalorder %v1382, 1
      %vm1399 = vcmp.eq.s32.totalorder %v1383, 1
      %vm1400 = vcmp.eq.s32.totalorder %v1384, 1
      %vm1401 = vcmp.eq.s32.totalorder %v1385, 1
      %vm1402 = vcmp.eq.s32.totalorder %v1386, 1
      %vm1403 = vcmp.eq.s32.totalorder %v1387, 1
      %vm1404 = vcmp.eq.s32.totalorder %v1388, 1
      %vm1405 = vcmp.eq.s32.totalorder %v1389, 1
      %vm1406 = vcmp.eq.s32.totalorder %v1390, 1
      %v1407 = vsel %vm1391, %v1313, 0.0
      %v1408 = vsel %vm1392, %v1316, 0.0
      %v1409 = vsel %vm1393, %v1321, 0.0
      %v1410 = vsel %vm1394, %v1324, 0.0
      %v1411 = vsel %vm1395, %v1329, 0.0
      %v1412 = vsel %vm1396, %v1332, 0.0
      %v1413 = vsel %vm1397, %v1337, 0.0
      %v1414 = vsel %vm1398, %v1340, 0.0
      %v1415 = vsel %vm1399, %v1345, 0.0
      %v1416 = vsel %vm1400, %v1348, 0.0
      %v1417 = vsel %vm1401, %v1353, 0.0
      %v1418 = vsel %vm1402, %v1356, 0.0
      %v1419 = vsel %vm1403, %v1361, 0.0
      %v1420 = vsel %vm1404, %v1364, 0.0
      %v1421 = vsel %vm1405, %v1369, 0.0
      %v1422 = vsel %vm1406, %v1372, 0.0
      %v1423 = vadd.f32 %v1213, %v1407
      %v1424 = vadd.f32 %v1214, %v1408
      %v1425 = vadd.f32 %v1215, %v1409
      %v1426 = vadd.f32 %v1216, %v1410
      %v1427 = vadd.f32 %v1217, %v1411
      %v1428 = vadd.f32 %v1218, %v1412
      %v1429 = vadd.f32 %v1219, %v1413
      %v1430 = vadd.f32 %v1220, %v1414
      %v1431 = vadd.f32 %v1221, %v1415
      %v1432 = vadd.f32 %v1222, %v1416
      %v1433 = vadd.f32 %v1223, %v1417
      %v1434 = vadd.f32 %v1224, %v1418
      %v1435 = vadd.f32 %v1225, %v1419
      %v1436 = vadd.f32 %v1226, %v1420
      %v1437 = vadd.f32 %v1227, %v1421
      %v1438 = vadd.f32 %v1228, %v1422
      %v1439 = vpack.c.bf16 %v534, %v533
      %v1440 = vpack.c.bf16 %v536, %v535
      %v1441 = vpack.c.bf16 %v538, %v537
      %v1442 = vpack.c.bf16 %v540, %v539
      %v1443 = vpack.c.bf16 %v542, %v541
      %v1444 = vpack.c.bf16 %v544, %v543
      %v1445 = vpack.c.bf16 %v546, %v545
      %v1446 = vpack.c.bf16 %v548, %v547
      %s1447 = scalar_lea.vmem %s1, 64
      %v1448 = vld [vmem:[%s1447] sm:$0xf]
      %v1449 = vld [vmem:[%s1447 + $0x4] sm:$0xf]
      %v1450 = vld [vmem:[%s1447 + $0x8] sm:$0xf]
      %v1451 = vld [vmem:[%s1447 + $0xc] sm:$0xf]
      %v1456 = vunpack.c.l.b16 %v1448
      %v1457 = vunpack.c.l.b16 %v1449
      %v1458 = vunpack.c.l.b16 %v1450
      %v1459 = vunpack.c.l.b16 %v1451
      %v1460 = vpack.c.b16 %v1457, %v1456
      %v1461 = vpack.c.b16 %v1459, %v1458
      %v1465 = vsel %vm606, %v1439, 0
      %v1468 = vsel %vm606, %v1440, 0
      %v1471 = vsel %vm606, %v1441, 0
      %v1474 = vsel %vm606, %v1442, 0
      %v1477 = vsel %vm606, %v1443, 0
      %v1480 = vsel %vm606, %v1444, 0
      %v1483 = vsel %vm606, %v1445, 0
      %v1486 = vsel %vm606, %v1446, 0
      %1488 = vmatprep.subr.bf16.mxu0 0
      %1489 = vmatpush1.bf16.msra.mxu0 %v1460
      %1490 = vmatprep.subr.bf16.mxu0 0
      %1491 = vmatpush1.bf16.msra.mxu0 %v1461
      %1492 = vmatprep.subr.bf16.mxu0 0
      %1493 = vmatpush1.bf16.msra.mxu0 0
      %1494 = vmatprep.subr.bf16.mxu0 0
      %1495 = vmatpush1.bf16.msra.mxu0 0
      %1496 = vmatprep.subr.bf16.mxu0 0
      %1497 = vmatpush1.bf16.msra.mxu0 0
      %1498 = vmatprep.subr.bf16.mxu0 0
      %1499 = vmatpush1.bf16.msra.mxu0 0
      %1500 = vmatprep.subr.bf16.mxu0 0
      %1501 = vmatpush1.bf16.msra.mxu0 0
      %1502 = vmatprep.subr.bf16.mxu0 0
      %1503 = vmatpush1.bf16.msra.mxu0 0
      %1504 = vmatprep.subr.bf16.mxu0 0
      %1505 = vmatpush1.bf16.msra.mxu0 0
      %1506 = vmatprep.subr.bf16.mxu0 0
      %1507 = vmatpush1.bf16.msra.mxu0 0
      %1508 = vmatprep.subr.bf16.mxu0 0
      %1509 = vmatpush1.bf16.msra.mxu0 0
      %1510 = vmatprep.subr.bf16.mxu0 0
      %1511 = vmatpush1.bf16.msra.mxu0 0
      %1512 = vmatprep.subr.bf16.mxu0 0
      %1513 = vmatpush1.bf16.msra.mxu0 0
      %1514 = vmatprep.subr.bf16.mxu0 0
      %1515 = vmatpush1.bf16.msra.mxu0 0
      %1516 = vmatprep.subr.bf16.mxu0 0
      %1517 = vmatpush1.bf16.msra.mxu0 0
      %1518 = vmatprep.subr.bf16.mxu0 0
      %1519 = vmatpush1.bf16.msra.mxu0 0
      %1520 = vmatprep.mubr.bf16.mxu0 0
      %1521 = vmatmul.mubr.bf16.gmra.mrb[0].mxu0 %v1465
      %v1522 = vpop.f32.mrb[0].mxu0
      %v1523 = vadd.f32 0.0, %v1522
      %v1524 = vpop.f32.mrb[0].mxu0
      %v1525 = vpop.f32.mrb[0].mxu0
      %v1526 = vadd.f32 0.0, %v1525
      %v1527 = vpop.f32.mrb[0].mxu0
      %1528 = vmatprep.mubr.bf16.mxu0 0
      %1529 = vmatmul.mubr.bf16.gmra.mrb[0].mxu0 %v1468
      %v1530 = vpop.f32.mrb[0].mxu0
      %v1531 = vadd.f32 0.0, %v1530
      %v1532 = vpop.f32.mrb[0].mxu0
      %v1533 = vpop.f32.mrb[0].mxu0
      %v1534 = vadd.f32 0.0, %v1533
      %v1535 = vpop.f32.mrb[0].mxu0
      %1536 = vmatprep.mubr.bf16.mxu0 0
      %1537 = vmatmul.mubr.bf16.gmra.mrb[0].mxu0 %v1471
      %v1538 = vpop.f32.mrb[0].mxu0
      %v1539 = vadd.f32 0.0, %v1538
      %v1540 = vpop.f32.mrb[0].mxu0
      %v1541 = vpop.f32.mrb[0].mxu0
      %v1542 = vadd.f32 0.0, %v1541
      %v1543 = vpop.f32.mrb[0].mxu0
      %1544 = vmatprep.mubr.bf16.mxu0 0
      %1545 = vmatmul.mubr.bf16.gmra.mrb[0].mxu0 %v1474
      %v1546 = vpop.f32.mrb[0].mxu0
      %v1547 = vadd.f32 0.0, %v1546
      %v1548 = vpop.f32.mrb[0].mxu0
      %v1549 = vpop.f32.mrb[0].mxu0
      %v1550 = vadd.f32 0.0, %v1549
      %v1551 = vpop.f32.mrb[0].mxu0
      %1552 = vmatprep.mubr.bf16.mxu0 0
      %1553 = vmatmul.mubr.bf16.gmra.mrb[0].mxu0 %v1477
      %v1554 = vpop.f32.mrb[0].mxu0
      %v1555 = vadd.f32 0.0, %v1554
      %v1556 = vpop.f32.mrb[0].mxu0
      %v1557 = vpop.f32.mrb[0].mxu0
      %v1558 = vadd.f32 0.0, %v1557
      %v1559 = vpop.f32.mrb[0].mxu0
      %1560 = vmatprep.mubr.bf16.mxu0 0
      %1561 = vmatmul.mubr.bf16.gmra.mrb[0].mxu0 %v1480
      %v1562 = vpop.f32.mrb[0].mxu0
      %v1563 = vadd.f32 0.0, %v1562
      %v1564 = vpop.f32.mrb[0].mxu0
      %v1565 = vpop.f32.mrb[0].mxu0
      %v1566 = vadd.f32 0.0, %v1565
      %v1567 = vpop.f32.mrb[0].mxu0
      %1568 = vmatprep.mubr.bf16.mxu0 0
      %1569 = vmatmul.mubr.bf16.gmra.mrb[0].mxu0 %v1483
      %v1570 = vpop.f32.mrb[0].mxu0
      %v1571 = vadd.f32 0.0, %v1570
      %v1572 = vpop.f32.mrb[0].mxu0
      %v1573 = vpop.f32.mrb[0].mxu0
      %v1574 = vadd.f32 0.0, %v1573
      %v1575 = vpop.f32.mrb[0].mxu0
      %1576 = vmatprep.mubr.bf16.mxu0 0
      %1577 = vmatmul.mubr.bf16.gmra.mrb[0].mxu0 %v1486
      %v1578 = vpop.f32.mrb[0].mxu0
      %v1579 = vadd.f32 0.0, %v1578
      %v1580 = vpop.f32.mrb[0].mxu0
      %v1581 = vpop.f32.mrb[0].mxu0
      %v1582 = vadd.f32 0.0, %v1581
      %v1583 = vpop.f32.mrb[0].mxu0
      %1584 = vdwg.mxu0
      %v1585 = vadd.f32 %v1423, %v1523
      %v1586 = vadd.f32 %v1424, %v1526
      %v1587 = vadd.f32 %v1425, %v1531
      %v1588 = vadd.f32 %v1426, %v1534
      %v1589 = vadd.f32 %v1427, %v1539
      %v1590 = vadd.f32 %v1428, %v1542
      %v1591 = vadd.f32 %v1429, %v1547
      %v1592 = vadd.f32 %v1430, %v1550
      %v1593 = vadd.f32 %v1431, %v1555
      %v1594 = vadd.f32 %v1432, %v1558
      %v1595 = vadd.f32 %v1433, %v1563
      %v1596 = vadd.f32 %v1434, %v1566
      %v1597 = vadd.f32 %v1435, %v1571
      %v1598 = vadd.f32 %v1436, %v1574
      %v1599 = vadd.f32 %v1437, %v1579
      %v1600 = vadd.f32 %v1438, %v1582
      %v1601 = vpack.c.bf16 %v1016, %v1017
      %v1602 = vpack.c.bf16 %v1014, %v1015
      %v1603 = vpack.c.bf16 %v1012, %v1013
      %v1604 = vpack.c.bf16 %v1010, %v1011
      %v1605 = vpack.c.bf16 %v1008, %v1009
      %v1606 = vpack.c.bf16 %v1006, %v1007
      %v1607 = vpack.c.bf16 %v1004, %v1005
      %v1608 = vpack.c.bf16 %v1018, %v1003
      %s1609 = scalar_lea.vmem %s1, 80
      %v1610 = vld [vmem:[%s1609] sm:$0xf]
      %v1611 = vld [vmem:[%s1609 + $0x4] sm:$0xf]
      %v1612 = vld [vmem:[%s1609 + $0x8] sm:$0xf]
      %v1613 = vld [vmem:[%s1609 + $0xc] sm:$0xf]
      %v1618 = vunpack.c.l.b16 %v1610
      %v1619 = vunpack.c.l.b16 %v1611
      %v1620 = vunpack.c.l.b16 %v1612
      %v1621 = vunpack.c.l.b16 %v1613
      %v1622 = vpack.c.b16 %v1619, %v1618
      %v1623 = vpack.c.b16 %v1621, %v1620
      %v1627 = vsel %vm606, %v1601, 0
      %v1630 = vsel %vm606, %v1602, 0
      %v1633 = vsel %vm606, %v1603, 0
      %v1636 = vsel %vm606, %v1604, 0
      %v1639 = vsel %vm606, %v1605, 0
      %v1642 = vsel %vm606, %v1606, 0
      %v1645 = vsel %vm606, %v1607, 0
      %v1648 = vsel %vm606, %v1608, 0
      %1650 = vmatprep.subr.bf16.mxu0 0
      %1651 = vmatpush1.bf16.msra.mxu0 %v1622
      %1652 = vmatprep.subr.bf16.mxu0 0
      %1653 = vmatpush1.bf16.msra.mxu0 %v1623
      %1654 = vmatprep.subr.bf16.mxu0 0
      %1655 = vmatpush1.bf16.msra.mxu0 0
      %1656 = vmatprep.subr.bf16.mxu0 0
      %1657 = vmatpush1.bf16.msra.mxu0 0
      %1658 = vmatprep.subr.bf16.mxu0 0
      %1659 = vmatpush1.bf16.msra.mxu0 0
      %1660 = vmatprep.subr.bf16.mxu0 0
      %1661 = vmatpush1.bf16.msra.mxu0 0
      %1662 = vmatprep.subr.bf16.mxu0 0
      %1663 = vmatpush1.bf16.msra.mxu0 0
      %1664 = vmatprep.subr.bf16.mxu0 0
      %1665 = vmatpush1.bf16.msra.mxu0 0
      %1666 = vmatprep.subr.bf16.mxu0 0
      %1667 = vmatpush1.bf16.msra.mxu0 0
      %1668 = vmatprep.subr.bf16.mxu0 0
      %1669 = vmatpush1.bf16.msra.mxu0 0
      %1670 = vmatprep.subr.bf16.mxu0 0
      %1671 = vmatpush1.bf16.msra.mxu0 0
      %1672 = vmatprep.subr.bf16.mxu0 0
      %1673 = vmatpush1.bf16.msra.mxu0 0
      %1674 = vmatprep.subr.bf16.mxu0 0
      %1675 = vmatpush1.bf16.msra.mxu0 0
      %1676 = vmatprep.subr.bf16.mxu0 0
      %1677 = vmatpush1.bf16.msra.mxu0 0
      %1678 = vmatprep.subr.bf16.mxu0 0
      %1679 = vmatpush1.bf16.msra.mxu0 0
      %1680 = vmatprep.subr.bf16.mxu0 0
      %1681 = vmatpush1.bf16.msra.mxu0 0
      %1682 = vmatprep.mubr.bf16.mxu0 0
      %1683 = vmatmul.mubr.bf16.gmra.mrb[0].mxu0 %v1627
      %v1684 = vpop.f32.mrb[0].mxu0
      %v1685 = vadd.f32 0.0, %v1684
      %v1686 = vpop.f32.mrb[0].mxu0
      %v1687 = vpop.f32.mrb[0].mxu0
      %v1688 = vadd.f32 0.0, %v1687
      %v1689 = vpop.f32.mrb[0].mxu0
      %1690 = vmatprep.mubr.bf16.mxu0 0
      %1691 = vmatmul.mubr.bf16.gmra.mrb[0].mxu0 %v1630
      %v1692 = vpop.f32.mrb[0].mxu0
      %v1693 = vadd.f32 0.0, %v1692
      %v1694 = vpop.f32.mrb[0].mxu0
      %v1695 = vpop.f32.mrb[0].mxu0
      %v1696 = vadd.f32 0.0, %v1695
      %v1697 = vpop.f32.mrb[0].mxu0
      %1698 = vmatprep.mubr.bf16.mxu0 0
      %1699 = vmatmul.mubr.bf16.gmra.mrb[0].mxu0 %v1633
      %v1700 = vpop.f32.mrb[0].mxu0
      %v1701 = vadd.f32 0.0, %v1700
      %v1702 = vpop.f32.mrb[0].mxu0
      %v1703 = vpop.f32.mrb[0].mxu0
      %v1704 = vadd.f32 0.0, %v1703
      %v1705 = vpop.f32.mrb[0].mxu0
      %1706 = vmatprep.mubr.bf16.mxu0 0
      %1707 = vmatmul.mubr.bf16.gmra.mrb[0].mxu0 %v1636
      %v1708 = vpop.f32.mrb[0].mxu0
      %v1709 = vadd.f32 0.0, %v1708
      %v1710 = vpop.f32.mrb[0].mxu0
      %v1711 = vpop.f32.mrb[0].mxu0
      %v1712 = vadd.f32 0.0, %v1711
      %v1713 = vpop.f32.mrb[0].mxu0
      %1714 = vmatprep.mubr.bf16.mxu0 0
      %1715 = vmatmul.mubr.bf16.gmra.mrb[0].mxu0 %v1639
      %v1716 = vpop.f32.mrb[0].mxu0
      %v1717 = vadd.f32 0.0, %v1716
      %v1718 = vpop.f32.mrb[0].mxu0
      %v1719 = vpop.f32.mrb[0].mxu0
      %v1720 = vadd.f32 0.0, %v1719
      %v1721 = vpop.f32.mrb[0].mxu0
      %1722 = vmatprep.mubr.bf16.mxu0 0
      %1723 = vmatmul.mubr.bf16.gmra.mrb[0].mxu0 %v1642
      %v1724 = vpop.f32.mrb[0].mxu0
      %v1725 = vadd.f32 0.0, %v1724
      %v1726 = vpop.f32.mrb[0].mxu0
      %v1727 = vpop.f32.mrb[0].mxu0
      %v1728 = vadd.f32 0.0, %v1727
      %v1729 = vpop.f32.mrb[0].mxu0
      %1730 = vmatprep.mubr.bf16.mxu0 0
      %1731 = vmatmul.mubr.bf16.gmra.mrb[0].mxu0 %v1645
      %v1732 = vpop.f32.mrb[0].mxu0
      %v1733 = vadd.f32 0.0, %v1732
      %v1734 = vpop.f32.mrb[0].mxu0
      %v1735 = vpop.f32.mrb[0].mxu0
      %v1736 = vadd.f32 0.0, %v1735
      %v1737 = vpop.f32.mrb[0].mxu0
      %1738 = vmatprep.mubr.bf16.mxu0 0
      %1739 = vmatmul.mubr.bf16.gmra.mrb[0].mxu0 %v1648
      %v1740 = vpop.f32.mrb[0].mxu0
      %v1741 = vadd.f32 0.0, %v1740
      %v1742 = vpop.f32.mrb[0].mxu0
      %v1743 = vpop.f32.mrb[0].mxu0
      %v1744 = vadd.f32 0.0, %v1743
      %v1745 = vpop.f32.mrb[0].mxu0
      %1746 = vdwg.mxu0
      %v1747 = vsel %vm453, 1, 0
      %v1748 = vsel %vm454, 1, 0
      %v1749 = vsel %vm455, 1, 0
      %v1750 = vsel %vm456, 1, 0
      %v1751 = vsel %vm457, 1, 0
      %v1752 = vsel %vm458, 1, 0
      %v1753 = vsel %vm459, 1, 0
      %v1754 = vsel %vm460, 1, 0
      %v1755 = vsel %vm461, 1, 0
      %v1756 = vsel %vm462, 1, 0
      %v1757 = vsel %vm463, 1, 0
      %v1758 = vsel %vm464, 1, 0
      %v1759 = vsel %vm465, 1, 0
      %v1760 = vsel %vm466, 1, 0
      %v1761 = vsel %vm467, 1, 0
      %v1762 = vsel %vm468, 1, 0
      %vm1763 = vcmp.eq.s32.totalorder %v1747, 1
      %vm1764 = vcmp.eq.s32.totalorder %v1748, 1
      %vm1765 = vcmp.eq.s32.totalorder %v1749, 1
      %vm1766 = vcmp.eq.s32.totalorder %v1750, 1
      %vm1767 = vcmp.eq.s32.totalorder %v1751, 1
      %vm1768 = vcmp.eq.s32.totalorder %v1752, 1
      %vm1769 = vcmp.eq.s32.totalorder %v1753, 1
      %vm1770 = vcmp.eq.s32.totalorder %v1754, 1
      %vm1771 = vcmp.eq.s32.totalorder %v1755, 1
      %vm1772 = vcmp.eq.s32.totalorder %v1756, 1
      %vm1773 = vcmp.eq.s32.totalorder %v1757, 1
      %vm1774 = vcmp.eq.s32.totalorder %v1758, 1
      %vm1775 = vcmp.eq.s32.totalorder %v1759, 1
      %vm1776 = vcmp.eq.s32.totalorder %v1760, 1
      %vm1777 = vcmp.eq.s32.totalorder %v1761, 1
      %vm1778 = vcmp.eq.s32.totalorder %v1762, 1
      %v1779 = vsel %vm1763, %v1685, 0.0
      %v1780 = vsel %vm1764, %v1688, 0.0
      %v1781 = vsel %vm1765, %v1693, 0.0
      %v1782 = vsel %vm1766, %v1696, 0.0
      %v1783 = vsel %vm1767, %v1701, 0.0
      %v1784 = vsel %vm1768, %v1704, 0.0
      %v1785 = vsel %vm1769, %v1709, 0.0
      %v1786 = vsel %vm1770, %v1712, 0.0
      %v1787 = vsel %vm1771, %v1717, 0.0
      %v1788 = vsel %vm1772, %v1720, 0.0
      %v1789 = vsel %vm1773, %v1725, 0.0
      %v1790 = vsel %vm1774, %v1728, 0.0
      %v1791 = vsel %vm1775, %v1733, 0.0
      %v1792 = vsel %vm1776, %v1736, 0.0
      %v1793 = vsel %vm1777, %v1741, 0.0
      %v1794 = vsel %vm1778, %v1744, 0.0
      %v1795 = vadd.f32 %v1585, %v1779
      %v1796 = vadd.f32 %v1586, %v1780
      %v1797 = vadd.f32 %v1587, %v1781
      %v1798 = vadd.f32 %v1588, %v1782
      %v1799 = vadd.f32 %v1589, %v1783
      %v1800 = vadd.f32 %v1590, %v1784
      %v1801 = vadd.f32 %v1591, %v1785
      %v1802 = vadd.f32 %v1592, %v1786
      %v1803 = vadd.f32 %v1593, %v1787
      %v1804 = vadd.f32 %v1594, %v1788
      %v1805 = vadd.f32 %v1595, %v1789
      %v1806 = vadd.f32 %v1596, %v1790
      %v1807 = vadd.f32 %v1597, %v1791
      %v1808 = vadd.f32 %v1598, %v1792
      %v1809 = vadd.f32 %v1599, %v1793
      %v1810 = vadd.f32 %v1600, %v1794
      %s1811 = scalar_lea.vmem %s1, 96
      %v1812 = vld [vmem:[%s1811] sm:$0xf]
      %v1813 = vld [vmem:[%s1811 + $0x4] sm:$0xf]
      %v1814 = vld [vmem:[%s1811 + $0x8] sm:$0xf]
      %v1815 = vld [vmem:[%s1811 + $0xc] sm:$0xf]
      %v1820 = vunpack.c.l.b16 %v1812
      %v1821 = vunpack.c.l.b16 %v1813
      %v1822 = vunpack.c.l.b16 %v1814
      %v1823 = vunpack.c.l.b16 %v1815
      %v1824 = vpack.c.b16 %v1821, %v1820
      %v1825 = vpack.c.b16 %v1823, %v1822
      %1828 = vmatprep.subr.bf16.mxu0 0
      %1829 = vmatpush1.bf16.msra.mxu0 %v1824
      %1830 = vmatprep.subr.bf16.mxu0 0
      %1831 = vmatpush1.bf16.msra.mxu0 %v1825
      %1832 = vmatprep.subr.bf16.mxu0 0
      %1833 = vmatpush1.bf16.msra.mxu0 0
      %1834 = vmatprep.subr.bf16.mxu0 0
      %1835 = vmatpush1.bf16.msra.mxu0 0
      %1836 = vmatprep.subr.bf16.mxu0 0
      %1837 = vmatpush1.bf16.msra.mxu0 0
      %1838 = vmatprep.subr.bf16.mxu0 0
      %1839 = vmatpush1.bf16.msra.mxu0 0
      %1840 = vmatprep.subr.bf16.mxu0 0
      %1841 = vmatpush1.bf16.msra.mxu0 0
      %1842 = vmatprep.subr.bf16.mxu0 0
      %1843 = vmatpush1.bf16.msra.mxu0 0
      %1844 = vmatprep.subr.bf16.mxu0 0
      %1845 = vmatpush1.bf16.msra.mxu0 0
      %1846 = vmatprep.subr.bf16.mxu0 0
      %1847 = vmatpush1.bf16.msra.mxu0 0
      %1848 = vmatprep.subr.bf16.mxu0 0
      %1849 = vmatpush1.bf16.msra.mxu0 0
      %1850 = vmatprep.subr.bf16.mxu0 0
      %1851 = vmatpush1.bf16.msra.mxu0 0
      %1852 = vmatprep.subr.bf16.mxu0 0
      %1853 = vmatpush1.bf16.msra.mxu0 0
      %1854 = vmatprep.subr.bf16.mxu0 0
      %1855 = vmatpush1.bf16.msra.mxu0 0
      %1856 = vmatprep.subr.bf16.mxu0 0
      %1857 = vmatpush1.bf16.msra.mxu0 0
      %1858 = vmatprep.subr.bf16.mxu0 0
      %1859 = vmatpush1.bf16.msra.mxu0 0
      %1860 = vmatprep.mubr.bf16.mxu0 0
      %1861 = vmatmul.mubr.bf16.gmra.mrb[0].mxu0 %v611
      %v1862 = vpop.f32.mrb[0].mxu0
      %v1863 = vadd.f32 0.0, %v1862
      %v1864 = vpop.f32.mrb[0].mxu0
      %v1865 = vpop.f32.mrb[0].mxu0
      %v1866 = vadd.f32 0.0, %v1865
      %v1867 = vpop.f32.mrb[0].mxu0
      %1868 = vmatprep.mubr.bf16.mxu0 0
      %1869 = vmatmul.mubr.bf16.gmra.mrb[0].mxu0 %v614
      %v1870 = vpop.f32.mrb[0].mxu0
      %v1871 = vadd.f32 0.0, %v1870
      %v1872 = vpop.f32.mrb[0].mxu0
      %v1873 = vpop.f32.mrb[0].mxu0
      %v1874 = vadd.f32 0.0, %v1873
      %v1875 = vpop.f32.mrb[0].mxu0
      %1876 = vmatprep.mubr.bf16.mxu0 0
      %1877 = vmatmul.mubr.bf16.gmra.mrb[0].mxu0 %v617
      %v1878 = vpop.f32.mrb[0].mxu0
      %v1879 = vadd.f32 0.0, %v1878
      %v1880 = vpop.f32.mrb[0].mxu0
      %v1881 = vpop.f32.mrb[0].mxu0
      %v1882 = vadd.f32 0.0, %v1881
      %v1883 = vpop.f32.mrb[0].mxu0
      %1884 = vmatprep.mubr.bf16.mxu0 0
      %1885 = vmatmul.mubr.bf16.gmra.mrb[0].mxu0 %v620
      %v1886 = vpop.f32.mrb[0].mxu0
      %v1887 = vadd.f32 0.0, %v1886
      %v1888 = vpop.f32.mrb[0].mxu0
      %v1889 = vpop.f32.mrb[0].mxu0
      %v1890 = vadd.f32 0.0, %v1889
      %v1891 = vpop.f32.mrb[0].mxu0
      %1892 = vmatprep.mubr.bf16.mxu0 0
      %1893 = vmatmul.mubr.bf16.gmra.mrb[0].mxu0 %v623
      %v1894 = vpop.f32.mrb[0].mxu0
      %v1895 = vadd.f32 0.0, %v1894
      %v1896 = vpop.f32.mrb[0].mxu0
      %v1897 = vpop.f32.mrb[0].mxu0
      %v1898 = vadd.f32 0.0, %v1897
      %v1899 = vpop.f32.mrb[0].mxu0
      %1900 = vmatprep.mubr.bf16.mxu0 0
      %1901 = vmatmul.mubr.bf16.gmra.mrb[0].mxu0 %v626
      %v1902 = vpop.f32.mrb[0].mxu0
      %v1903 = vadd.f32 0.0, %v1902
      %v1904 = vpop.f32.mrb[0].mxu0
      %v1905 = vpop.f32.mrb[0].mxu0
      %v1906 = vadd.f32 0.0, %v1905
      %v1907 = vpop.f32.mrb[0].mxu0
      %1908 = vmatprep.mubr.bf16.mxu0 0
      %1909 = vmatmul.mubr.bf16.gmra.mrb[0].mxu0 %v629
      %v1910 = vpop.f32.mrb[0].mxu0
      %v1911 = vadd.f32 0.0, %v1910
      %v1912 = vpop.f32.mrb[0].mxu0
      %v1913 = vpop.f32.mrb[0].mxu0
      %v1914 = vadd.f32 0.0, %v1913
      %v1915 = vpop.f32.mrb[0].mxu0
      %1916 = vmatprep.mubr.bf16.mxu0 0
      %1917 = vmatmul.mubr.bf16.gmra.mrb[0].mxu0 %v608
      %v1918 = vpop.f32.mrb[0].mxu0
      %v1919 = vadd.f32 0.0, %v1918
      %v1920 = vpop.f32.mrb[0].mxu0
      %v1921 = vpop.f32.mrb[0].mxu0
      %v1922 = vadd.f32 0.0, %v1921
      %v1923 = vpop.f32.mrb[0].mxu0
      %1924 = vdwg.mxu0
      %v1925 = vsel %vm501, 1, 0
      %v1926 = vsel %vm502, 1, 0
      %v1927 = vsel %vm503, 1, 0
      %v1928 = vsel %vm504, 1, 0
      %v1929 = vsel %vm505, 1, 0
      %v1930 = vsel %vm506, 1, 0
      %v1931 = vsel %vm507, 1, 0
      %v1932 = vsel %vm508, 1, 0
      %v1933 = vsel %vm509, 1, 0
      %v1934 = vsel %vm510, 1, 0
      %v1935 = vsel %vm511, 1, 0
      %v1936 = vsel %vm512, 1, 0
      %v1937 = vsel %vm513, 1, 0
      %v1938 = vsel %vm514, 1, 0
      %v1939 = vsel %vm515, 1, 0
      %v1940 = vsel %vm516, 1, 0
      %vm1941 = vcmp.eq.s32.totalorder %v1925, 1
      %vm1942 = vcmp.eq.s32.totalorder %v1926, 1
      %vm1943 = vcmp.eq.s32.totalorder %v1927, 1
      %vm1944 = vcmp.eq.s32.totalorder %v1928, 1
      %vm1945 = vcmp.eq.s32.totalorder %v1929, 1
      %vm1946 = vcmp.eq.s32.totalorder %v1930, 1
      %vm1947 = vcmp.eq.s32.totalorder %v1931, 1
      %vm1948 = vcmp.eq.s32.totalorder %v1932, 1
      %vm1949 = vcmp.eq.s32.totalorder %v1933, 1
      %vm1950 = vcmp.eq.s32.totalorder %v1934, 1
      %vm1951 = vcmp.eq.s32.totalorder %v1935, 1
      %vm1952 = vcmp.eq.s32.totalorder %v1936, 1
      %vm1953 = vcmp.eq.s32.totalorder %v1937, 1
      %vm1954 = vcmp.eq.s32.totalorder %v1938, 1
      %vm1955 = vcmp.eq.s32.totalorder %v1939, 1
      %vm1956 = vcmp.eq.s32.totalorder %v1940, 1
      %v1957 = vsel %vm1941, %v1863, 0.0
      %v1958 = vsel %vm1942, %v1866, 0.0
      %v1959 = vsel %vm1943, %v1871, 0.0
      %v1960 = vsel %vm1944, %v1874, 0.0
      %v1961 = vsel %vm1945, %v1879, 0.0
      %v1962 = vsel %vm1946, %v1882, 0.0
      %v1963 = vsel %vm1947, %v1887, 0.0
      %v1964 = vsel %vm1948, %v1890, 0.0
      %v1965 = vsel %vm1949, %v1895, 0.0
      %v1966 = vsel %vm1950, %v1898, 0.0
      %v1967 = vsel %vm1951, %v1903, 0.0
      %v1968 = vsel %vm1952, %v1906, 0.0
      %v1969 = vsel %vm1953, %v1911, 0.0
      %v1970 = vsel %vm1954, %v1914, 0.0
      %v1971 = vsel %vm1955, %v1919, 0.0
      %v1972 = vsel %vm1956, %v1922, 0.0
      %v1973 = vadd.f32 %v1795, %v1957
      %v1974 = vadd.f32 %v1796, %v1958
      %v1975 = vadd.f32 %v1797, %v1959
      %v1976 = vadd.f32 %v1798, %v1960
      %v1977 = vadd.f32 %v1799, %v1961
      %v1978 = vadd.f32 %v1800, %v1962
      %v1979 = vadd.f32 %v1801, %v1963
      %v1980 = vadd.f32 %v1802, %v1964
      %v1981 = vadd.f32 %v1803, %v1965
      %v1982 = vadd.f32 %v1804, %v1966
      %v1983 = vadd.f32 %v1805, %v1967
      %v1984 = vadd.f32 %v1806, %v1968
      %v1985 = vadd.f32 %v1807, %v1969
      %v1986 = vadd.f32 %v1808, %v1970
      %v1987 = vadd.f32 %v1809, %v1971
      %v1988 = vadd.f32 %v1810, %v1972
      %s1989 = scalar_lea.vmem %s1, 112
      %v1990 = vld [vmem:[%s1989] sm:$0xf]
      %v1991 = vld [vmem:[%s1989 + $0x4] sm:$0xf]
      %v1992 = vld [vmem:[%s1989 + $0x8] sm:$0xf]
      %v1993 = vld [vmem:[%s1989 + $0xc] sm:$0xf]
      %v1998 = vunpack.c.l.b16 %v1990
      %v1999 = vunpack.c.l.b16 %v1991
      %v2000 = vunpack.c.l.b16 %v1992
      %v2001 = vunpack.c.l.b16 %v1993
      %v2002 = vpack.c.b16 %v1999, %v1998
      %v2003 = vpack.c.b16 %v2001, %v2000
      %2006 = vmatprep.subr.bf16.mxu0 0
      %2007 = vmatpush1.bf16.msra.mxu0 %v2002
      %2008 = vmatprep.subr.bf16.mxu0 0
      %2009 = vmatpush1.bf16.msra.mxu0 %v2003
      %2010 = vmatprep.subr.bf16.mxu0 0
      %2011 = vmatpush1.bf16.msra.mxu0 0
      %2012 = vmatprep.subr.bf16.mxu0 0
      %2013 = vmatpush1.bf16.msra.mxu0 0
      %2014 = vmatprep.subr.bf16.mxu0 0
      %2015 = vmatpush1.bf16.msra.mxu0 0
      %2016 = vmatprep.subr.bf16.mxu0 0
      %2017 = vmatpush1.bf16.msra.mxu0 0
      %2018 = vmatprep.subr.bf16.mxu0 0
      %2019 = vmatpush1.bf16.msra.mxu0 0
      %2020 = vmatprep.subr.bf16.mxu0 0
      %2021 = vmatpush1.bf16.msra.mxu0 0
      %2022 = vmatprep.subr.bf16.mxu0 0
      %2023 = vmatpush1.bf16.msra.mxu0 0
      %2024 = vmatprep.subr.bf16.mxu0 0
      %2025 = vmatpush1.bf16.msra.mxu0 0
      %2026 = vmatprep.subr.bf16.mxu0 0
      %2027 = vmatpush1.bf16.msra.mxu0 0
      %2028 = vmatprep.subr.bf16.mxu0 0
      %2029 = vmatpush1.bf16.msra.mxu0 0
      %2030 = vmatprep.subr.bf16.mxu0 0
      %2031 = vmatpush1.bf16.msra.mxu0 0
      %2032 = vmatprep.subr.bf16.mxu0 0
      %2033 = vmatpush1.bf16.msra.mxu0 0
      %2034 = vmatprep.subr.bf16.mxu0 0
      %2035 = vmatpush1.bf16.msra.mxu0 0
      %2036 = vmatprep.subr.bf16.mxu0 0
      %2037 = vmatpush1.bf16.msra.mxu0 0
      %2038 = vmatprep.mubr.bf16.mxu0 0
      %2039 = vmatmul.mubr.bf16.gmra.mrb[0].mxu0 %v805
      %v2040 = vpop.f32.mrb[0].mxu0
      %v2041 = vadd.f32 0.0, %v2040
      %v2042 = vpop.f32.mrb[0].mxu0
      %v2043 = vpop.f32.mrb[0].mxu0
      %v2044 = vadd.f32 0.0, %v2043
      %v2045 = vpop.f32.mrb[0].mxu0
      %2046 = vmatprep.mubr.bf16.mxu0 0
      %2047 = vmatmul.mubr.bf16.gmra.mrb[0].mxu0 %v808
      %v2048 = vpop.f32.mrb[0].mxu0
      %v2049 = vadd.f32 0.0, %v2048
      %v2050 = vpop.f32.mrb[0].mxu0
      %v2051 = vpop.f32.mrb[0].mxu0
      %v2052 = vadd.f32 0.0, %v2051
      %v2053 = vpop.f32.mrb[0].mxu0
      %2054 = vmatprep.mubr.bf16.mxu0 0
      %2055 = vmatmul.mubr.bf16.gmra.mrb[0].mxu0 %v811
      %v2056 = vpop.f32.mrb[0].mxu0
      %v2057 = vadd.f32 0.0, %v2056
      %v2058 = vpop.f32.mrb[0].mxu0
      %v2059 = vpop.f32.mrb[0].mxu0
      %v2060 = vadd.f32 0.0, %v2059
      %v2061 = vpop.f32.mrb[0].mxu0
      %2062 = vmatprep.mubr.bf16.mxu0 0
      %2063 = vmatmul.mubr.bf16.gmra.mrb[0].mxu0 %v814
      %v2064 = vpop.f32.mrb[0].mxu0
      %v2065 = vadd.f32 0.0, %v2064
      %v2066 = vpop.f32.mrb[0].mxu0
      %v2067 = vpop.f32.mrb[0].mxu0
      %v2068 = vadd.f32 0.0, %v2067
      %v2069 = vpop.f32.mrb[0].mxu0
      %2070 = vmatprep.mubr.bf16.mxu0 0
      %2071 = vmatmul.mubr.bf16.gmra.mrb[0].mxu0 %v817
      %v2072 = vpop.f32.mrb[0].mxu0
      %v2073 = vadd.f32 0.0, %v2072
      %v2074 = vpop.f32.mrb[0].mxu0
      %v2075 = vpop.f32.mrb[0].mxu0
      %v2076 = vadd.f32 0.0, %v2075
      %v2077 = vpop.f32.mrb[0].mxu0
      %2078 = vmatprep.mubr.bf16.mxu0 0
      %2079 = vmatmul.mubr.bf16.gmra.mrb[0].mxu0 %v820
      %v2080 = vpop.f32.mrb[0].mxu0
      %v2081 = vadd.f32 0.0, %v2080
      %v2082 = vpop.f32.mrb[0].mxu0
      %v2083 = vpop.f32.mrb[0].mxu0
      %v2084 = vadd.f32 0.0, %v2083
      %v2085 = vpop.f32.mrb[0].mxu0
      %2086 = vmatprep.mubr.bf16.mxu0 0
      %2087 = vmatmul.mubr.bf16.gmra.mrb[0].mxu0 %v823
      %v2088 = vpop.f32.mrb[0].mxu0
      %v2089 = vadd.f32 0.0, %v2088
      %v2090 = vpop.f32.mrb[0].mxu0
      %v2091 = vpop.f32.mrb[0].mxu0
      %v2092 = vadd.f32 0.0, %v2091
      %v2093 = vpop.f32.mrb[0].mxu0
      %2094 = vmatprep.mubr.bf16.mxu0 0
      %2095 = vmatmul.mubr.bf16.gmra.mrb[0].mxu0 %v802
      %v2096 = vpop.f32.mrb[0].mxu0
      %v2097 = vadd.f32 0.0, %v2096
      %v2098 = vpop.f32.mrb[0].mxu0
      %v2099 = vpop.f32.mrb[0].mxu0
      %v2100 = vadd.f32 0.0, %v2099
      %v2101 = vpop.f32.mrb[0].mxu0
      %2102 = vdwg.mxu0
      %v2103 = vsel %vm485, 1, 0
      %v2104 = vsel %vm486, 1, 0
      %v2105 = vsel %vm487, 1, 0
      %v2106 = vsel %vm488, 1, 0
      %v2107 = vsel %vm489, 1, 0
      %v2108 = vsel %vm490, 1, 0
      %v2109 = vsel %vm491, 1, 0
      %v2110 = vsel %vm492, 1, 0
      %v2111 = vsel %vm493, 1, 0
      %v2112 = vsel %vm494, 1, 0
      %v2113 = vsel %vm495, 1, 0
      %v2114 = vsel %vm496, 1, 0
      %v2115 = vsel %vm497, 1, 0
      %v2116 = vsel %vm498, 1, 0
      %v2117 = vsel %vm499, 1, 0
      %v2118 = vsel %vm500, 1, 0
      %vm2119 = vcmp.eq.s32.totalorder %v2103, 1
      %vm2120 = vcmp.eq.s32.totalorder %v2104, 1
      %vm2121 = vcmp.eq.s32.totalorder %v2105, 1
      %vm2122 = vcmp.eq.s32.totalorder %v2106, 1
      %vm2123 = vcmp.eq.s32.totalorder %v2107, 1
      %vm2124 = vcmp.eq.s32.totalorder %v2108, 1
      %vm2125 = vcmp.eq.s32.totalorder %v2109, 1
      %vm2126 = vcmp.eq.s32.totalorder %v2110, 1
      %vm2127 = vcmp.eq.s32.totalorder %v2111, 1
      %vm2128 = vcmp.eq.s32.totalorder %v2112, 1
      %vm2129 = vcmp.eq.s32.totalorder %v2113, 1
      %vm2130 = vcmp.eq.s32.totalorder %v2114, 1
      %vm2131 = vcmp.eq.s32.totalorder %v2115, 1
      %vm2132 = vcmp.eq.s32.totalorder %v2116, 1
      %vm2133 = vcmp.eq.s32.totalorder %v2117, 1
      %vm2134 = vcmp.eq.s32.totalorder %v2118, 1
      %v2135 = vsel %vm2119, %v2041, 0.0
      %v2136 = vsel %vm2120, %v2044, 0.0
      %v2137 = vsel %vm2121, %v2049, 0.0
      %v2138 = vsel %vm2122, %v2052, 0.0
      %v2139 = vsel %vm2123, %v2057, 0.0
      %v2140 = vsel %vm2124, %v2060, 0.0
      %v2141 = vsel %vm2125, %v2065, 0.0
      %v2142 = vsel %vm2126, %v2068, 0.0
      %v2143 = vsel %vm2127, %v2073, 0.0
      %v2144 = vsel %vm2128, %v2076, 0.0
      %v2145 = vsel %vm2129, %v2081, 0.0
      %v2146 = vsel %vm2130, %v2084, 0.0
      %v2147 = vsel %vm2131, %v2089, 0.0
      %v2148 = vsel %vm2132, %v2092, 0.0
      %v2149 = vsel %vm2133, %v2097, 0.0
      %v2150 = vsel %vm2134, %v2100, 0.0
      %v2151 = vadd.f32 %v1973, %v2135
      %v2152 = vadd.f32 %v1974, %v2136
      %v2153 = vadd.f32 %v1975, %v2137
      %v2154 = vadd.f32 %v1976, %v2138
      %v2155 = vadd.f32 %v1977, %v2139
      %v2156 = vadd.f32 %v1978, %v2140
      %v2157 = vadd.f32 %v1979, %v2141
      %v2158 = vadd.f32 %v1980, %v2142
      %v2159 = vadd.f32 %v1981, %v2143
      %v2160 = vadd.f32 %v1982, %v2144
      %v2161 = vadd.f32 %v1983, %v2145
      %v2162 = vadd.f32 %v1984, %v2146
      %v2163 = vadd.f32 %v1985, %v2147
      %v2164 = vadd.f32 %v1986, %v2148
      %v2165 = vadd.f32 %v1987, %v2149
      %v2166 = vadd.f32 %v1988, %v2150
      %s2167 = scalar_lea.vmem %s1, 128
      %v2168 = vld [vmem:[%s2167] sm:$0xf]
      %v2169 = vld [vmem:[%s2167 + $0x4] sm:$0xf]
      %v2170 = vld [vmem:[%s2167 + $0x8] sm:$0xf]
      %v2171 = vld [vmem:[%s2167 + $0xc] sm:$0xf]
      %v2176 = vunpack.c.l.b16 %v2168
      %v2177 = vunpack.c.l.b16 %v2169
      %v2178 = vunpack.c.l.b16 %v2170
      %v2179 = vunpack.c.l.b16 %v2171
      %v2180 = vpack.c.b16 %v2177, %v2176
      %v2181 = vpack.c.b16 %v2179, %v2178
      %2184 = vmatprep.subr.bf16.mxu0 0
      %2185 = vmatpush1.bf16.msra.mxu0 %v2180
      %2186 = vmatprep.subr.bf16.mxu0 0
      %2187 = vmatpush1.bf16.msra.mxu0 %v2181
      %2188 = vmatprep.subr.bf16.mxu0 0
      %2189 = vmatpush1.bf16.msra.mxu0 0
      %2190 = vmatprep.subr.bf16.mxu0 0
      %2191 = vmatpush1.bf16.msra.mxu0 0
      %2192 = vmatprep.subr.bf16.mxu0 0
      %2193 = vmatpush1.bf16.msra.mxu0 0
      %2194 = vmatprep.subr.bf16.mxu0 0
      %2195 = vmatpush1.bf16.msra.mxu0 0
      %2196 = vmatprep.subr.bf16.mxu0 0
      %2197 = vmatpush1.bf16.msra.mxu0 0
      %2198 = vmatprep.subr.bf16.mxu0 0
      %2199 = vmatpush1.bf16.msra.mxu0 0
      %2200 = vmatprep.subr.bf16.mxu0 0
      %2201 = vmatpush1.bf16.msra.mxu0 0
      %2202 = vmatprep.subr.bf16.mxu0 0
      %2203 = vmatpush1.bf16.msra.mxu0 0
      %2204 = vmatprep.subr.bf16.mxu0 0
      %2205 = vmatpush1.bf16.msra.mxu0 0
      %2206 = vmatprep.subr.bf16.mxu0 0
      %2207 = vmatpush1.bf16.msra.mxu0 0
      %2208 = vmatprep.subr.bf16.mxu0 0
      %2209 = vmatpush1.bf16.msra.mxu0 0
      %2210 = vmatprep.subr.bf16.mxu0 0
      %2211 = vmatpush1.bf16.msra.mxu0 0
      %2212 = vmatprep.subr.bf16.mxu0 0
      %2213 = vmatpush1.bf16.msra.mxu0 0
      %2214 = vmatprep.subr.bf16.mxu0 0
      %2215 = vmatpush1.bf16.msra.mxu0 0
      %2216 = vmatprep.mubr.bf16.mxu0 0
      %2217 = vmatmul.mubr.bf16.gmra.mrb[0].mxu0 %v1048
      %v2218 = vpop.f32.mrb[0].mxu0
      %v2219 = vadd.f32 0.0, %v2218
      %v2220 = vpop.f32.mrb[0].mxu0
      %v2221 = vpop.f32.mrb[0].mxu0
      %v2222 = vadd.f32 0.0, %v2221
      %v2223 = vpop.f32.mrb[0].mxu0
      %2224 = vmatprep.mubr.bf16.mxu0 0
      %2225 = vmatmul.mubr.bf16.gmra.mrb[0].mxu0 %v1051
      %v2226 = vpop.f32.mrb[0].mxu0
      %v2227 = vadd.f32 0.0, %v2226
      %v2228 = vpop.f32.mrb[0].mxu0
      %v2229 = vpop.f32.mrb[0].mxu0
      %v2230 = vadd.f32 0.0, %v2229
      %v2231 = vpop.f32.mrb[0].mxu0
      %2232 = vmatprep.mubr.bf16.mxu0 0
      %2233 = vmatmul.mubr.bf16.gmra.mrb[0].mxu0 %v1054
      %v2234 = vpop.f32.mrb[0].mxu0
      %v2235 = vadd.f32 0.0, %v2234
      %v2236 = vpop.f32.mrb[0].mxu0
      %v2237 = vpop.f32.mrb[0].mxu0
      %v2238 = vadd.f32 0.0, %v2237
      %v2239 = vpop.f32.mrb[0].mxu0
      %2240 = vmatprep.mubr.bf16.mxu0 0
      %2241 = vmatmul.mubr.bf16.gmra.mrb[0].mxu0 %v1057
      %v2242 = vpop.f32.mrb[0].mxu0
      %v2243 = vadd.f32 0.0, %v2242
      %v2244 = vpop.f32.mrb[0].mxu0
      %v2245 = vpop.f32.mrb[0].mxu0
      %v2246 = vadd.f32 0.0, %v2245
      %v2247 = vpop.f32.mrb[0].mxu0
      %2248 = vmatprep.mubr.bf16.mxu0 0
      %2249 = vmatmul.mubr.bf16.gmra.mrb[0].mxu0 %v1060
      %v2250 = vpop.f32.mrb[0].mxu0
      %v2251 = vadd.f32 0.0, %v2250
      %v2252 = vpop.f32.mrb[0].mxu0
      %v2253 = vpop.f32.mrb[0].mxu0
      %v2254 = vadd.f32 0.0, %v2253
      %v2255 = vpop.f32.mrb[0].mxu0
      %2256 = vmatprep.mubr.bf16.mxu0 0
      %2257 = vmatmul.mubr.bf16.gmra.mrb[0].mxu0 %v1063
      %v2258 = vpop.f32.mrb[0].mxu0
      %v2259 = vadd.f32 0.0, %v2258
      %v2260 = vpop.f32.mrb[0].mxu0
      %v2261 = vpop.f32.mrb[0].mxu0
      %v2262 = vadd.f32 0.0, %v2261
      %v2263 = vpop.f32.mrb[0].mxu0
      %2264 = vmatprep.mubr.bf16.mxu0 0
      %2265 = vmatmul.mubr.bf16.gmra.mrb[0].mxu0 %v1066
      %v2266 = vpop.f32.mrb[0].mxu0
      %v2267 = vadd.f32 0.0, %v2266
      %v2268 = vpop.f32.mrb[0].mxu0
      %v2269 = vpop.f32.mrb[0].mxu0
      %v2270 = vadd.f32 0.0, %v2269
      %v2271 = vpop.f32.mrb[0].mxu0
      %2272 = vmatprep.mubr.bf16.mxu0 0
      %2273 = vmatmul.mubr.bf16.gmra.mrb[0].mxu0 %v1045
      %v2274 = vpop.f32.mrb[0].mxu0
      %v2275 = vadd.f32 0.0, %v2274
      %v2276 = vpop.f32.mrb[0].mxu0
      %v2277 = vpop.f32.mrb[0].mxu0
      %v2278 = vadd.f32 0.0, %v2277
      %v2279 = vpop.f32.mrb[0].mxu0
      %2280 = vdwg.mxu0
      %v2281 = vsel %vm517, 1, 0
      %v2282 = vsel %vm518, 1, 0
      %v2283 = vsel %vm519, 1, 0
      %v2284 = vsel %vm520, 1, 0
      %v2285 = vsel %vm521, 1, 0
      %v2286 = vsel %vm522, 1, 0
      %v2287 = vsel %vm523, 1, 0
      %v2288 = vsel %vm524, 1, 0
      %v2289 = vsel %vm525, 1, 0
      %v2290 = vsel %vm526, 1, 0
      %v2291 = vsel %vm527, 1, 0
      %v2292 = vsel %vm528, 1, 0
      %v2293 = vsel %vm529, 1, 0
      %v2294 = vsel %vm530, 1, 0
      %v2295 = vsel %vm531, 1, 0
      %v2296 = vsel %vm532, 1, 0
      %vm2297 = vcmp.eq.s32.totalorder %v2281, 1
      %vm2298 = vcmp.eq.s32.totalorder %v2282, 1
      %vm2299 = vcmp.eq.s32.totalorder %v2283, 1
      %vm2300 = vcmp.eq.s32.totalorder %v2284, 1
      %vm2301 = vcmp.eq.s32.totalorder %v2285, 1
      %vm2302 = vcmp.eq.s32.totalorder %v2286, 1
      %vm2303 = vcmp.eq.s32.totalorder %v2287, 1
      %vm2304 = vcmp.eq.s32.totalorder %v2288, 1
      %vm2305 = vcmp.eq.s32.totalorder %v2289, 1
      %vm2306 = vcmp.eq.s32.totalorder %v2290, 1
      %vm2307 = vcmp.eq.s32.totalorder %v2291, 1
      %vm2308 = vcmp.eq.s32.totalorder %v2292, 1
      %vm2309 = vcmp.eq.s32.totalorder %v2293, 1
      %vm2310 = vcmp.eq.s32.totalorder %v2294, 1
      %vm2311 = vcmp.eq.s32.totalorder %v2295, 1
      %vm2312 = vcmp.eq.s32.totalorder %v2296, 1
      %v2313 = vsel %vm2297, %v2219, 0.0
      %v2314 = vsel %vm2298, %v2222, 0.0
      %v2315 = vsel %vm2299, %v2227, 0.0
      %v2316 = vsel %vm2300, %v2230, 0.0
      %v2317 = vsel %vm2301, %v2235, 0.0
      %v2318 = vsel %vm2302, %v2238, 0.0
      %v2319 = vsel %vm2303, %v2243, 0.0
      %v2320 = vsel %vm2304, %v2246, 0.0
      %v2321 = vsel %vm2305, %v2251, 0.0
      %v2322 = vsel %vm2306, %v2254, 0.0
      %v2323 = vsel %vm2307, %v2259, 0.0
      %v2324 = vsel %vm2308, %v2262, 0.0
      %v2325 = vsel %vm2309, %v2267, 0.0
      %v2326 = vsel %vm2310, %v2270, 0.0
      %v2327 = vsel %vm2311, %v2275, 0.0
      %v2328 = vsel %vm2312, %v2278, 0.0
      %v2329 = vadd.f32 %v2151, %v2313
      %v2330 = vadd.f32 %v2152, %v2314
      %v2331 = vadd.f32 %v2153, %v2315
      %v2332 = vadd.f32 %v2154, %v2316
      %v2333 = vadd.f32 %v2155, %v2317
      %v2334 = vadd.f32 %v2156, %v2318
      %v2335 = vadd.f32 %v2157, %v2319
      %v2336 = vadd.f32 %v2158, %v2320
      %v2337 = vadd.f32 %v2159, %v2321
      %v2338 = vadd.f32 %v2160, %v2322
      %v2339 = vadd.f32 %v2161, %v2323
      %v2340 = vadd.f32 %v2162, %v2324
      %v2341 = vadd.f32 %v2163, %v2325
      %v2342 = vadd.f32 %v2164, %v2326
      %v2343 = vadd.f32 %v2165, %v2327
      %v2344 = vadd.f32 %v2166, %v2328
      %v2345 = vld [vmem:[%s2] sm:$0x1]
      %v2347 = vlaneseq
      %v2348 = vshrl.u32 %v2347, 7
      %v2349 = vsub.s32 0, %v2348
      %v2350 = vrot.slane %v2345, %v2349
      %v2352 = vmul.f32 %v2329, %v2350
      %v2353 = vmul.f32 %v2330, %v2350
      %v2354 = vmul.f32 %v2331, %v2350
      %v2355 = vmul.f32 %v2332, %v2350
      %v2356 = vmul.f32 %v2333, %v2350
      %v2357 = vmul.f32 %v2334, %v2350
      %v2358 = vmul.f32 %v2335, %v2350
      %v2359 = vmul.f32 %v2336, %v2350
      %v2360 = vmul.f32 %v2337, %v2350
      %v2361 = vmul.f32 %v2338, %v2350
      %v2362 = vmul.f32 %v2339, %v2350
      %v2363 = vmul.f32 %v2340, %v2350
      %v2364 = vmul.f32 %v2341, %v2350
      %v2365 = vmul.f32 %v2342, %v2350
      %v2366 = vmul.f32 %v2343, %v2350
      %v2367 = vmul.f32 %v2344, %v2350
      %v2368 = vld [vmem:[%s3] sm:$0x1]
      %v2370 = vlaneseq
      %v2371 = vshrl.u32 %v2370, 7
      %v2372 = vsub.s32 0, %v2371
      %v2373 = vrot.slane %v2368, %v2372
      %v2375 = vadd.f32 %v2352, %v2373
      %v2376 = vadd.f32 %v2353, %v2373
      %v2377 = vadd.f32 %v2354, %v2373
      %v2378 = vadd.f32 %v2355, %v2373
      %v2379 = vadd.f32 %v2356, %v2373
      %v2380 = vadd.f32 %v2357, %v2373
      %v2381 = vadd.f32 %v2358, %v2373
      %v2382 = vadd.f32 %v2359, %v2373
      %v2383 = vadd.f32 %v2360, %v2373
      %v2384 = vadd.f32 %v2361, %v2373
      %v2385 = vadd.f32 %v2362, %v2373
      %v2386 = vadd.f32 %v2363, %v2373
      %v2387 = vadd.f32 %v2364, %v2373
      %v2388 = vadd.f32 %v2365, %v2373
      %v2389 = vadd.f32 %v2366, %v2373
      %v2390 = vadd.f32 %v2367, %v2373
      %v2391 = vmax.f32 %v2375, 0.0
      %v2392 = vmax.f32 %v2376, 0.0
      %v2393 = vmax.f32 %v2377, 0.0
      %v2394 = vmax.f32 %v2378, 0.0
      %v2395 = vmax.f32 %v2379, 0.0
      %v2396 = vmax.f32 %v2380, 0.0
      %v2397 = vmax.f32 %v2381, 0.0
      %v2398 = vmax.f32 %v2382, 0.0
      %v2399 = vmax.f32 %v2383, 0.0
      %v2400 = vmax.f32 %v2384, 0.0
      %v2401 = vmax.f32 %v2385, 0.0
      %v2402 = vmax.f32 %v2386, 0.0
      %v2403 = vmax.f32 %v2387, 0.0
      %v2404 = vmax.f32 %v2388, 0.0
      %v2405 = vmax.f32 %v2389, 0.0
      %v2406 = vmax.f32 %v2390, 0.0
      %v2407 = vrot.slane %v2391, 7
      %v2408 = vrot.slane %v2392, 7
      %v2409 = vrot.slane %v2393, 7
      %v2410 = vrot.slane %v2394, 7
      %v2411 = vrot.slane %v2395, 7
      %v2412 = vrot.slane %v2396, 7
      %v2413 = vrot.slane %v2397, 7
      %v2414 = vrot.slane %v2398, 7
      %v2415 = vrot.slane %v2399, 7
      %v2416 = vrot.slane %v2400, 7
      %v2417 = vrot.slane %v2401, 7
      %v2418 = vrot.slane %v2402, 7
      %v2419 = vrot.slane %v2403, 7
      %v2420 = vrot.slane %v2404, 7
      %v2421 = vrot.slane %v2405, 7
      %v2422 = vrot.slane %v2406, 7
      %v2423 = vsel %vm565, %v2421, %v2422
      %v2424 = vsel %vm565, %v2420, %v2421
      %v2425 = vsel %vm565, %v2419, %v2420
      %v2426 = vsel %vm565, %v2418, %v2419
      %v2427 = vsel %vm565, %v2417, %v2418
      %v2428 = vsel %vm565, %v2416, %v2417
      %v2429 = vsel %vm565, %v2415, %v2416
      %v2430 = vsel %vm565, %v2414, %v2415
      %v2431 = vsel %vm565, %v2413, %v2414
      %v2432 = vsel %vm565, %v2412, %v2413
      %v2433 = vsel %vm565, %v2411, %v2412
      %v2434 = vsel %vm565, %v2410, %v2411
      %v2435 = vsel %vm565, %v2409, %v2410
      %v2436 = vsel %vm565, %v2408, %v2409
      %v2437 = vsel %vm565, %v2407, %v2408
      %v2438 = vsel %vm565, %v2422, %v2407
      %v2439 = vld [vmem:[%s4] sm:$0x1]
      %v2441 = vlaneseq
      %v2442 = vshrl.u32 %v2441, 7
      %v2443 = vsub.s32 0, %v2442
      %v2444 = vrot.slane %v2439, %v2443
      %v2446 = vmul.f32 %v2423, %v2444
      %v2447 = vmul.f32 %v2438, %v2444
      %v2448 = vmul.f32 %v2437, %v2444
      %v2449 = vmul.f32 %v2436, %v2444
      %v2450 = vmul.f32 %v2435, %v2444
      %v2451 = vmul.f32 %v2434, %v2444
      %v2452 = vmul.f32 %v2433, %v2444
      %v2453 = vmul.f32 %v2432, %v2444
      %v2454 = vmul.f32 %v2431, %v2444
      %v2455 = vmul.f32 %v2430, %v2444
      %v2456 = vmul.f32 %v2429, %v2444
      %v2457 = vmul.f32 %v2428, %v2444
      %v2458 = vmul.f32 %v2427, %v2444
      %v2459 = vmul.f32 %v2426, %v2444
      %v2460 = vmul.f32 %v2425, %v2444
      %v2461 = vmul.f32 %v2424, %v2444
      %v2462 = vsel %vm744, %v2446, 0.0
      %v2463 = vsel %vm745, %v2447, 0.0
      %v2464 = vsel %vm746, %v2448, 0.0
      %v2465 = vsel %vm747, %v2449, 0.0
      %v2466 = vsel %vm748, %v2450, 0.0
      %v2467 = vsel %vm749, %v2451, 0.0
      %v2468 = vsel %vm750, %v2452, 0.0
      %v2469 = vsel %vm751, %v2453, 0.0
      %v2470 = vsel %vm752, %v2454, 0.0
      %v2471 = vsel %vm753, %v2455, 0.0
      %v2472 = vsel %vm754, %v2456, 0.0
      %v2473 = vsel %vm755, %v2457, 0.0
      %v2474 = vsel %vm756, %v2458, 0.0
      %v2475 = vsel %vm757, %v2459, 0.0
      %v2476 = vsel %vm758, %v2460, 0.0
      %v2477 = vsel %vm759, %v2461, 0.0
      %s2478 = scalar_lea.vmem %s4, 1
      %v2479 = vld [vmem:[%s2478] sm:$0x1]
      %v2481 = vlaneseq
      %v2482 = vshrl.u32 %v2481, 7
      %v2483 = vsub.s32 0, %v2482
      %v2484 = vrot.slane %v2479, %v2483
      %v2486 = vmul.f32 %v2406, %v2484
      %v2487 = vmul.f32 %v2391, %v2484
      %v2488 = vmul.f32 %v2392, %v2484
      %v2489 = vmul.f32 %v2393, %v2484
      %v2490 = vmul.f32 %v2394, %v2484
      %v2491 = vmul.f32 %v2395, %v2484
      %v2492 = vmul.f32 %v2396, %v2484
      %v2493 = vmul.f32 %v2397, %v2484
      %v2494 = vmul.f32 %v2398, %v2484
      %v2495 = vmul.f32 %v2399, %v2484
      %v2496 = vmul.f32 %v2400, %v2484
      %v2497 = vmul.f32 %v2401, %v2484
      %v2498 = vmul.f32 %v2402, %v2484
      %v2499 = vmul.f32 %v2403, %v2484
      %v2500 = vmul.f32 %v2404, %v2484
      %v2501 = vmul.f32 %v2405, %v2484
      %v2502 = vsel %vm938, %v2486, 0.0
      %v2503 = vsel %vm939, %v2487, 0.0
      %v2504 = vsel %vm940, %v2488, 0.0
      %v2505 = vsel %vm941, %v2489, 0.0
      %v2506 = vsel %vm942, %v2490, 0.0
      %v2507 = vsel %vm943, %v2491, 0.0
      %v2508 = vsel %vm944, %v2492, 0.0
      %v2509 = vsel %vm945, %v2493, 0.0
      %v2510 = vsel %vm946, %v2494, 0.0
      %v2511 = vsel %vm947, %v2495, 0.0
      %v2512 = vsel %vm948, %v2496, 0.0
      %v2513 = vsel %vm949, %v2497, 0.0
      %v2514 = vsel %vm950, %v2498, 0.0
      %v2515 = vsel %vm951, %v2499, 0.0
      %v2516 = vsel %vm952, %v2500, 0.0
      %v2517 = vsel %vm953, %v2501, 0.0
      %v2518 = vadd.f32 %v2462, %v2502
      %v2519 = vadd.f32 %v2463, %v2503
      %v2520 = vadd.f32 %v2464, %v2504
      %v2521 = vadd.f32 %v2465, %v2505
      %v2522 = vadd.f32 %v2466, %v2506
      %v2523 = vadd.f32 %v2467, %v2507
      %v2524 = vadd.f32 %v2468, %v2508
      %v2525 = vadd.f32 %v2469, %v2509
      %v2526 = vadd.f32 %v2470, %v2510
      %v2527 = vadd.f32 %v2471, %v2511
      %v2528 = vadd.f32 %v2472, %v2512
      %v2529 = vadd.f32 %v2473, %v2513
      %v2530 = vadd.f32 %v2474, %v2514
      %v2531 = vadd.f32 %v2475, %v2515
      %v2532 = vadd.f32 %v2476, %v2516
      %v2533 = vadd.f32 %v2477, %v2517
      %v2534 = vrot.slane %v2391, 1
      %v2535 = vrot.slane %v2392, 1
      %v2536 = vrot.slane %v2393, 1
      %v2537 = vrot.slane %v2394, 1
      %v2538 = vrot.slane %v2395, 1
      %v2539 = vrot.slane %v2396, 1
      %v2540 = vrot.slane %v2397, 1
      %v2541 = vrot.slane %v2398, 1
      %v2542 = vrot.slane %v2399, 1
      %v2543 = vrot.slane %v2400, 1
      %v2544 = vrot.slane %v2401, 1
      %v2545 = vrot.slane %v2402, 1
      %v2546 = vrot.slane %v2403, 1
      %v2547 = vrot.slane %v2404, 1
      %v2548 = vrot.slane %v2405, 1
      %v2549 = vrot.slane %v2406, 1
      %v2550 = vsel %vm1002, %v2548, %v2549
      %v2551 = vsel %vm1002, %v2547, %v2548
      %v2552 = vsel %vm1002, %v2546, %v2547
      %v2553 = vsel %vm1002, %v2545, %v2546
      %v2554 = vsel %vm1002, %v2544, %v2545
      %v2555 = vsel %vm1002, %v2543, %v2544
      %v2556 = vsel %vm1002, %v2542, %v2543
      %v2557 = vsel %vm1002, %v2541, %v2542
      %v2558 = vsel %vm1002, %v2540, %v2541
      %v2559 = vsel %vm1002, %v2539, %v2540
      %v2560 = vsel %vm1002, %v2538, %v2539
      %v2561 = vsel %vm1002, %v2537, %v2538
      %v2562 = vsel %vm1002, %v2536, %v2537
      %v2563 = vsel %vm1002, %v2535, %v2536
      %v2564 = vsel %vm1002, %v2534, %v2535
      %v2565 = vsel %vm1002, %v2549, %v2534
      %s2566 = scalar_lea.vmem %s4, 2
      %v2567 = vld [vmem:[%s2566] sm:$0x1]
      %v2569 = vlaneseq
      %v2570 = vshrl.u32 %v2569, 7
      %v2571 = vsub.s32 0, %v2570
      %v2572 = vrot.slane %v2567, %v2571
      %v2574 = vmul.f32 %v2565, %v2572
      %v2575 = vmul.f32 %v2564, %v2572
      %v2576 = vmul.f32 %v2563, %v2572
      %v2577 = vmul.f32 %v2562, %v2572
      %v2578 = vmul.f32 %v2561, %v2572
      %v2579 = vmul.f32 %v2560, %v2572
      %v2580 = vmul.f32 %v2559, %v2572
      %v2581 = vmul.f32 %v2558, %v2572
      %v2582 = vmul.f32 %v2557, %v2572
      %v2583 = vmul.f32 %v2556, %v2572
      %v2584 = vmul.f32 %v2555, %v2572
      %v2585 = vmul.f32 %v2554, %v2572
      %v2586 = vmul.f32 %v2553, %v2572
      %v2587 = vmul.f32 %v2552, %v2572
      %v2588 = vmul.f32 %v2551, %v2572
      %v2589 = vmul.f32 %v2550, %v2572
      %v2590 = vsel %vm1181, %v2574, 0.0
      %v2591 = vsel %vm1182, %v2575, 0.0
      %v2592 = vsel %vm1183, %v2576, 0.0
      %v2593 = vsel %vm1184, %v2577, 0.0
      %v2594 = vsel %vm1185, %v2578, 0.0
      %v2595 = vsel %vm1186, %v2579, 0.0
      %v2596 = vsel %vm1187, %v2580, 0.0
      %v2597 = vsel %vm1188, %v2581, 0.0
      %v2598 = vsel %vm1189, %v2582, 0.0
      %v2599 = vsel %vm1190, %v2583, 0.0
      %v2600 = vsel %vm1191, %v2584, 0.0
      %v2601 = vsel %vm1192, %v2585, 0.0
      %v2602 = vsel %vm1193, %v2586, 0.0
      %v2603 = vsel %vm1194, %v2587, 0.0
      %v2604 = vsel %vm1195, %v2588, 0.0
      %v2605 = vsel %vm1196, %v2589, 0.0
      %v2606 = vadd.f32 %v2518, %v2590
      %v2607 = vadd.f32 %v2519, %v2591
      %v2608 = vadd.f32 %v2520, %v2592
      %v2609 = vadd.f32 %v2521, %v2593
      %v2610 = vadd.f32 %v2522, %v2594
      %v2611 = vadd.f32 %v2523, %v2595
      %v2612 = vadd.f32 %v2524, %v2596
      %v2613 = vadd.f32 %v2525, %v2597
      %v2614 = vadd.f32 %v2526, %v2598
      %v2615 = vadd.f32 %v2527, %v2599
      %v2616 = vadd.f32 %v2528, %v2600
      %v2617 = vadd.f32 %v2529, %v2601
      %v2618 = vadd.f32 %v2530, %v2602
      %v2619 = vadd.f32 %v2531, %v2603
      %v2620 = vadd.f32 %v2532, %v2604
      %v2621 = vadd.f32 %v2533, %v2605
      %s2622 = scalar_lea.vmem %s4, 3
      %v2623 = vld [vmem:[%s2622] sm:$0x1]
      %v2625 = vlaneseq
      %v2626 = vshrl.u32 %v2625, 7
      %v2627 = vsub.s32 0, %v2626
      %v2628 = vrot.slane %v2623, %v2627
      %v2630 = vmul.f32 %v2438, %v2628
      %v2631 = vmul.f32 %v2437, %v2628
      %v2632 = vmul.f32 %v2436, %v2628
      %v2633 = vmul.f32 %v2435, %v2628
      %v2634 = vmul.f32 %v2434, %v2628
      %v2635 = vmul.f32 %v2433, %v2628
      %v2636 = vmul.f32 %v2432, %v2628
      %v2637 = vmul.f32 %v2431, %v2628
      %v2638 = vmul.f32 %v2430, %v2628
      %v2639 = vmul.f32 %v2429, %v2628
      %v2640 = vmul.f32 %v2428, %v2628
      %v2641 = vmul.f32 %v2427, %v2628
      %v2642 = vmul.f32 %v2426, %v2628
      %v2643 = vmul.f32 %v2425, %v2628
      %v2644 = vmul.f32 %v2424, %v2628
      %v2645 = vmul.f32 %v2423, %v2628
      %v2646 = vsel %vm1391, %v2630, 0.0
      %v2647 = vsel %vm1392, %v2631, 0.0
      %v2648 = vsel %vm1393, %v2632, 0.0
      %v2649 = vsel %vm1394, %v2633, 0.0
      %v2650 = vsel %vm1395, %v2634, 0.0
      %v2651 = vsel %vm1396, %v2635, 0.0
      %v2652 = vsel %vm1397, %v2636, 0.0
      %v2653 = vsel %vm1398, %v2637, 0.0
      %v2654 = vsel %vm1399, %v2638, 0.0
      %v2655 = vsel %vm1400, %v2639, 0.0
      %v2656 = vsel %vm1401, %v2640, 0.0
      %v2657 = vsel %vm1402, %v2641, 0.0
      %v2658 = vsel %vm1403, %v2642, 0.0
      %v2659 = vsel %vm1404, %v2643, 0.0
      %v2660 = vsel %vm1405, %v2644, 0.0
      %v2661 = vsel %vm1406, %v2645, 0.0
      %v2662 = vadd.f32 %v2606, %v2646
      %v2663 = vadd.f32 %v2607, %v2647
      %v2664 = vadd.f32 %v2608, %v2648
      %v2665 = vadd.f32 %v2609, %v2649
      %v2666 = vadd.f32 %v2610, %v2650
      %v2667 = vadd.f32 %v2611, %v2651
      %v2668 = vadd.f32 %v2612, %v2652
      %v2669 = vadd.f32 %v2613, %v2653
      %v2670 = vadd.f32 %v2614, %v2654
      %v2671 = vadd.f32 %v2615, %v2655
      %v2672 = vadd.f32 %v2616, %v2656
      %v2673 = vadd.f32 %v2617, %v2657
      %v2674 = vadd.f32 %v2618, %v2658
      %v2675 = vadd.f32 %v2619, %v2659
      %v2676 = vadd.f32 %v2620, %v2660
      %v2677 = vadd.f32 %v2621, %v2661
      %s2678 = scalar_lea.vmem %s4, 4
      %v2679 = vld [vmem:[%s2678] sm:$0x1]
      %v2681 = vlaneseq
      %v2682 = vshrl.u32 %v2681, 7
      %v2683 = vsub.s32 0, %v2682
      %v2684 = vrot.slane %v2679, %v2683
      %v2686 = vmul.f32 %v2391, %v2684
      %v2687 = vmul.f32 %v2392, %v2684
      %v2688 = vmul.f32 %v2393, %v2684
      %v2689 = vmul.f32 %v2394, %v2684
      %v2690 = vmul.f32 %v2395, %v2684
      %v2691 = vmul.f32 %v2396, %v2684
      %v2692 = vmul.f32 %v2397, %v2684
      %v2693 = vmul.f32 %v2398, %v2684
      %v2694 = vmul.f32 %v2399, %v2684
      %v2695 = vmul.f32 %v2400, %v2684
      %v2696 = vmul.f32 %v2401, %v2684
      %v2697 = vmul.f32 %v2402, %v2684
      %v2698 = vmul.f32 %v2403, %v2684
      %v2699 = vmul.f32 %v2404, %v2684
      %v2700 = vmul.f32 %v2405, %v2684
      %v2701 = vmul.f32 %v2406, %v2684
      %v2702 = vadd.f32 %v2662, %v2686
      %v2703 = vadd.f32 %v2663, %v2687
      %v2704 = vadd.f32 %v2664, %v2688
      %v2705 = vadd.f32 %v2665, %v2689
      %v2706 = vadd.f32 %v2666, %v2690
      %v2707 = vadd.f32 %v2667, %v2691
      %v2708 = vadd.f32 %v2668, %v2692
      %v2709 = vadd.f32 %v2669, %v2693
      %v2710 = vadd.f32 %v2670, %v2694
      %v2711 = vadd.f32 %v2671, %v2695
      %v2712 = vadd.f32 %v2672, %v2696
      %v2713 = vadd.f32 %v2673, %v2697
      %v2714 = vadd.f32 %v2674, %v2698
      %v2715 = vadd.f32 %v2675, %v2699
      %v2716 = vadd.f32 %v2676, %v2700
      %v2717 = vadd.f32 %v2677, %v2701
      %s2718 = scalar_lea.vmem %s4, 5
      %v2719 = vld [vmem:[%s2718] sm:$0x1]
      %v2721 = vlaneseq
      %v2722 = vshrl.u32 %v2721, 7
      %v2723 = vsub.s32 0, %v2722
      %v2724 = vrot.slane %v2719, %v2723
      %v2726 = vmul.f32 %v2564, %v2724
      %v2727 = vmul.f32 %v2563, %v2724
      %v2728 = vmul.f32 %v2562, %v2724
      %v2729 = vmul.f32 %v2561, %v2724
      %v2730 = vmul.f32 %v2560, %v2724
      %v2731 = vmul.f32 %v2559, %v2724
      %v2732 = vmul.f32 %v2558, %v2724
      %v2733 = vmul.f32 %v2557, %v2724
      %v2734 = vmul.f32 %v2556, %v2724
      %v2735 = vmul.f32 %v2555, %v2724
      %v2736 = vmul.f32 %v2554, %v2724
      %v2737 = vmul.f32 %v2553, %v2724
      %v2738 = vmul.f32 %v2552, %v2724
      %v2739 = vmul.f32 %v2551, %v2724
      %v2740 = vmul.f32 %v2550, %v2724
      %v2741 = vmul.f32 %v2565, %v2724
      %v2742 = vsel %vm1763, %v2726, 0.0
      %v2743 = vsel %vm1764, %v2727, 0.0
      %v2744 = vsel %vm1765, %v2728, 0.0
      %v2745 = vsel %vm1766, %v2729, 0.0
      %v2746 = vsel %vm1767, %v2730, 0.0
      %v2747 = vsel %vm1768, %v2731, 0.0
      %v2748 = vsel %vm1769, %v2732, 0.0
      %v2749 = vsel %vm1770, %v2733, 0.0
      %v2750 = vsel %vm1771, %v2734, 0.0
      %v2751 = vsel %vm1772, %v2735, 0.0
      %v2752 = vsel %vm1773, %v2736, 0.0
      %v2753 = vsel %vm1774, %v2737, 0.0
      %v2754 = vsel %vm1775, %v2738, 0.0
      %v2755 = vsel %vm1776, %v2739, 0.0
      %v2756 = vsel %vm1777, %v2740, 0.0
      %v2757 = vsel %vm1778, %v2741, 0.0
      %v2758 = vadd.f32 %v2702, %v2742
      %v2759 = vadd.f32 %v2703, %v2743
      %v2760 = vadd.f32 %v2704, %v2744
      %v2761 = vadd.f32 %v2705, %v2745
      %v2762 = vadd.f32 %v2706, %v2746
      %v2763 = vadd.f32 %v2707, %v2747
      %v2764 = vadd.f32 %v2708, %v2748
      %v2765 = vadd.f32 %v2709, %v2749
      %v2766 = vadd.f32 %v2710, %v2750
      %v2767 = vadd.f32 %v2711, %v2751
      %v2768 = vadd.f32 %v2712, %v2752
      %v2769 = vadd.f32 %v2713, %v2753
      %v2770 = vadd.f32 %v2714, %v2754
      %v2771 = vadd.f32 %v2715, %v2755
      %v2772 = vadd.f32 %v2716, %v2756
      %v2773 = vadd.f32 %v2717, %v2757
      %s2774 = scalar_lea.vmem %s4, 6
      %v2775 = vld [vmem:[%s2774] sm:$0x1]
      %v2777 = vlaneseq
      %v2778 = vshrl.u32 %v2777, 7
      %v2779 = vsub.s32 0, %v2778
      %v2780 = vrot.slane %v2775, %v2779
      %v2782 = vmul.f32 %v2437, %v2780
      %v2783 = vmul.f32 %v2436, %v2780
      %v2784 = vmul.f32 %v2435, %v2780
      %v2785 = vmul.f32 %v2434, %v2780
      %v2786 = vmul.f32 %v2433, %v2780
      %v2787 = vmul.f32 %v2432, %v2780
      %v2788 = vmul.f32 %v2431, %v2780
      %v2789 = vmul.f32 %v2430, %v2780
      %v2790 = vmul.f32 %v2429, %v2780
      %v2791 = vmul.f32 %v2428, %v2780
      %v2792 = vmul.f32 %v2427, %v2780
      %v2793 = vmul.f32 %v2426, %v2780
      %v2794 = vmul.f32 %v2425, %v2780
      %v2795 = vmul.f32 %v2424, %v2780
      %v2796 = vmul.f32 %v2423, %v2780
      %v2797 = vmul.f32 %v2438, %v2780
      %v2798 = vsel %vm1941, %v2782, 0.0
      %v2799 = vsel %vm1942, %v2783, 0.0
      %v2800 = vsel %vm1943, %v2784, 0.0
      %v2801 = vsel %vm1944, %v2785, 0.0
      %v2802 = vsel %vm1945, %v2786, 0.0
      %v2803 = vsel %vm1946, %v2787, 0.0
      %v2804 = vsel %vm1947, %v2788, 0.0
      %v2805 = vsel %vm1948, %v2789, 0.0
      %v2806 = vsel %vm1949, %v2790, 0.0
      %v2807 = vsel %vm1950, %v2791, 0.0
      %v2808 = vsel %vm1951, %v2792, 0.0
      %v2809 = vsel %vm1952, %v2793, 0.0
      %v2810 = vsel %vm1953, %v2794, 0.0
      %v2811 = vsel %vm1954, %v2795, 0.0
      %v2812 = vsel %vm1955, %v2796, 0.0
      %v2813 = vsel %vm1956, %v2797, 0.0
      %v2814 = vadd.f32 %v2758, %v2798
      %v2815 = vadd.f32 %v2759, %v2799
      %v2816 = vadd.f32 %v2760, %v2800
      %v2817 = vadd.f32 %v2761, %v2801
      %v2818 = vadd.f32 %v2762, %v2802
      %v2819 = vadd.f32 %v2763, %v2803
      %v2820 = vadd.f32 %v2764, %v2804
      %v2821 = vadd.f32 %v2765, %v2805
      %v2822 = vadd.f32 %v2766, %v2806
      %v2823 = vadd.f32 %v2767, %v2807
      %v2824 = vadd.f32 %v2768, %v2808
      %v2825 = vadd.f32 %v2769, %v2809
      %v2826 = vadd.f32 %v2770, %v2810
      %v2827 = vadd.f32 %v2771, %v2811
      %v2828 = vadd.f32 %v2772, %v2812
      %v2829 = vadd.f32 %v2773, %v2813
      %s2830 = scalar_lea.vmem %s4, 7
      %v2831 = vld [vmem:[%s2830] sm:$0x1]
      %v2833 = vlaneseq
      %v2834 = vshrl.u32 %v2833, 7
      %v2835 = vsub.s32 0, %v2834
      %v2836 = vrot.slane %v2831, %v2835
      %v2838 = vmul.f32 %v2392, %v2836
      %v2839 = vmul.f32 %v2393, %v2836
      %v2840 = vmul.f32 %v2394, %v2836
      %v2841 = vmul.f32 %v2395, %v2836
      %v2842 = vmul.f32 %v2396, %v2836
      %v2843 = vmul.f32 %v2397, %v2836
      %v2844 = vmul.f32 %v2398, %v2836
      %v2845 = vmul.f32 %v2399, %v2836
      %v2846 = vmul.f32 %v2400, %v2836
      %v2847 = vmul.f32 %v2401, %v2836
      %v2848 = vmul.f32 %v2402, %v2836
      %v2849 = vmul.f32 %v2403, %v2836
      %v2850 = vmul.f32 %v2404, %v2836
      %v2851 = vmul.f32 %v2405, %v2836
      %v2852 = vmul.f32 %v2406, %v2836
      %v2853 = vmul.f32 %v2391, %v2836
      %v2854 = vsel %vm2119, %v2838, 0.0
      %v2855 = vsel %vm2120, %v2839, 0.0
      %v2856 = vsel %vm2121, %v2840, 0.0
      %v2857 = vsel %vm2122, %v2841, 0.0
      %v2858 = vsel %vm2123, %v2842, 0.0
      %v2859 = vsel %vm2124, %v2843, 0.0
      %v2860 = vsel %vm2125, %v2844, 0.0
      %v2861 = vsel %vm2126, %v2845, 0.0
      %v2862 = vsel %vm2127, %v2846, 0.0
      %v2863 = vsel %vm2128, %v2847, 0.0
      %v2864 = vsel %vm2129, %v2848, 0.0
      %v2865 = vsel %vm2130, %v2849, 0.0
      %v2866 = vsel %vm2131, %v2850, 0.0
      %v2867 = vsel %vm2132, %v2851, 0.0
      %v2868 = vsel %vm2133, %v2852, 0.0
      %v2869 = vsel %vm2134, %v2853, 0.0
      %v2870 = vadd.f32 %v2814, %v2854
      %v2871 = vadd.f32 %v2815, %v2855
      %v2872 = vadd.f32 %v2816, %v2856
      %v2873 = vadd.f32 %v2817, %v2857
      %v2874 = vadd.f32 %v2818, %v2858
      %v2875 = vadd.f32 %v2819, %v2859
      %v2876 = vadd.f32 %v2820, %v2860
      %v2877 = vadd.f32 %v2821, %v2861
      %v2878 = vadd.f32 %v2822, %v2862
      %v2879 = vadd.f32 %v2823, %v2863
      %v2880 = vadd.f32 %v2824, %v2864
      %v2881 = vadd.f32 %v2825, %v2865
      %v2882 = vadd.f32 %v2826, %v2866
      %v2883 = vadd.f32 %v2827, %v2867
      %v2884 = vadd.f32 %v2828, %v2868
      %v2885 = vadd.f32 %v2829, %v2869
      %s2886 = scalar_lea.vmem %s4, 8
      %v2887 = vld [vmem:[%s2886] sm:$0x1]
      %v2889 = vlaneseq
      %v2890 = vshrl.u32 %v2889, 7
      %v2891 = vsub.s32 0, %v2890
      %v2892 = vrot.slane %v2887, %v2891
      %v2894 = vmul.f32 %v2563, %v2892
      %v2895 = vmul.f32 %v2562, %v2892
      %v2896 = vmul.f32 %v2561, %v2892
      %v2897 = vmul.f32 %v2560, %v2892
      %v2898 = vmul.f32 %v2559, %v2892
      %v2899 = vmul.f32 %v2558, %v2892
      %v2900 = vmul.f32 %v2557, %v2892
      %v2901 = vmul.f32 %v2556, %v2892
      %v2902 = vmul.f32 %v2555, %v2892
      %v2903 = vmul.f32 %v2554, %v2892
      %v2904 = vmul.f32 %v2553, %v2892
      %v2905 = vmul.f32 %v2552, %v2892
      %v2906 = vmul.f32 %v2551, %v2892
      %v2907 = vmul.f32 %v2550, %v2892
      %v2908 = vmul.f32 %v2565, %v2892
      %v2909 = vmul.f32 %v2564, %v2892
      %v2910 = vsel %vm2297, %v2894, 0.0
      %v2911 = vsel %vm2298, %v2895, 0.0
      %v2912 = vsel %vm2299, %v2896, 0.0
      %v2913 = vsel %vm2300, %v2897, 0.0
      %v2914 = vsel %vm2301, %v2898, 0.0
      %v2915 = vsel %vm2302, %v2899, 0.0
      %v2916 = vsel %vm2303, %v2900, 0.0
      %v2917 = vsel %vm2304, %v2901, 0.0
      %v2918 = vsel %vm2305, %v2902, 0.0
      %v2919 = vsel %vm2306, %v2903, 0.0
      %v2920 = vsel %vm2307, %v2904, 0.0
      %v2921 = vsel %vm2308, %v2905, 0.0
      %v2922 = vsel %vm2309, %v2906, 0.0
      %v2923 = vsel %vm2310, %v2907, 0.0
      %v2924 = vsel %vm2311, %v2908, 0.0
      %v2925 = vsel %vm2312, %v2909, 0.0
      %v2926 = vadd.f32 %v2870, %v2910
      %v2927 = vadd.f32 %v2871, %v2911
      %v2928 = vadd.f32 %v2872, %v2912
      %v2929 = vadd.f32 %v2873, %v2913
      %v2930 = vadd.f32 %v2874, %v2914
      %v2931 = vadd.f32 %v2875, %v2915
      %v2932 = vadd.f32 %v2876, %v2916
      %v2933 = vadd.f32 %v2877, %v2917
      %v2934 = vadd.f32 %v2878, %v2918
      %v2935 = vadd.f32 %v2879, %v2919
      %v2936 = vadd.f32 %v2880, %v2920
      %v2937 = vadd.f32 %v2881, %v2921
      %v2938 = vadd.f32 %v2882, %v2922
      %v2939 = vadd.f32 %v2883, %v2923
      %v2940 = vadd.f32 %v2884, %v2924
      %v2941 = vadd.f32 %v2885, %v2925
      %vm2942 = vcmask 64512
      %v2943 = vsel %vm2942, %v2926, 0.0
      %2944 = vadd.xlane.f32.xlu0 %v2943
      %v2945 = vpop.xlane.xlu0 %2944
      %v2946 = vsel %vm2942, %v2927, 0.0
      %2947 = vadd.xlane.f32.xlu0 %v2946
      %v2948 = vpop.xlane.xlu0 %2947
      %v2949 = vsel %vm2942, %v2928, 0.0
      %2950 = vadd.xlane.f32.xlu0 %v2949
      %v2951 = vpop.xlane.xlu0 %2950
      %v2952 = vsel %vm2942, %v2929, 0.0
      %2953 = vadd.xlane.f32.xlu0 %v2952
      %v2954 = vpop.xlane.xlu0 %2953
      %v2955 = vsel %vm2942, %v2930, 0.0
      %2956 = vadd.xlane.f32.xlu0 %v2955
      %v2957 = vpop.xlane.xlu0 %2956
      %v2958 = vsel %vm2942, %v2931, 0.0
      %2959 = vadd.xlane.f32.xlu0 %v2958
      %v2960 = vpop.xlane.xlu0 %2959
      %v2961 = vsel %vm2942, %v2932, 0.0
      %2962 = vadd.xlane.f32.xlu0 %v2961
      %v2963 = vpop.xlane.xlu0 %2962
      %v2964 = vsel %vm2942, %v2933, 0.0
      %2965 = vadd.xlane.f32.xlu0 %v2964
      %v2966 = vpop.xlane.xlu0 %2965
      %v2967 = vsel %vm2942, %v2934, 0.0
      %2968 = vadd.xlane.f32.xlu0 %v2967
      %v2969 = vpop.xlane.xlu0 %2968
      %v2970 = vsel %vm2942, %v2935, 0.0
      %2971 = vadd.xlane.f32.xlu0 %v2970
      %v2972 = vpop.xlane.xlu0 %2971
      %v2973 = vsel %vm2942, %v2936, 0.0
      %2974 = vadd.xlane.f32.xlu0 %v2973
      %v2975 = vpop.xlane.xlu0 %2974
      %v2976 = vsel %vm2942, %v2937, 0.0
      %2977 = vadd.xlane.f32.xlu0 %v2976
      %v2978 = vpop.xlane.xlu0 %2977
      %v2979 = vsel %vm2942, %v2938, 0.0
      %2980 = vadd.xlane.f32.xlu0 %v2979
      %v2981 = vpop.xlane.xlu0 %2980
      %v2982 = vsel %vm2942, %v2939, 0.0
      %2983 = vadd.xlane.f32.xlu0 %v2982
      %v2984 = vpop.xlane.xlu0 %2983
      %v2985 = vsel %vm2942, %v2940, 0.0
      %2986 = vadd.xlane.f32.xlu0 %v2985
      %v2987 = vpop.xlane.xlu0 %2986
      %v2988 = vsel %vm2942, %v2941, 0.0
      %2989 = vadd.xlane.f32.xlu0 %v2988
      %v2990 = vpop.xlane.xlu0 %2989
      %v2991 = vld [vmem:[#allocation2] sm:$0x1]
      %v2993 = vlaneseq
      %v2994 = vshrl.u32 %v2993, 7
      %v2995 = vsub.s32 0, %v2994
      %v2996 = vrot.slane %v2991, %v2995
      %v2998 = vmul.f32 %v2945, %v2996
      %v2999 = vmul.f32 %v2948, %v2996
      %v3000 = vmul.f32 %v2951, %v2996
      %v3001 = vmul.f32 %v2954, %v2996
      %v3002 = vmul.f32 %v2957, %v2996
      %v3003 = vmul.f32 %v2960, %v2996
      %v3004 = vmul.f32 %v2963, %v2996
      %v3005 = vmul.f32 %v2966, %v2996
      %v3006 = vmul.f32 %v2969, %v2996
      %v3007 = vmul.f32 %v2972, %v2996
      %v3008 = vmul.f32 %v2975, %v2996
      %v3009 = vmul.f32 %v2978, %v2996
      %v3010 = vmul.f32 %v2981, %v2996
      %v3011 = vmul.f32 %v2984, %v2996
      %v3012 = vmul.f32 %v2987, %v2996
      %v3013 = vmul.f32 %v2990, %v2996
      %v3014 = vld [vmem:[#allocation3] sm:$0x1]
      %v3016 = vlaneseq
      %v3017 = vshrl.u32 %v3016, 7
      %v3018 = vsub.s32 0, %v3017
      %v3019 = vrot.slane %v3014, %v3018
      %v3021 = vadd.f32 %v2998, %v3019
      %v3022 = vadd.f32 %v2999, %v3019
      %v3023 = vadd.f32 %v3000, %v3019
      %v3024 = vadd.f32 %v3001, %v3019
      %v3025 = vadd.f32 %v3002, %v3019
      %v3026 = vadd.f32 %v3003, %v3019
      %v3027 = vadd.f32 %v3004, %v3019
      %v3028 = vadd.f32 %v3005, %v3019
      %v3029 = vadd.f32 %v3006, %v3019
      %v3030 = vadd.f32 %v3007, %v3019
      %v3031 = vadd.f32 %v3008, %v3019
      %v3032 = vadd.f32 %v3009, %v3019
      %v3033 = vadd.f32 %v3010, %v3019
      %v3034 = vadd.f32 %v3011, %v3019
      %v3035 = vadd.f32 %v3012, %v3019
      %v3036 = vadd.f32 %v3013, %v3019
      %v3037 = vmax.f32 %v3021, 0.0
      %v3038 = vmax.f32 %v3022, 0.0
      %v3039 = vmax.f32 %v3023, 0.0
      %v3040 = vmax.f32 %v3024, 0.0
      %v3041 = vmax.f32 %v3025, 0.0
      %v3042 = vmax.f32 %v3026, 0.0
      %v3043 = vmax.f32 %v3027, 0.0
      %v3044 = vmax.f32 %v3028, 0.0
      %v3045 = vmax.f32 %v3029, 0.0
      %v3046 = vmax.f32 %v3030, 0.0
      %v3047 = vmax.f32 %v3031, 0.0
      %v3048 = vmax.f32 %v3032, 0.0
      %v3049 = vmax.f32 %v3033, 0.0
      %v3050 = vmax.f32 %v3034, 0.0
      %v3051 = vmax.f32 %v3035, 0.0
      %v3052 = vmax.f32 %v3036, 0.0
      %v3053 = vld [vmem:[%s7] sm:$0xff]
      %v3054 = vld [vmem:[%s7 + $0x8] sm:$0xff]
      %v3055 = vld [vmem:[%s7 + $0x10] sm:$0xff]
      %v3056 = vld [vmem:[%s7 + $0x18] sm:$0xff]
      %v3057 = vld [vmem:[%s7 + $0x20] sm:$0xff]
      %v3058 = vld [vmem:[%s7 + $0x28] sm:$0xff]
      %v3059 = vld [vmem:[%s7 + $0x30] sm:$0xff]
      %v3060 = vld [vmem:[%s7 + $0x38] sm:$0xff]
      %v3061 = vmul.f32 %v3037, %v3053
      %v3062 = vmul.f32 %v3038, %v3054
      %v3063 = vmul.f32 %v3039, %v3055
      %v3064 = vmul.f32 %v3040, %v3056
      %v3065 = vmul.f32 %v3041, %v3057
      %v3066 = vmul.f32 %v3042, %v3058
      %v3067 = vmul.f32 %v3043, %v3059
      %v3068 = vmul.f32 %v3044, %v3060
      %v3069 = vmul.f32 %v3045, %v3053
      %v3070 = vmul.f32 %v3046, %v3054
      %v3071 = vmul.f32 %v3047, %v3055
      %v3072 = vmul.f32 %v3048, %v3056
      %v3073 = vmul.f32 %v3049, %v3057
      %v3074 = vmul.f32 %v3050, %v3058
      %v3075 = vmul.f32 %v3051, %v3059
      %v3076 = vmul.f32 %v3052, %v3060
      %vm3077 = vcmask 7168
      %v3078 = vsel %vm3077, %v3061, 0.0
      %v3079 = vsel %vm3077, %v3062, 0.0
      %v3080 = vadd.f32 %v3078, %v3079
      %v3081 = vsel %vm3077, %v3063, 0.0
      %v3082 = vadd.f32 %v3080, %v3081
      %v3083 = vsel %vm3077, %v3064, 0.0
      %v3084 = vadd.f32 %v3082, %v3083
      %v3085 = vsel %vm3077, %v3065, 0.0
      %v3086 = vadd.f32 %v3084, %v3085
      %v3087 = vsel %vm3077, %v3066, 0.0
      %v3088 = vadd.f32 %v3086, %v3087
      %v3089 = vsel %vm3077, %v3067, 0.0
      %v3090 = vadd.f32 %v3088, %v3089
      %v3091 = vsel %vm3077, %v3068, 0.0
      %v3092 = vadd.f32 %v3090, %v3091
      %v3093 = vrot.slane %v3092, 4
      %v3094 = vadd.f32 %v3092, %v3093
      %v3095 = vrot.slane %v3094, 2
      %v3096 = vadd.f32 %v3094, %v3095
      %v3097 = vrot.slane %v3096, 1
      %v3098 = vadd.f32 %v3096, %v3097
      %v3099 = vsel %vm3077, %v3069, 0.0
      %v3100 = vsel %vm3077, %v3070, 0.0
      %v3101 = vadd.f32 %v3099, %v3100
      %v3102 = vsel %vm3077, %v3071, 0.0
      %v3103 = vadd.f32 %v3101, %v3102
      %v3104 = vsel %vm3077, %v3072, 0.0
      %v3105 = vadd.f32 %v3103, %v3104
      %v3106 = vsel %vm3077, %v3073, 0.0
      %v3107 = vadd.f32 %v3105, %v3106
      %v3108 = vsel %vm3077, %v3074, 0.0
      %v3109 = vadd.f32 %v3107, %v3108
      %v3110 = vsel %vm3077, %v3075, 0.0
      %v3111 = vadd.f32 %v3109, %v3110
      %v3112 = vsel %vm3077, %v3076, 0.0
      %v3113 = vadd.f32 %v3111, %v3112
      %v3114 = vrot.slane %v3113, 4
      %v3115 = vadd.f32 %v3113, %v3114
      %v3116 = vrot.slane %v3115, 2
      %v3117 = vadd.f32 %v3115, %v3116
      %v3118 = vrot.slane %v3117, 1
      %v3119 = vadd.f32 %v3117, %v3118
      %v3120 = vld [vmem:[#allocation4] sm:$0x1]
      %v3122 = vlaneseq
      %v3123 = vshrl.u32 %v3122, 7
      %v3124 = vsub.s32 0, %v3123
      %v3125 = vrot.slane %v3120, %v3124
      %v3127 = vadd.f32 %v3098, %v3125
      %v3128 = vadd.f32 %v3119, %v3125
      %v3129 = vtanh.pop %v3127
      %v3130 = vtanh.pop %v3128
      %v3133 = vrot.slane %v3130, 7
      %vm3134 = vcmask 1041409
      %v3135 = vsel %vm3134, %v3133, %v3129
      %vm3137 = vcmask 1024
      %3138 = vst.msk [vmem:[%s338] sm:$0x3] %vm3137, %v3135
      %p3139 = scmp.lt.s32.totalorder %s26, 1
      %s3140 = scalar_select %p3139, %s26, 1
      %s3141 = smul.addr %s3140, 2
      %s3142 = scalar_lea.vmem %s9, %s3141
      // Predicated region
      $region57: #{tpu_custom_call.1} parent=55 // pred_check
        %p3143 = pneg %p238
      $region58: #{tpu_custom_call.1} parent=55 // pred_check_branch
        %3145 = sbr.rel (%p3143) target = $region60
      $region59: #{tpu_custom_call.1} parent=55 // pred_region
        _
      $region60: #{tpu_custom_call.1} parent=55 // pred_fallthru
        _
    $region56: #{tpu_custom_call.1} parent=5 // pred_fallthru
      _
    %p3146 = scmp.le.s32.totalorder 2, %s21
    // Predicated region
    $region61: #{tpu_custom_call.1} parent=5 // pred_check
      %p3147 = pneg %p3146
    $region62: #{tpu_custom_call.1} parent=5 // pred_check_branch
      %3149 = sbr.rel (%p3147) target = $region64
    $region63: #{tpu_custom_call.1} parent=5 // pred_region
      %s3150 = ssub.s32 %s21, 2
      // Predicated region
      $region65: #{tpu_custom_call.1} parent=63 // pred_check
        %p3151 = pneg %p244
      $region66: #{tpu_custom_call.1} parent=63 // pred_check_branch
        %3153 = sbr.rel (%p3151) target = $region68
      $region67: #{tpu_custom_call.1} parent=63 // pred_region
        %p3154 = scmp.lt.s32.totalorder %s27, 1
        %s3155 = scalar_select %p3154, %s27, 1
        %s3156 = smul.addr %s3155, 2
        %s3157 = scalar_lea.vmem %s9, %s3156
      $region68: #{tpu_custom_call.1} parent=63 // pred_fallthru
        _
    $region64: #{tpu_custom_call.1} parent=5 // pred_fallthru
      _
  $region6: #{tpu_custom_call.1} parent=0 // loop_footer
    %s25 = sadd.s32 1, %s21
  $region7: #{tpu_custom_call.1} parent=0 // loop_footer_branch
    %20 = sbr.rel target = $region3
  $region8: #{tpu_custom_call.1} parent=0 // loop_exit
    _

</llo_original>
